<compile_context>
chip_gen: v5e
topology: v5e:2x2
jax: 0.10.0
libtpu: 0.0.40
codegen_flags: <defaults>
</compile_context>

<pallas_src>
import functools

import jax
import jax.numpy as jnp
from jax.experimental import pallas as pl
from jax.experimental.pallas import tpu as pltpu


# ---------------------------------------------------------------------------
# Pallas kernels
# ---------------------------------------------------------------------------
def _matmul_bias_act_kernel(x_ref, w_ref, b_ref, o_ref, *, relu):
    acc = jnp.dot(x_ref[...], w_ref[...], preferred_element_type=jnp.float32)
    acc = acc + b_ref[...]                     # (M, N) + (1, N) broadcast, f32 epilogue
    if relu:
        acc = jnp.maximum(acc, 0.0)
    o_ref[...] = acc.astype(o_ref.dtype)


def matmul_bias_act(x, w, b2d, *, relu, out_dtype):
    """Single-block fused y = x @ w + b (optional ReLU).

    x: (M, K) bf16, w: (K, N) bf16, b2d: (1, N) f32.  No padding / slicing glue:
    block_shape == full array dims, so Mosaic pads internally in VMEM.
    """
    M, K = x.shape
    K2, N = w.shape
    assert K == K2, (K, K2)
    return pl.pallas_call(
        functools.partial(_matmul_bias_act_kernel, relu=relu),
        out_shape=jax.ShapeDtypeStruct((M, N), out_dtype),
        grid=(1,),
        in_specs=[
            pl.BlockSpec((M, K), lambda i: (0, 0)),
            pl.BlockSpec((K, N), lambda i: (0, 0)),
            pl.BlockSpec((1, N), lambda i: (0, 0)),
        ],
        out_specs=pl.BlockSpec((M, N), lambda i: (0, 0)),
        compiler_params=pltpu.CompilerParams(dimension_semantics=("arbitrary",)),
    )(x, w, b2d)


def _fused_mlp_kernel(x_ref, w1_ref, b1_ref, w2_ref, b2_ref,
                      w3_ref, b3_ref, w4_ref, b4_ref, o_ref):
    """enc_fc1+ReLU -> enc_fc2 -> dec_fc1+ReLU -> dec_fc2+ReLU, all VMEM-resident."""
    def stage(a, w_ref, b_ref, relu):
        acc = jnp.dot(a, w_ref[...], preferred_element_type=jnp.float32) + b_ref[...]
        if relu:
            acc = jnp.maximum(acc, 0.0)
        return acc

    h = stage(x_ref[...], w1_ref, b1_ref, True)                 # (B, hidden)
    z = stage(h.astype(jnp.bfloat16), w2_ref, b2_ref, False)    # (B, latent)
    h = stage(z.astype(jnp.bfloat16), w3_ref, b3_ref, True)     # (B, hidden)
    # PyTorch applies ReLU *after* the Rearrange, which is value-preserving -> fuse here.
    h = stage(h.astype(jnp.bfloat16), w4_ref, b4_ref, True)     # (B, 1568)
    o_ref[...] = h.astype(o_ref.dtype)


def fused_mlp(x, kp, *, out_dtype=jnp.bfloat16):
    """One pallas_call for the whole encoder/decoder FC stack. x: (B, 1568) bf16."""
    B = x.shape[0]
    args = (x,
            kp["enc_fc1_w"], kp["enc_fc1_b"],
            kp["enc_fc2_w"], kp["enc_fc2_b"],
            kp["dec_fc1_w"], kp["dec_fc1_b"],
            kp["dec_fc2_w"], kp["dec_fc2_b"])
    n_out = kp["dec_fc2_w"].shape[1]
    in_specs = [pl.BlockSpec(a.shape, lambda i: (0, 0)) for a in args]   # all 2-D, full blocks
    return pl.pallas_call(
        _fused_mlp_kernel,
        out_shape=jax.ShapeDtypeStruct((B, n_out), out_dtype),
        grid=(1,),
        in_specs=in_specs,
        out_specs=pl.BlockSpec((B, n_out), lambda i: (0, 0)),
        compiler_params=pltpu.CompilerParams(dimension_semantics=("arbitrary",)),
    )(*args)


# ---------------------------------------------------------------------------
# Conv / ConvTranspose lowered to (explicit, order-controlled) im2col + Pallas matmul
# ---------------------------------------------------------------------------
# TODO(synk): fold the patch gather into the Pallas kernel (in-kernel strided loads) to
# remove the HBM round-trip of the patch matrix; kept in XLA glue here for lowering safety.
def _im2col(x, kh, kw, stride):
    """x: (B, H, W, C) already spatially padded. Returns (B*OH*OW, kh*kw*C), tap-major."""
    B, H, W, C = x.shape
    OH = (H - kh) // stride + 1
    OW = (W - kw) // stride + 1
    taps = [x[:, i:i + stride * OH:stride, j:j + stride * OW:stride, :]
            for i in range(kh) for j in range(kw)]
    p = jnp.stack(taps, axis=3)                       # (B, OH, OW, kh*kw, C)
    return p.reshape(B * OH * OW, kh * kw * C), OH, OW


def conv2d_fused(x, w_mat, b2d, *, k, stride, padding, relu, out_dtype=jnp.bfloat16):
    """x: (B,H,W,Cin) bf16 NHWC; w_mat: (k*k*Cin, Cout) bf16, rows in (i, j, ci) order."""
    B = x.shape[0]
    xp = jnp.pad(x, ((0, 0), (padding, padding), (padding, padding), (0, 0)))
    cols, OH, OW = _im2col(xp, k, k, stride)
    out = matmul_bias_act(cols, w_mat, b2d, relu=relu, out_dtype=out_dtype)
    return out.reshape(B, OH, OW, -1)


def conv_transpose2d_subpixel(x, w_phase, b_phase, *, relu, out_dtype=jnp.bfloat16):
    """Exact ConvTranspose2d(k=4, stride=2, pad=1) via sub-pixel decomposition.

    Each output phase (rh, rw) in {0,1}^2 is a 2x2-tap conv; all four are evaluated as a
    single matmul over 3x3 patches of the 1-padded input against a (9*Cin, 4*Cout) weight.
    x: (B,H,W,Cin) bf16; w_phase: (9*Cin, 4*Cout) bf16; b_phase: (1, 4*Cout) f32.
    """
    B, H, W, Cin = x.shape
    Cout = w_phase.shape[1] // 4
    xp = jnp.pad(x, ((0, 0), (1, 1), (1, 1), (0, 0)))
    cols, OH, OW = _im2col(xp, 3, 3, 1)               # OH == H, OW == W
    out = matmul_bias_act(cols, w_phase, b_phase, relu=relu, out_dtype=out_dtype)
    out = out.reshape(B, H, W, 2, 2, Cout)            # (..., rh, rw, co)
    out = jnp.transpose(out, (0, 1, 3, 2, 4, 5)).reshape(B, 2 * H, 2 * W, Cout)
    return out


# ---------------------------------------------------------------------------
# Parameters: PyTorch-layout init, then one-time transform into kernel-ready layouts
# ---------------------------------------------------------------------------
def init_params(key, latent_dim, hidden_dim):
    ks = jax.random.split(key, 8)

    def w_init(k, shape, fan_in):
        return jax.random.normal(k, shape, jnp.float32) / jnp.sqrt(float(fan_in))

    flat = 32 * 7 * 7  # 1568
    return {
        # encoder (PyTorch layouts)
        "enc_conv1_w": w_init(ks[0], (16, 1, 4, 4), 1 * 4 * 4),
        "enc_conv1_b": jnp.zeros((16,), jnp.float32),
        "enc_conv2_w": w_init(ks[1], (32, 16, 4, 4), 16 * 4 * 4),
        "enc_conv2_b": jnp.zeros((32,), jnp.float32),
        "enc_fc1_w": w_init(ks[2], (hidden_dim, flat), flat),       # (out, in)
        "enc_fc1_b": jnp.zeros((hidden_dim,), jnp.float32),
        "enc_fc2_w": w_init(ks[3], (latent_dim, hidden_dim), hidden_dim),
        "enc_fc2_b": jnp.zeros((latent_dim,), jnp.float32),
        # decoder
        "dec_fc1_w": w_init(ks[4], (hidden_dim, latent_dim), latent_dim),
        "dec_fc1_b": jnp.zeros((hidden_dim,), jnp.float32),
        "dec_fc2_w": w_init(ks[5], (flat, hidden_dim), hidden_dim),
        "dec_fc2_b": jnp.zeros((flat,), jnp.float32),
        "dec_convt1_w": w_init(ks[6], (32, 16, 4, 4), 32 * 4 * 4),  # (Cin, Cout, kH, kW)
        "dec_convt1_b": jnp.zeros((16,), jnp.float32),
        "dec_convt2_w": w_init(ks[7], (16, 1, 4, 4), 16 * 4 * 4),
        "dec_convt2_b": jnp.zeros((1,), jnp.float32),
    }


def _conv_w_to_mat(w):
    """(Cout, Cin, kH, kW) PyTorch Conv2d -> (kH*kW*Cin, Cout), rows in (i, j, ci) order."""
    Cout, Cin, kH, kW = w.shape
    return jnp.transpose(w, (2, 3, 1, 0)).reshape(kH * kW * Cin, Cout)


def _convt_w_to_phase_mat(w):
    """(Cin, Cout, 4, 4) PyTorch ConvTranspose2d (stride=2, pad=1) -> (9*Cin, 4*Cout).

    Row index = (di*3 + dj)*Cin + ci over the 3x3 patch of the 1-padded input;
    column index = (rh*2 + rw)*Cout + co over output phases. Exact equivalence:
    kernel tap used is w[ci, co, rh + 3 - 2*di, rw + 3 - 2*dj] when in range, else 0.
    """
    Cin, Cout, kH, kW = w.shape
    assert (kH, kW) == (4, 4)
    zero = jnp.zeros((Cin, Cout), w.dtype)
    rows = []
    for di in range(3):
        for dj in range(3):
            cols = []
            for rh in range(2):
                for rw in range(2):
                    r = rh + 3 - 2 * di
                    c = rw + 3 - 2 * dj
                    cols.append(w[:, :, r, c] if (0 <= r < 4 and 0 <= c < 4) else zero)
            rows.append(jnp.stack(cols, axis=1))      # (Cin, 4, Cout)
    return jnp.stack(rows, axis=0).reshape(9 * Cin, 4 * Cout)


def prepare_params(p):
    """One-time transform to matmul-ready bf16 weights / (1, N) f32 biases."""
    bf16 = jnp.bfloat16

    def bias2d(b):
        return b.astype(jnp.float32).reshape(1, -1)

    hidden = p["enc_fc1_w"].shape[0]

    # enc_fc1: permute input rows from PyTorch (c, h, w) flatten to NHWC (h, w, c) flatten.
    w = p["enc_fc1_w"].reshape(hidden, 32, 7, 7)
    enc_fc1_w = jnp.transpose(w, (2, 3, 1, 0)).reshape(7 * 7 * 32, hidden)

    # dec_fc2: permute output columns (and bias) from (c, h, w) to (h, w, c).
    w = p["dec_fc2_w"].reshape(32, 7, 7, hidden)
    dec_fc2_w = jnp.transpose(w, (1, 2, 0, 3)).reshape(7 * 7 * 32, hidden).T
    dec_fc2_b = jnp.transpose(p["dec_fc2_b"].reshape(32, 7, 7), (1, 2, 0)).reshape(-1)

    return {
        "enc_conv1_w": _conv_w_to_mat(p["enc_conv1_w"]).astype(bf16),
        "enc_conv1_b": bias2d(p["enc_conv1_b"]),
        "enc_conv2_w": _conv_w_to_mat(p["enc_conv2_w"]).astype(bf16),
        "enc_conv2_b": bias2d(p["enc_conv2_b"]),
        "enc_fc1_w": enc_fc1_w.astype(bf16),
        "enc_fc1_b": bias2d(p["enc_fc1_b"]),
        "enc_fc2_w": p["enc_fc2_w"].T.astype(bf16),
        "enc_fc2_b": bias2d(p["enc_fc2_b"]),
        "dec_fc1_w": p["dec_fc1_w"].T.astype(bf16),
        "dec_fc1_b": bias2d(p["dec_fc1_b"]),
        "dec_fc2_w": dec_fc2_w.astype(bf16),
        "dec_fc2_b": bias2d(dec_fc2_b),
        "dec_convt1_w": _convt_w_to_phase_mat(p["dec_convt1_w"]).astype(bf16),
        "dec_convt1_b": bias2d(jnp.tile(p["dec_convt1_b"], 4)),
        "dec_convt2_w": _convt_w_to_phase_mat(p["dec_convt2_w"]).astype(bf16),
        "dec_convt2_b": bias2d(jnp.tile(p["dec_convt2_b"], 4)),
    }


# ---------------------------------------------------------------------------
# Forward pass (5 pallas_calls total: conv1, conv2, fused 4-layer MLP, convT1, convT2)
# ---------------------------------------------------------------------------
def autoencoder_forward(kp, x_nchw):
    B = x_nchw.shape[0]
    x = jnp.transpose(x_nchw, (0, 2, 3, 1)).astype(jnp.bfloat16)          # NCHW -> NHWC

    # encoder convs (im2col + fused matmul + bias + ReLU on the MXU)
    h = conv2d_fused(x, kp["enc_conv1_w"], kp["enc_conv1_b"],
                     k=4, stride=2, padding=1, relu=True)                 # (B,14,14,16)
    h = conv2d_fused(h, kp["enc_conv2_w"], kp["enc_conv2_b"],
                     k=4, stride=2, padding=1, relu=True)                 # (B,7,7,32)

    # fused FC stack; flatten is a plain reshape because the permutation is baked into
    # the FC weights (NHWC (h, w, c) flatten convention end-to-end).
    h = fused_mlp(h.reshape(B, 7 * 7 * 32), kp)                           # (B,1568) bf16
    h = h.reshape(B, 7, 7, 32)

    # decoder conv-transposes via exact sub-pixel decomposition
    h = conv_transpose2d_subpixel(h, kp["dec_convt1_w"], kp["dec_convt1_b"],
                                  relu=True)                              # (B,14,14,16)
    y = conv_transpose2d_subpixel(h, kp["dec_convt2_w"], kp["dec_convt2_b"],
                                  relu=False, out_dtype=jnp.float32)      # (B,28,28,1)
    return jnp.transpose(y, (0, 3, 1, 2))                                 # back to NCHW


if __name__ == "__main__":
    key = jax.random.PRNGKey(0)
    k_params, k_x = jax.random.split(key)

    latent_dim, hidden_dim = 8, 32
    params = prepare_params(init_params(k_params, latent_dim, hidden_dim))
    x = jax.random.normal(k_x, (2, 1, 28, 28), jnp.float32)               # NCHW, MNIST-sized

    fwd = jax.jit(autoencoder_forward)
    y = jax.block_until_ready(fwd(params, x))

    assert y.shape == (2, 1, 28, 28), y.shape
    assert bool(jnp.all(jnp.isfinite(y)))
    print("KERNEL_OK")
</pallas_src>

<mosaic_0001>
module attributes {stable_mosaic.version = 11 : i64} {
  func.func @_matmul_bias_act_kernel(%arg0: i32, %arg1: memref<392x16xbf16, #tpu.memory_space<vmem>>, %arg2: memref<16x16xbf16, #tpu.memory_space<vmem>>, %arg3: memref<1x16xf32, #tpu.memory_space<vmem>>, %arg4: memref<392x16xbf16, #tpu.memory_space<vmem>>) attributes {dimension_semantics = [#tpu.dimension_semantics<arbitrary>], iteration_bounds = array<i64: 1>, scalar_prefetch = 0 : i64, scratch_operands = 0 : i64, tpu.core_type = #tpu.core_type<tc>, window_params = [{pipeline_mode = #tpu.pipeline_mode<synchronous>, transform_indices = @transform_0, window_bounds = array<i64: 392, 16>}, {pipeline_mode = #tpu.pipeline_mode<synchronous>, transform_indices = @transform_1, window_bounds = array<i64: 16, 16>}, {pipeline_mode = #tpu.pipeline_mode<synchronous>, transform_indices = @transform_2, window_bounds = array<i64: 1, 16>}, {pipeline_mode = #tpu.pipeline_mode<synchronous>, transform_indices = @transform_3, window_bounds = array<i64: 392, 16>}]} {
    %c0 = arith.constant 0 : index
    %c0_0 = arith.constant 0 : index
    %0 = vector.load %arg1[%c0, %c0_0] : memref<392x16xbf16, #tpu.memory_space<vmem>>, vector<392x16xbf16>
    %c0_1 = arith.constant 0 : index
    %c0_2 = arith.constant 0 : index
    %1 = vector.load %arg2[%c0_1, %c0_2] : memref<16x16xbf16, #tpu.memory_space<vmem>>, vector<16x16xbf16>
    %cst = arith.constant dense<0.000000e+00> : vector<392x16xf32>
    %2 = tpu.matmul %0, %1, %cst {dimension_numbers = #tpu.dot_dimension_numbers<[1], [0], [0], [1], [0, 0, 1, 1], [], []>} : vector<392x16xbf16>, vector<16x16xbf16>, vector<392x16xf32> -> vector<392x16xf32>
    %c0_3 = arith.constant 0 : index
    %c0_4 = arith.constant 0 : index
    %3 = vector.load %arg3[%c0_3, %c0_4] : memref<1x16xf32, #tpu.memory_space<vmem>>, vector<1x16xf32>
    %4 = vector.broadcast %3 : vector<1x16xf32> to vector<392x16xf32>
    %5 = arith.addf %2, %4 : vector<392x16xf32>
    %cst_5 = arith.constant 0.000000e+00 : f32
    %6 = vector.broadcast %cst_5 : f32 to vector<392x16xf32>
    %7 = arith.maximumf %5, %6 : vector<392x16xf32>
    %8 = arith.truncf %7 : vector<392x16xf32> to vector<392x16xbf16>
    %c0_6 = arith.constant 0 : index
    %c0_7 = arith.constant 0 : index
    %9 = vector.load %arg4[%c0_6, %c0_7] : memref<392x16xbf16, #tpu.memory_space<vmem>>, vector<392x16xbf16>
    tpu.vector_store %arg4[%c0_6, %c0_7], %8 {strides = array<i32>} : memref<392x16xbf16, #tpu.memory_space<vmem>>, vector<392x16xbf16>,
    return
  }
  func.func @transform_0(%arg0: i32) -> (i32, i32) {
    %c0_i32 = arith.constant 0 : i32
    %c0_i32_0 = arith.constant 0 : i32
    %c0_i32_1 = arith.constant 0 : i32
    return %c0_i32, %c0_i32_0 : i32, i32
  }
  func.func @transform_1(%arg0: i32) -> (i32, i32) {
    %c0_i32 = arith.constant 0 : i32
    %c0_i32_0 = arith.constant 0 : i32
    %c0_i32_1 = arith.constant 0 : i32
    return %c0_i32, %c0_i32_0 : i32, i32
  }
  func.func @transform_2(%arg0: i32) -> (i32, i32) {
    %c0_i32 = arith.constant 0 : i32
    %c0_i32_0 = arith.constant 0 : i32
    %c0_i32_1 = arith.constant 0 : i32
    return %c0_i32, %c0_i32_0 : i32, i32
  }
  func.func @transform_3(%arg0: i32) -> (i32, i32) {
    %c0_i32 = arith.constant 0 : i32
    %c0_i32_0 = arith.constant 0 : i32
    %c0_i32_1 = arith.constant 0 : i32
    return %c0_i32, %c0_i32_0 : i32, i32
  }
}

module attributes {stable_mosaic.version = 11 : i64} {
  func.func @_matmul_bias_act_kernel(%arg0: i32, %arg1: memref<98x256xbf16, #tpu.memory_space<vmem>>, %arg2: memref<256x32xbf16, #tpu.memory_space<vmem>>, %arg3: memref<1x32xf32, #tpu.memory_space<vmem>>, %arg4: memref<98x32xbf16, #tpu.memory_space<vmem>>) attributes {dimension_semantics = [#tpu.dimension_semantics<arbitrary>], iteration_bounds = array<i64: 1>, scalar_prefetch = 0 : i64, scratch_operands = 0 : i64, tpu.core_type = #tpu.core_type<tc>, window_params = [{pipeline_mode = #tpu.pipeline_mode<synchronous>, transform_indices = @transform_0, window_bounds = array<i64: 98, 256>}, {pipeline_mode = #tpu.pipeline_mode<synchronous>, transform_indices = @transform_1, window_bounds = array<i64: 256, 32>}, {pipeline_mode = #tpu.pipeline_mode<synchronous>, transform_indices = @transform_2, window_bounds = array<i64: 1, 32>}, {pipeline_mode = #tpu.pipeline_mode<synchronous>, transform_indices = @transform_3, window_bounds = array<i64: 98, 32>}]} {
    %c0 = arith.constant 0 : index
    %c0_0 = arith.constant 0 : index
    %0 = vector.load %arg1[%c0, %c0_0] : memref<98x256xbf16, #tpu.memory_space<vmem>>, vector<98x256xbf16>
    %c0_1 = arith.constant 0 : index
    %c0_2 = arith.constant 0 : index
    %1 = vector.load %arg2[%c0_1, %c0_2] : memref<256x32xbf16, #tpu.memory_space<vmem>>, vector<256x32xbf16>
    %cst = arith.constant dense<0.000000e+00> : vector<98x32xf32>
    %2 = tpu.matmul %0, %1, %cst {dimension_numbers = #tpu.dot_dimension_numbers<[1], [0], [0], [1], [0, 0, 1, 1], [], []>} : vector<98x256xbf16>, vector<256x32xbf16>, vector<98x32xf32> -> vector<98x32xf32>
    %c0_3 = arith.constant 0 : index
    %c0_4 = arith.constant 0 : index
    %3 = vector.load %arg3[%c0_3, %c0_4] : memref<1x32xf32, #tpu.memory_space<vmem>>, vector<1x32xf32>
    %4 = vector.broadcast %3 : vector<1x32xf32> to vector<98x32xf32>
    %5 = arith.addf %2, %4 : vector<98x32xf32>
    %cst_5 = arith.constant 0.000000e+00 : f32
    %6 = vector.broadcast %cst_5 : f32 to vector<98x32xf32>
    %7 = arith.maximumf %5, %6 : vector<98x32xf32>
    %8 = arith.truncf %7 : vector<98x32xf32> to vector<98x32xbf16>
    %c0_6 = arith.constant 0 : index
    %c0_7 = arith.constant 0 : index
    %9 = vector.load %arg4[%c0_6, %c0_7] : memref<98x32xbf16, #tpu.memory_space<vmem>>, vector<98x32xbf16>
    tpu.vector_store %arg4[%c0_6, %c0_7], %8 {strides = array<i32>} : memref<98x32xbf16, #tpu.memory_space<vmem>>, vector<98x32xbf16>,
    return
  }
  func.func @transform_0(%arg0: i32) -> (i32, i32) {
    %c0_i32 = arith.constant 0 : i32
    %c0_i32_0 = arith.constant 0 : i32
    %c0_i32_1 = arith.constant 0 : i32
    return %c0_i32, %c0_i32_0 : i32, i32
  }
  func.func @transform_1(%arg0: i32) -> (i32, i32) {
    %c0_i32 = arith.constant 0 : i32
    %c0_i32_0 = arith.constant 0 : i32
    %c0_i32_1 = arith.constant 0 : i32
    return %c0_i32, %c0_i32_0 : i32, i32
  }
  func.func @transform_2(%arg0: i32) -> (i32, i32) {
    %c0_i32 = arith.constant 0 : i32
    %c0_i32_0 = arith.constant 0 : i32
    %c0_i32_1 = arith.constant 0 : i32
    return %c0_i32, %c0_i32_0 : i32, i32
  }
  func.func @transform_3(%arg0: i32) -> (i32, i32) {
    %c0_i32 = arith.constant 0 : i32
    %c0_i32_0 = arith.constant 0 : i32
    %c0_i32_1 = arith.constant 0 : i32
    return %c0_i32, %c0_i32_0 : i32, i32
  }
}

module attributes {stable_mosaic.version = 11 : i64} {
  func.func @_fused_mlp_kernel(%arg0: i32, %arg1: memref<2x1568xbf16, #tpu.memory_space<vmem>>, %arg2: memref<1568x32xbf16, #tpu.memory_space<vmem>>, %arg3: memref<1x32xf32, #tpu.memory_space<vmem>>, %arg4: memref<32x8xbf16, #tpu.memory_space<vmem>>, %arg5: memref<1x8xf32, #tpu.memory_space<vmem>>, %arg6: memref<8x32xbf16, #tpu.memory_space<vmem>>, %arg7: memref<1x32xf32, #tpu.memory_space<vmem>>, %arg8: memref<32x1568xbf16, #tpu.memory_space<vmem>>, %arg9: memref<1x1568xf32, #tpu.memory_space<vmem>>, %arg10: memref<2x1568xbf16, #tpu.memory_space<vmem>>) attributes {dimension_semantics = [#tpu.dimension_semantics<arbitrary>], iteration_bounds = array<i64: 1>, scalar_prefetch = 0 : i64, scratch_operands = 0 : i64, tpu.core_type = #tpu.core_type<tc>, window_params = [{pipeline_mode = #tpu.pipeline_mode<synchronous>, transform_indices = @transform_0, window_bounds = array<i64: 2, 1568>}, {pipeline_mode = #tpu.pipeline_mode<synchronous>, transform_indices = @transform_1, window_bounds = array<i64: 1568, 32>}, {pipeline_mode = #tpu.pipeline_mode<synchronous>, transform_indices = @transform_2, window_bounds = array<i64: 1, 32>}, {pipeline_mode = #tpu.pipeline_mode<synchronous>, transform_indices = @transform_3, window_bounds = array<i64: 32, 8>}, {pipeline_mode = #tpu.pipeline_mode<synchronous>, transform_indices = @transform_4, window_bounds = array<i64: 1, 8>}, {pipeline_mode = #tpu.pipeline_mode<synchronous>, transform_indices = @transform_5, window_bounds = array<i64: 8, 32>}, {pipeline_mode = #tpu.pipeline_mode<synchronous>, transform_indices = @transform_6, window_bounds = array<i64: 1, 32>}, {pipeline_mode = #tpu.pipeline_mode<synchronous>, transform_indices = @transform_7, window_bounds = array<i64: 32, 1568>}, {pipeline_mode = #tpu.pipeline_mode<synchronous>, transform_indices = @transform_8, window_bounds = array<i64: 1, 1568>}, {pipeline_mode = #tpu.pipeline_mode<synchronous>, transform_indices = @transform_9, window_bounds = array<i64: 2, 1568>}]} {
    %c0 = arith.constant 0 : index
    %c0_0 = arith.constant 0 : index
    %0 = vector.load %arg1[%c0, %c0_0] : memref<2x1568xbf16, #tpu.memory_space<vmem>>, vector<2x1568xbf16>
    %c0_1 = arith.constant 0 : index
    %c0_2 = arith.constant 0 : index
    %1 = vector.load %arg2[%c0_1, %c0_2] : memref<1568x32xbf16, #tpu.memory_space<vmem>>, vector<1568x32xbf16>
    %cst = arith.constant dense<0.000000e+00> : vector<2x32xf32>
    %2 = tpu.matmul %0, %1, %cst {dimension_numbers = #tpu.dot_dimension_numbers<[1], [0], [0], [1], [0, 0, 1, 1], [], []>} : vector<2x1568xbf16>, vector<1568x32xbf16>, vector<2x32xf32> -> vector<2x32xf32>
    %c0_3 = arith.constant 0 : index
    %c0_4 = arith.constant 0 : index
    %3 = vector.load %arg3[%c0_3, %c0_4] : memref<1x32xf32, #tpu.memory_space<vmem>>, vector<1x32xf32>
    %4 = vector.broadcast %3 : vector<1x32xf32> to vector<2x32xf32>
    %5 = arith.addf %2, %4 : vector<2x32xf32>
    %cst_5 = arith.constant 0.000000e+00 : f32
    %6 = vector.broadcast %cst_5 : f32 to vector<2x32xf32>
    %7 = arith.maximumf %5, %6 : vector<2x32xf32>
    %8 = arith.truncf %7 : vector<2x32xf32> to vector<2x32xbf16>
    %c0_6 = arith.constant 0 : index
    %c0_7 = arith.constant 0 : index
    %9 = vector.load %arg4[%c0_6, %c0_7] : memref<32x8xbf16, #tpu.memory_space<vmem>>, vector<32x8xbf16>
    %cst_8 = arith.constant dense<0.000000e+00> : vector<2x8xf32>
    %10 = tpu.matmul %8, %9, %cst_8 {dimension_numbers = #tpu.dot_dimension_numbers<[1], [0], [0], [1], [0, 0, 1, 1], [], []>} : vector<2x32xbf16>, vector<32x8xbf16>, vector<2x8xf32> -> vector<2x8xf32>
    %c0_9 = arith.constant 0 : index
    %c0_10 = arith.constant 0 : index
    %11 = vector.load %arg5[%c0_9, %c0_10] : memref<1x8xf32, #tpu.memory_space<vmem>>, vector<1x8xf32>
    %12 = vector.broadcast %11 : vector<1x8xf32> to vector<2x8xf32>
    %13 = arith.addf %10, %12 : vector<2x8xf32>
    %14 = arith.truncf %13 : vector<2x8xf32> to vector<2x8xbf16>
    %c0_11 = arith.constant 0 : index
    %c0_12 = arith.constant 0 : index
    %15 = vector.load %arg6[%c0_11, %c0_12] : memref<8x32xbf16, #tpu.memory_space<vmem>>, vector<8x32xbf16>
    %cst_13 = arith.constant dense<0.000000e+00> : vector<2x32xf32>
    %16 = tpu.matmul %14, %15, %cst_13 {dimension_numbers = #tpu.dot_dimension_numbers<[1], [0], [0], [1], [0, 0, 1, 1], [], []>} : vector<2x8xbf16>, vector<8x32xbf16>, vector<2x32xf32> -> vector<2x32xf32>
    %c0_14 = arith.constant 0 : index
    %c0_15 = arith.constant 0 : index
    %17 = vector.load %arg7[%c0_14, %c0_15] : memref<1x32xf32, #tpu.memory_space<vmem>>, vector<1x32xf32>
    %18 = vector.broadcast %17 : vector<1x32xf32> to vector<2x32xf32>
    %19 = arith.addf %16, %18 : vector<2x32xf32>
    %cst_16 = arith.constant 0.000000e+00 : f32
    %20 = vector.broadcast %cst_16 : f32 to vector<2x32xf32>
    %21 = arith.maximumf %19, %20 : vector<2x32xf32>
    %22 = arith.truncf %21 : vector<2x32xf32> to vector<2x32xbf16>
    %c0_17 = arith.constant 0 : index
    %c0_18 = arith.constant 0 : index
    %23 = vector.load %arg8[%c0_17, %c0_18] : memref<32x1568xbf16, #tpu.memory_space<vmem>>, vector<32x1568xbf16>
    %cst_19 = arith.constant dense<0.000000e+00> : vector<2x1568xf32>
    %24 = tpu.matmul %22, %23, %cst_19 {dimension_numbers = #tpu.dot_dimension_numbers<[1], [0], [0], [1], [0, 0, 1, 1], [], []>} : vector<2x32xbf16>, vector<32x1568xbf16>, vector<2x1568xf32> -> vector<2x1568xf32>
    %c0_20 = arith.constant 0 : index
    %c0_21 = arith.constant 0 : index
    %25 = vector.load %arg9[%c0_20, %c0_21] : memref<1x1568xf32, #tpu.memory_space<vmem>>, vector<1x1568xf32>
    %26 = vector.broadcast %25 : vector<1x1568xf32> to vector<2x1568xf32>
    %27 = arith.addf %24, %26 : vector<2x1568xf32>
    %cst_22 = arith.constant 0.000000e+00 : f32
    %28 = vector.broadcast %cst_22 : f32 to vector<2x1568xf32>
    %29 = arith.maximumf %27, %28 : vector<2x1568xf32>
    %30 = arith.truncf %29 : vector<2x1568xf32> to vector<2x1568xbf16>
    %c0_23 = arith.constant 0 : index
    %c0_24 = arith.constant 0 : index
    %31 = vector.load %arg10[%c0_23, %c0_24] : memref<2x1568xbf16, #tpu.memory_space<vmem>>, vector<2x1568xbf16>
    tpu.vector_store %arg10[%c0_23, %c0_24], %30 {strides = array<i32>} : memref<2x1568xbf16, #tpu.memory_space<vmem>>, vector<2x1568xbf16>,
    return
  }
  func.func @transform_0(%arg0: i32) -> (i32, i32) {
    %c0_i32 = arith.constant 0 : i32
    %c0_i32_0 = arith.constant 0 : i32
    %c0_i32_1 = arith.constant 0 : i32
    return %c0_i32, %c0_i32_0 : i32, i32
  }
  func.func @transform_1(%arg0: i32) -> (i32, i32) {
    %c0_i32 = arith.constant 0 : i32
    %c0_i32_0 = arith.constant 0 : i32
    %c0_i32_1 = arith.constant 0 : i32
    return %c0_i32, %c0_i32_0 : i32, i32
  }
  func.func @transform_2(%arg0: i32) -> (i32, i32) {
    %c0_i32 = arith.constant 0 : i32
    %c0_i32_0 = arith.constant 0 : i32
    %c0_i32_1 = arith.constant 0 : i32
    return %c0_i32, %c0_i32_0 : i32, i32
  }
  func.func @transform_3(%arg0: i32) -> (i32, i32) {
    %c0_i32 = arith.constant 0 : i32
    %c0_i32_0 = arith.constant 0 : i32
    %c0_i32_1 = arith.constant 0 : i32
    return %c0_i32, %c0_i32_0 : i32, i32
  }
  func.func @transform_4(%arg0: i32) -> (i32, i32) {
    %c0_i32 = arith.constant 0 : i32
    %c0_i32_0 = arith.constant 0 : i32
    %c0_i32_1 = arith.constant 0 : i32
    return %c0_i32, %c0_i32_0 : i32, i32
  }
  func.func @transform_5(%arg0: i32) -> (i32, i32) {
    %c0_i32 = arith.constant 0 : i32
    %c0_i32_0 = arith.constant 0 : i32
    %c0_i32_1 = arith.constant 0 : i32
    return %c0_i32, %c0_i32_0 : i32, i32
  }
  func.func @transform_6(%arg0: i32) -> (i32, i32) {
    %c0_i32 = arith.constant 0 : i32
    %c0_i32_0 = arith.constant 0 : i32
    %c0_i32_1 = arith.constant 0 : i32
    return %c0_i32, %c0_i32_0 : i32, i32
  }
  func.func @transform_7(%arg0: i32) -> (i32, i32) {
    %c0_i32 = arith.constant 0 : i32
    %c0_i32_0 = arith.constant 0 : i32
    %c0_i32_1 = arith.constant 0 : i32
    return %c0_i32, %c0_i32_0 : i32, i32
  }
  func.func @transform_8(%arg0: i32) -> (i32, i32) {
    %c0_i32 = arith.constant 0 : i32
    %c0_i32_0 = arith.constant 0 : i32
    %c0_i32_1 = arith.constant 0 : i32
    return %c0_i32, %c0_i32_0 : i32, i32
  }
  func.func @transform_9(%arg0: i32) -> (i32, i32) {
    %c0_i32 = arith.constant 0 : i32
    %c0_i32_0 = arith.constant 0 : i32
    %c0_i32_1 = arith.constant 0 : i32
    return %c0_i32, %c0_i32_0 : i32, i32
  }
}

module attributes {stable_mosaic.version = 11 : i64} {
  func.func @_matmul_bias_act_kernel(%arg0: i32, %arg1: memref<98x288xbf16, #tpu.memory_space<vmem>>, %arg2: memref<288x64xbf16, #tpu.memory_space<vmem>>, %arg3: memref<1x64xf32, #tpu.memory_space<vmem>>, %arg4: memref<98x64xbf16, #tpu.memory_space<vmem>>) attributes {dimension_semantics = [#tpu.dimension_semantics<arbitrary>], iteration_bounds = array<i64: 1>, scalar_prefetch = 0 : i64, scratch_operands = 0 : i64, tpu.core_type = #tpu.core_type<tc>, window_params = [{pipeline_mode = #tpu.pipeline_mode<synchronous>, transform_indices = @transform_0, window_bounds = array<i64: 98, 288>}, {pipeline_mode = #tpu.pipeline_mode<synchronous>, transform_indices = @transform_1, window_bounds = array<i64: 288, 64>}, {pipeline_mode = #tpu.pipeline_mode<synchronous>, transform_indices = @transform_2, window_bounds = array<i64: 1, 64>}, {pipeline_mode = #tpu.pipeline_mode<synchronous>, transform_indices = @transform_3, window_bounds = array<i64: 98, 64>}]} {
    %c0 = arith.constant 0 : index
    %c0_0 = arith.constant 0 : index
    %0 = vector.load %arg1[%c0, %c0_0] : memref<98x288xbf16, #tpu.memory_space<vmem>>, vector<98x288xbf16>
    %c0_1 = arith.constant 0 : index
    %c0_2 = arith.constant 0 : index
    %1 = vector.load %arg2[%c0_1, %c0_2] : memref<288x64xbf16, #tpu.memory_space<vmem>>, vector<288x64xbf16>
    %cst = arith.constant dense<0.000000e+00> : vector<98x64xf32>
    %2 = tpu.matmul %0, %1, %cst {dimension_numbers = #tpu.dot_dimension_numbers<[1], [0], [0], [1], [0, 0, 1, 1], [], []>} : vector<98x288xbf16>, vector<288x64xbf16>, vector<98x64xf32> -> vector<98x64xf32>
    %c0_3 = arith.constant 0 : index
    %c0_4 = arith.constant 0 : index
    %3 = vector.load %arg3[%c0_3, %c0_4] : memref<1x64xf32, #tpu.memory_space<vmem>>, vector<1x64xf32>
    %4 = vector.broadcast %3 : vector<1x64xf32> to vector<98x64xf32>
    %5 = arith.addf %2, %4 : vector<98x64xf32>
    %cst_5 = arith.constant 0.000000e+00 : f32
    %6 = vector.broadcast %cst_5 : f32 to vector<98x64xf32>
    %7 = arith.maximumf %5, %6 : vector<98x64xf32>
    %8 = arith.truncf %7 : vector<98x64xf32> to vector<98x64xbf16>
    %c0_6 = arith.constant 0 : index
    %c0_7 = arith.constant 0 : index
    %9 = vector.load %arg4[%c0_6, %c0_7] : memref<98x64xbf16, #tpu.memory_space<vmem>>, vector<98x64xbf16>
    tpu.vector_store %arg4[%c0_6, %c0_7], %8 {strides = array<i32>} : memref<98x64xbf16, #tpu.memory_space<vmem>>, vector<98x64xbf16>,
    return
  }
  func.func @transform_0(%arg0: i32) -> (i32, i32) {
    %c0_i32 = arith.constant 0 : i32
    %c0_i32_0 = arith.constant 0 : i32
    %c0_i32_1 = arith.constant 0 : i32
    return %c0_i32, %c0_i32_0 : i32, i32
  }
  func.func @transform_1(%arg0: i32) -> (i32, i32) {
    %c0_i32 = arith.constant 0 : i32
    %c0_i32_0 = arith.constant 0 : i32
    %c0_i32_1 = arith.constant 0 : i32
    return %c0_i32, %c0_i32_0 : i32, i32
  }
  func.func @transform_2(%arg0: i32) -> (i32, i32) {
    %c0_i32 = arith.constant 0 : i32
    %c0_i32_0 = arith.constant 0 : i32
    %c0_i32_1 = arith.constant 0 : i32
    return %c0_i32, %c0_i32_0 : i32, i32
  }
  func.func @transform_3(%arg0: i32) -> (i32, i32) {
    %c0_i32 = arith.constant 0 : i32
    %c0_i32_0 = arith.constant 0 : i32
    %c0_i32_1 = arith.constant 0 : i32
    return %c0_i32, %c0_i32_0 : i32, i32
  }
}

module attributes {stable_mosaic.version = 11 : i64} {
  func.func @_matmul_bias_act_kernel(%arg0: i32, %arg1: memref<392x144xbf16, #tpu.memory_space<vmem>>, %arg2: memref<144x4xbf16, #tpu.memory_space<vmem>>, %arg3: memref<1x4xf32, #tpu.memory_space<vmem>>, %arg4: memref<392x4xf32, #tpu.memory_space<vmem>>) attributes {dimension_semantics = [#tpu.dimension_semantics<arbitrary>], iteration_bounds = array<i64: 1>, scalar_prefetch = 0 : i64, scratch_operands = 0 : i64, tpu.core_type = #tpu.core_type<tc>, window_params = [{pipeline_mode = #tpu.pipeline_mode<synchronous>, transform_indices = @transform_0, window_bounds = array<i64: 392, 144>}, {pipeline_mode = #tpu.pipeline_mode<synchronous>, transform_indices = @transform_1, window_bounds = array<i64: 144, 4>}, {pipeline_mode = #tpu.pipeline_mode<synchronous>, transform_indices = @transform_2, window_bounds = array<i64: 1, 4>}, {pipeline_mode = #tpu.pipeline_mode<synchronous>, transform_indices = @transform_3, window_bounds = array<i64: 392, 4>}]} {
    %c0 = arith.constant 0 : index
    %c0_0 = arith.constant 0 : index
    %0 = vector.load %arg1[%c0, %c0_0] : memref<392x144xbf16, #tpu.memory_space<vmem>>, vector<392x144xbf16>
    %c0_1 = arith.constant 0 : index
    %c0_2 = arith.constant 0 : index
    %1 = vector.load %arg2[%c0_1, %c0_2] : memref<144x4xbf16, #tpu.memory_space<vmem>>, vector<144x4xbf16>
    %cst = arith.constant dense<0.000000e+00> : vector<392x4xf32>
    %2 = tpu.matmul %0, %1, %cst {dimension_numbers = #tpu.dot_dimension_numbers<[1], [0], [0], [1], [0, 0, 1, 1], [], []>} : vector<392x144xbf16>, vector<144x4xbf16>, vector<392x4xf32> -> vector<392x4xf32>
    %c0_3 = arith.constant 0 : index
    %c0_4 = arith.constant 0 : index
    %3 = vector.load %arg3[%c0_3, %c0_4] : memref<1x4xf32, #tpu.memory_space<vmem>>, vector<1x4xf32>
    %4 = vector.broadcast %3 : vector<1x4xf32> to vector<392x4xf32>
    %5 = arith.addf %2, %4 : vector<392x4xf32>
    %c0_5 = arith.constant 0 : index
    %c0_6 = arith.constant 0 : index
    %6 = vector.load %arg4[%c0_5, %c0_6] : memref<392x4xf32, #tpu.memory_space<vmem>>, vector<392x4xf32>
    tpu.vector_store %arg4[%c0_5, %c0_6], %5 {strides = array<i32>} : memref<392x4xf32, #tpu.memory_space<vmem>>, vector<392x4xf32>,
    return
  }
  func.func @transform_0(%arg0: i32) -> (i32, i32) {
    %c0_i32 = arith.constant 0 : i32
    %c0_i32_0 = arith.constant 0 : i32
    %c0_i32_1 = arith.constant 0 : i32
    return %c0_i32, %c0_i32_0 : i32, i32
  }
  func.func @transform_1(%arg0: i32) -> (i32, i32) {
    %c0_i32 = arith.constant 0 : i32
    %c0_i32_0 = arith.constant 0 : i32
    %c0_i32_1 = arith.constant 0 : i32
    return %c0_i32, %c0_i32_0 : i32, i32
  }
  func.func @transform_2(%arg0: i32) -> (i32, i32) {
    %c0_i32 = arith.constant 0 : i32
    %c0_i32_0 = arith.constant 0 : i32
    %c0_i32_1 = arith.constant 0 : i32
    return %c0_i32, %c0_i32_0 : i32, i32
  }
  func.func @transform_3(%arg0: i32) -> (i32, i32) {
    %c0_i32 = arith.constant 0 : i32
    %c0_i32_0 = arith.constant 0 : i32
    %c0_i32_1 = arith.constant 0 : i32
    return %c0_i32, %c0_i32_0 : i32, i32
  }
}

</mosaic_0001>

<llo_original>
// kernel: autoencoder_forward.5
$region0: #{autoencoder_forward.5}
  #allocation0 [shape = 'u32[]', space=smem, size = 0x4, offset = 0x4, fixed_abs, tag = 'smem constant byte address 0x4 - core index']
  #allocation1 [shape = 'u32[72,128]{1,0:T(1,128)}', space=vmem, size = 0x9000, scoped, tag = 'internal scratch']
  %s0 = inlined_call_operand.vmem [shape: bf16[392,16], index: 0, kind: input, shape index: {}]
  %s1 = inlined_call_operand.hbm [shape: bf16[16,16], index: 1, kind: input, shape index: {}]
  %s2 = inlined_call_operand.hbm [shape: f32[1,16], index: 2, kind: input, shape index: {}]
  %s3 = inlined_call_operand.vmem [shape: bf16[392,16], index: 3, kind: output, shape index: {}]
  %s4 = sld [smem:[#allocation0]]
  $region30: #{autoencoder_forward.5} parent=0
    _
  %s6 = ssub.s32 1, %s4
  %s7 = scalar_select 0, %s6, %s4
  $region1: #{autoencoder_forward.5} parent=0
    #allocation2 [shape = 'u8[4096]{0}', space=vmem, size = 0x1000, scoped, tag = 'input window, operand 1, single buffered']
    #allocation3 [shape = 's32[1]{0}', space=sflag, size = 0x4, scoped, tag = 'scoped memory for autoencoder_forward.5']
    #allocation4 [shape = 'u8[512]{0}', space=vmem, size = 0x400, scoped, tag = 'input window, operand 2, single buffered']
    #allocation5 [shape = 's32[1]{0}', space=sflag, size = 0x4, scoped, tag = 'scoped memory for autoencoder_forward.5']
    %8 = vsyncpa [#allocation3], 0
    %9 = vsyncpa [#allocation5], 0
    // Predicated region
    $region2: #{autoencoder_forward.5} parent=1 // pred_check
      _
    $region3: #{autoencoder_forward.5} parent=1 // pred_check_branch
      %11 = sbr.rel (0) target = $region5
    $region4: #{autoencoder_forward.5} parent=1 // pred_region
      _
    $region5: #{autoencoder_forward.5} parent=1 // pred_fallthru
      _
    // Predicated region
    $region6: #{autoencoder_forward.5} parent=1 // pred_check
      _
    $region7: #{autoencoder_forward.5} parent=1 // pred_check_branch
      %13 = sbr.rel (0) target = $region9
    $region8: #{autoencoder_forward.5} parent=1 // pred_region
      %15 = vsyncadd [#allocation3], 0
      %s16 = sshll.u32 %s1, 4
      %s17 = int_to_ptr.hbm [resolvable:$true] %s16
      %s18 = sshll.u32 [#allocation2], 4
      %s19 = int_to_ptr.vmem [resolvable:$true] %s18
      %24 = dma.hbm_to_vmem [thread:$0]  %s17, 128, %s19, [#allocation3], 64, 64, 4
    $region9: #{autoencoder_forward.5} parent=1 // pred_fallthru
      _
    // Predicated region
    $region10: #{autoencoder_forward.5} parent=1 // pred_check
      _
    $region11: #{autoencoder_forward.5} parent=1 // pred_check_branch
      %26 = sbr.rel (0) target = $region13
    $region12: #{autoencoder_forward.5} parent=1 // pred_region
      %28 = vsyncadd [#allocation5], 0
      %s30 = sshll.u32 %s2, 4
      %s31 = int_to_ptr.hbm [resolvable:$true] %s30
      %s32 = sshll.u32 [#allocation4], 4
      %s33 = int_to_ptr.vmem [resolvable:$true] %s32
      %35 = dma.hbm_to_vmem [thread:$0]  %s31, 16, %s33, [#allocation5]
    $region13: #{autoencoder_forward.5} parent=1 // pred_fallthru
      _
    // Predicated region
    $region14: #{autoencoder_forward.5} parent=1 // pred_check
      _
    $region15: #{autoencoder_forward.5} parent=1 // pred_check_branch
      %37 = sbr.rel (0) target = $region17
    $region16: #{autoencoder_forward.5} parent=1 // pred_region
      %39 = dma.done [#allocation3], 128
    $region17: #{autoencoder_forward.5} parent=1 // pred_fallthru
      _
    // Predicated region
    $region18: #{autoencoder_forward.5} parent=1 // pred_check
      _
    $region19: #{autoencoder_forward.5} parent=1 // pred_check_branch
      %41 = sbr.rel (0) target = $region21
    $region20: #{autoencoder_forward.5} parent=1 // pred_region
      %43 = dma.done [#allocation5], 16
    $region21: #{autoencoder_forward.5} parent=1 // pred_fallthru
      _
    %v45 = vld [vmem:[%s0] sm:$0xf]
    %v46 = vld [vmem:[%s0 + $0x4] sm:$0xf]
    %v47 = vld [vmem:[%s0 + $0x8] sm:$0xf]
    %v48 = vld [vmem:[%s0 + $0xc] sm:$0xf]
    %v49 = vld [vmem:[%s0 + $0x10] sm:$0xf]
    %v50 = vld [vmem:[%s0 + $0x14] sm:$0xf]
    %v51 = vld [vmem:[%s0 + $0x18] sm:$0xf]
    %v52 = vld [vmem:[%s0 + $0x1c] sm:$0xf]
    %v53 = vld [vmem:[%s0 + $0x20] sm:$0xf]
    %v54 = vld [vmem:[%s0 + $0x24] sm:$0xf]
    %v55 = vld [vmem:[%s0 + $0x28] sm:$0xf]
    %v56 = vld [vmem:[%s0 + $0x2c] sm:$0xf]
    %v57 = vld [vmem:[%s0 + $0x30] sm:$0xf]
    %v58 = vld [vmem:[%s0 + $0x34] sm:$0xf]
    %v59 = vld [vmem:[%s0 + $0x38] sm:$0xf]
    %v60 = vld [vmem:[%s0 + $0x3c] sm:$0xf]
    %v61 = vld [vmem:[%s0 + $0x40] sm:$0xf]
    %v62 = vld [vmem:[%s0 + $0x44] sm:$0xf]
    %v63 = vld [vmem:[%s0 + $0x48] sm:$0xf]
    %v64 = vld [vmem:[%s0 + $0x4c] sm:$0xf]
    %v65 = vld [vmem:[%s0 + $0x50] sm:$0xf]
    %v66 = vld [vmem:[%s0 + $0x54] sm:$0xf]
    %v67 = vld [vmem:[%s0 + $0x58] sm:$0xf]
    %v68 = vld [vmem:[%s0 + $0x5c] sm:$0xf]
    %v69 = vld [vmem:[%s0 + $0x60] sm:$0xf]
    %v70 = vld [vmem:[%s0 + $0x64] sm:$0xf]
    %v71 = vld [vmem:[%s0 + $0x68] sm:$0xf]
    %v72 = vld [vmem:[%s0 + $0x6c] sm:$0xf]
    %v73 = vld [vmem:[%s0 + $0x70] sm:$0xf]
    %v74 = vld [vmem:[%s0 + $0x74] sm:$0xf]
    %v75 = vld [vmem:[%s0 + $0x78] sm:$0xf]
    %v76 = vld [vmem:[%s0 + $0x7c] sm:$0xf]
    %v77 = vld [vmem:[%s0 + $0x80] sm:$0xf]
    %v78 = vld [vmem:[%s0 + $0x84] sm:$0xf]
    %v79 = vld [vmem:[%s0 + $0x88] sm:$0xf]
    %v80 = vld [vmem:[%s0 + $0x8c] sm:$0xf]
    %v81 = vld [vmem:[%s0 + $0x90] sm:$0xf]
    %v82 = vld [vmem:[%s0 + $0x94] sm:$0xf]
    %v83 = vld [vmem:[%s0 + $0x98] sm:$0xf]
    %v84 = vld [vmem:[%s0 + $0x9c] sm:$0xf]
    %v85 = vld [vmem:[%s0 + $0xa0] sm:$0xf]
    %v86 = vld [vmem:[%s0 + $0xa4] sm:$0xf]
    %v87 = vld [vmem:[%s0 + $0xa8] sm:$0xf]
    %v88 = vld [vmem:[%s0 + $0xac] sm:$0xf]
    %v89 = vld [vmem:[%s0 + $0xb0] sm:$0xf]
    %v90 = vld [vmem:[%s0 + $0xb4] sm:$0xf]
    %v91 = vld [vmem:[%s0 + $0xb8] sm:$0xf]
    %v92 = vld [vmem:[%s0 + $0xbc] sm:$0xf]
    %v93 = vld [vmem:[%s0 + $0xc0] sm:$0xf]
    %v94 = vld [vmem:[#allocation2] sm:$0xf]
    %v95 = vld [vmem:[#allocation2 + $0x4] sm:$0xf]
    %v96 = vld [vmem:[#allocation4] sm:$0x1]
    %v98 = vperm.slane %v96, 0
    %v149 = vunpack.c.l.b16 %v45
    %v150 = vunpack.c.l.b16 %v46
    %v151 = vunpack.c.l.b16 %v47
    %v152 = vunpack.c.l.b16 %v48
    %v153 = vunpack.c.l.b16 %v49
    %v154 = vunpack.c.l.b16 %v50
    %v155 = vunpack.c.l.b16 %v51
    %v156 = vunpack.c.l.b16 %v52
    %v157 = vunpack.c.l.b16 %v53
    %v158 = vunpack.c.l.b16 %v54
    %v159 = vunpack.c.l.b16 %v55
    %v160 = vunpack.c.l.b16 %v56
    %v161 = vunpack.c.l.b16 %v57
    %v162 = vunpack.c.l.b16 %v58
    %v163 = vunpack.c.l.b16 %v59
    %v164 = vunpack.c.l.b16 %v60
    %v165 = vunpack.c.l.b16 %v61
    %v166 = vunpack.c.l.b16 %v62
    %v167 = vunpack.c.l.b16 %v63
    %v168 = vunpack.c.l.b16 %v64
    %v169 = vunpack.c.l.b16 %v65
    %v170 = vunpack.c.l.b16 %v66
    %v171 = vunpack.c.l.b16 %v67
    %v172 = vunpack.c.l.b16 %v68
    %v173 = vunpack.c.l.b16 %v69
    %v174 = vunpack.c.l.b16 %v70
    %v175 = vunpack.c.l.b16 %v71
    %v176 = vunpack.c.l.b16 %v72
    %v177 = vunpack.c.l.b16 %v73
    %v178 = vunpack.c.l.b16 %v74
    %v179 = vunpack.c.l.b16 %v75
    %v180 = vunpack.c.l.b16 %v76
    %v181 = vunpack.c.l.b16 %v77
    %v182 = vunpack.c.l.b16 %v78
    %v183 = vunpack.c.l.b16 %v79
    %v184 = vunpack.c.l.b16 %v80
    %v185 = vunpack.c.l.b16 %v81
    %v186 = vunpack.c.l.b16 %v82
    %v187 = vunpack.c.l.b16 %v83
    %v188 = vunpack.c.l.b16 %v84
    %v189 = vunpack.c.l.b16 %v85
    %v190 = vunpack.c.l.b16 %v86
    %v191 = vunpack.c.l.b16 %v87
    %v192 = vunpack.c.l.b16 %v88
    %v193 = vunpack.c.l.b16 %v89
    %v194 = vunpack.c.l.b16 %v90
    %v195 = vunpack.c.l.b16 %v91
    %v196 = vunpack.c.l.b16 %v92
    %v197 = vunpack.c.l.b16 %v93
    %v198 = vpack.c.b16 %v150, %v149
    %v199 = vpack.c.b16 %v152, %v151
    %v200 = vpack.c.b16 %v154, %v153
    %v201 = vpack.c.b16 %v156, %v155
    %v202 = vpack.c.b16 %v158, %v157
    %v203 = vpack.c.b16 %v160, %v159
    %v204 = vpack.c.b16 %v162, %v161
    %v205 = vpack.c.b16 %v164, %v163
    %v206 = vpack.c.b16 %v166, %v165
    %v207 = vpack.c.b16 %v168, %v167
    %v208 = vpack.c.b16 %v170, %v169
    %v209 = vpack.c.b16 %v172, %v171
    %v210 = vpack.c.b16 %v174, %v173
    %v211 = vpack.c.b16 %v176, %v175
    %v212 = vpack.c.b16 %v178, %v177
    %v213 = vpack.c.b16 %v180, %v179
    %v214 = vpack.c.b16 %v182, %v181
    %v215 = vpack.c.b16 %v184, %v183
    %v216 = vpack.c.b16 %v186, %v185
    %v217 = vpack.c.b16 %v188, %v187
    %v218 = vpack.c.b16 %v190, %v189
    %v219 = vpack.c.b16 %v192, %v191
    %v220 = vpack.c.b16 %v194, %v193
    %v221 = vpack.c.b16 %v196, %v195
    %v222 = vpack.c.b16 %v197, %v197
    %v225 = vunpack.c.l.b16 %v94
    %v226 = vunpack.c.l.b16 %v95
    %v227 = vpack.c.b16 %v226, %v225
    %vm229 = vcmask 130048
    %v231 = vsel %vm229, %v198, 0
    %v234 = vsel %vm229, %v199, 0
    %v237 = vsel %vm229, %v200, 0
    %v240 = vsel %vm229, %v201, 0
    %v243 = vsel %vm229, %v202, 0
    %v246 = vsel %vm229, %v203, 0
    %v249 = vsel %vm229, %v204, 0
    %v252 = vsel %vm229, %v205, 0
    %v255 = vsel %vm229, %v206, 0
    %v258 = vsel %vm229, %v207, 0
    %v261 = vsel %vm229, %v208, 0
    %v264 = vsel %vm229, %v209, 0
    %v267 = vsel %vm229, %v210, 0
    %v270 = vsel %vm229, %v211, 0
    %v273 = vsel %vm229, %v212, 0
    %v276 = vsel %vm229, %v213, 0
    %v279 = vsel %vm229, %v214, 0
    %v282 = vsel %vm229, %v215, 0
    %v285 = vsel %vm229, %v216, 0
    %v288 = vsel %vm229, %v217, 0
    %v291 = vsel %vm229, %v218, 0
    %v294 = vsel %vm229, %v219, 0
    %v297 = vsel %vm229, %v220, 0
    %v300 = vsel %vm229, %v221, 0
    %v303 = vsel %vm229, %v222, 0
    %305 = vmatpush.bf16.msra.mxu0 0
    %306 = vmatpush.bf16.msra.mxu0 0
    %307 = vmatpush.bf16.msra.mxu0 0
    %308 = vmatpush.bf16.msra.mxu0 0
    %309 = vmatpush.bf16.msra.mxu0 0
    %310 = vmatpush.bf16.msra.mxu0 0
    %311 = vmatpush.bf16.msra.mxu0 0
    %312 = vmatpush.bf16.msra.mxu0 %v227
    %313 = vmatmul.bf16.gmra.mxu0 %v231
    %v314 = vpop.f32.mrf.mxu0
    %v315 = vadd.f32 %v98, %v314
    %v316 = vpop.f32.mrf.mxu0
    %v317 = vadd.f32 %v98, %v316
    %318 = vmatmul.bf16.gmra.mxu0 %v234
    %v319 = vpop.f32.mrf.mxu0
    %v320 = vadd.f32 %v98, %v319
    %v321 = vpop.f32.mrf.mxu0
    %v322 = vadd.f32 %v98, %v321
    %323 = vmatmul.bf16.gmra.mxu0 %v237
    %v324 = vpop.f32.mrf.mxu0
    %v325 = vadd.f32 %v98, %v324
    %v326 = vpop.f32.mrf.mxu0
    %v327 = vadd.f32 %v98, %v326
    %328 = vmatmul.bf16.gmra.mxu0 %v240
    %v329 = vpop.f32.mrf.mxu0
    %v330 = vadd.f32 %v98, %v329
    %v331 = vpop.f32.mrf.mxu0
    %v332 = vadd.f32 %v98, %v331
    %333 = vmatmul.bf16.gmra.mxu0 %v243
    %v334 = vpop.f32.mrf.mxu0
    %v335 = vadd.f32 %v98, %v334
    %v336 = vpop.f32.mrf.mxu0
    %v337 = vadd.f32 %v98, %v336
    %338 = vmatmul.bf16.gmra.mxu0 %v246
    %v339 = vpop.f32.mrf.mxu0
    %v340 = vadd.f32 %v98, %v339
    %v341 = vpop.f32.mrf.mxu0
    %v342 = vadd.f32 %v98, %v341
    %343 = vmatmul.bf16.gmra.mxu0 %v249
    %v344 = vpop.f32.mrf.mxu0
    %v345 = vadd.f32 %v98, %v344
    %v346 = vpop.f32.mrf.mxu0
    %v347 = vadd.f32 %v98, %v346
    %348 = vmatmul.bf16.gmra.mxu0 %v252
    %v349 = vpop.f32.mrf.mxu0
    %v350 = vadd.f32 %v98, %v349
    %v351 = vpop.f32.mrf.mxu0
    %v352 = vadd.f32 %v98, %v351
    %353 = vmatmul.bf16.gmra.mxu0 %v255
    %v354 = vpop.f32.mrf.mxu0
    %v355 = vadd.f32 %v98, %v354
    %v356 = vpop.f32.mrf.mxu0
    %v357 = vadd.f32 %v98, %v356
    %358 = vmatmul.bf16.gmra.mxu0 %v258
    %v359 = vpop.f32.mrf.mxu0
    %v360 = vadd.f32 %v98, %v359
    %v361 = vpop.f32.mrf.mxu0
    %v362 = vadd.f32 %v98, %v361
    %363 = vmatmul.bf16.gmra.mxu0 %v261
    %v364 = vpop.f32.mrf.mxu0
    %v365 = vadd.f32 %v98, %v364
    %v366 = vpop.f32.mrf.mxu0
    %v367 = vadd.f32 %v98, %v366
    %368 = vmatmul.bf16.gmra.mxu0 %v264
    %v369 = vpop.f32.mrf.mxu0
    %v370 = vadd.f32 %v98, %v369
    %v371 = vpop.f32.mrf.mxu0
    %v372 = vadd.f32 %v98, %v371
    %373 = vmatmul.bf16.gmra.mxu0 %v267
    %v374 = vpop.f32.mrf.mxu0
    %v375 = vadd.f32 %v98, %v374
    %v376 = vpop.f32.mrf.mxu0
    %v377 = vadd.f32 %v98, %v376
    %378 = vmatmul.bf16.gmra.mxu0 %v270
    %v379 = vpop.f32.mrf.mxu0
    %v380 = vadd.f32 %v98, %v379
    %v381 = vpop.f32.mrf.mxu0
    %v382 = vadd.f32 %v98, %v381
    %383 = vmatmul.bf16.gmra.mxu0 %v273
    %v384 = vpop.f32.mrf.mxu0
    %v385 = vadd.f32 %v98, %v384
    %v386 = vpop.f32.mrf.mxu0
    %v387 = vadd.f32 %v98, %v386
    %388 = vmatmul.bf16.gmra.mxu0 %v276
    %v389 = vpop.f32.mrf.mxu0
    %v390 = vadd.f32 %v98, %v389
    %v391 = vpop.f32.mrf.mxu0
    %v392 = vadd.f32 %v98, %v391
    %393 = vmatmul.bf16.gmra.mxu0 %v279
    %v394 = vpop.f32.mrf.mxu0
    %v395 = vadd.f32 %v98, %v394
    %v396 = vpop.f32.mrf.mxu0
    %v397 = vadd.f32 %v98, %v396
    %398 = vmatmul.bf16.gmra.mxu0 %v282
    %v399 = vpop.f32.mrf.mxu0
    %v400 = vadd.f32 %v98, %v399
    %v401 = vpop.f32.mrf.mxu0
    %v402 = vadd.f32 %v98, %v401
    %403 = vmatmul.bf16.gmra.mxu0 %v285
    %v404 = vpop.f32.mrf.mxu0
    %v405 = vadd.f32 %v98, %v404
    %v406 = vpop.f32.mrf.mxu0
    %v407 = vadd.f32 %v98, %v406
    %408 = vmatmul.bf16.gmra.mxu0 %v288
    %v409 = vpop.f32.mrf.mxu0
    %v410 = vadd.f32 %v98, %v409
    %v411 = vpop.f32.mrf.mxu0
    %v412 = vadd.f32 %v98, %v411
    %413 = vmatmul.bf16.gmra.mxu0 %v291
    %v414 = vpop.f32.mrf.mxu0
    %v415 = vadd.f32 %v98, %v414
    %v416 = vpop.f32.mrf.mxu0
    %v417 = vadd.f32 %v98, %v416
    %418 = vmatmul.bf16.gmra.mxu0 %v294
    %v419 = vpop.f32.mrf.mxu0
    %v420 = vadd.f32 %v98, %v419
    %v421 = vpop.f32.mrf.mxu0
    %v422 = vadd.f32 %v98, %v421
    %423 = vmatmul.bf16.gmra.mxu0 %v297
    %v424 = vpop.f32.mrf.mxu0
    %v425 = vadd.f32 %v98, %v424
    %v426 = vpop.f32.mrf.mxu0
    %v427 = vadd.f32 %v98, %v426
    %428 = vmatmul.bf16.gmra.mxu0 %v300
    %v429 = vpop.f32.mrf.mxu0
    %v430 = vadd.f32 %v98, %v429
    %v431 = vpop.f32.mrf.mxu0
    %v432 = vadd.f32 %v98, %v431
    %433 = vmatmul.bf16.gmra.mxu0 %v303
    %v434 = vpop.f32.mrf.mxu0
    %v435 = vadd.f32 %v98, %v434
    %v436 = vpop.f32.mrf.mxu0
    %437 = vdwg.mxu0
    %v438 = vmax.f32 %v315, 0.0
    %v439 = vmax.f32 %v317, 0.0
    %v440 = vmax.f32 %v320, 0.0
    %v441 = vmax.f32 %v322, 0.0
    %v442 = vmax.f32 %v325, 0.0
    %v443 = vmax.f32 %v327, 0.0
    %v444 = vmax.f32 %v330, 0.0
    %v445 = vmax.f32 %v332, 0.0
    %v446 = vmax.f32 %v335, 0.0
    %v447 = vmax.f32 %v337, 0.0
    %v448 = vmax.f32 %v340, 0.0
    %v449 = vmax.f32 %v342, 0.0
    %v450 = vmax.f32 %v345, 0.0
    %v451 = vmax.f32 %v347, 0.0
    %v452 = vmax.f32 %v350, 0.0
    %v453 = vmax.f32 %v352, 0.0
    %v454 = vmax.f32 %v355, 0.0
    %v455 = vmax.f32 %v357, 0.0
    %v456 = vmax.f32 %v360, 0.0
    %v457 = vmax.f32 %v362, 0.0
    %v458 = vmax.f32 %v365, 0.0
    %v459 = vmax.f32 %v367, 0.0
    %v460 = vmax.f32 %v370, 0.0
    %v461 = vmax.f32 %v372, 0.0
    %v462 = vmax.f32 %v375, 0.0
    %v463 = vmax.f32 %v377, 0.0
    %v464 = vmax.f32 %v380, 0.0
    %v465 = vmax.f32 %v382, 0.0
    %v466 = vmax.f32 %v385, 0.0
    %v467 = vmax.f32 %v387, 0.0
    %v468 = vmax.f32 %v390, 0.0
    %v469 = vmax.f32 %v392, 0.0
    %v470 = vmax.f32 %v395, 0.0
    %v471 = vmax.f32 %v397, 0.0
    %v472 = vmax.f32 %v400, 0.0
    %v473 = vmax.f32 %v402, 0.0
    %v474 = vmax.f32 %v405, 0.0
    %v475 = vmax.f32 %v407, 0.0
    %v476 = vmax.f32 %v410, 0.0
    %v477 = vmax.f32 %v412, 0.0
    %v478 = vmax.f32 %v415, 0.0
    %v479 = vmax.f32 %v417, 0.0
    %v480 = vmax.f32 %v420, 0.0
    %v481 = vmax.f32 %v422, 0.0
    %v482 = vmax.f32 %v425, 0.0
    %v483 = vmax.f32 %v427, 0.0
    %v484 = vmax.f32 %v430, 0.0
    %v485 = vmax.f32 %v432, 0.0
    %v486 = vmax.f32 %v435, 0.0
    %v487 = vpack.c.bf16 %v438, %v438
    %v488 = vpack.c.bf16 %v439, %v439
    %v489 = vpack.c.bf16 %v440, %v440
    %v490 = vpack.c.bf16 %v441, %v441
    %v491 = vpack.c.bf16 %v442, %v442
    %v492 = vpack.c.bf16 %v443, %v443
    %v493 = vpack.c.bf16 %v444, %v444
    %v494 = vpack.c.bf16 %v445, %v445
    %v495 = vpack.c.bf16 %v446, %v446
    %v496 = vpack.c.bf16 %v447, %v447
    %v497 = vpack.c.bf16 %v448, %v448
    %v498 = vpack.c.bf16 %v449, %v449
    %v499 = vpack.c.bf16 %v450, %v450
    %v500 = vpack.c.bf16 %v451, %v451
    %v501 = vpack.c.bf16 %v452, %v452
    %v502 = vpack.c.bf16 %v453, %v453
    %v503 = vpack.c.bf16 %v454, %v454
    %v504 = vpack.c.bf16 %v455, %v455
    %v505 = vpack.c.bf16 %v456, %v456
    %v506 = vpack.c.bf16 %v457, %v457
    %v507 = vpack.c.bf16 %v458, %v458
    %v508 = vpack.c.bf16 %v459, %v459
    %v509 = vpack.c.bf16 %v460, %v460
    %v510 = vpack.c.bf16 %v461, %v461
    %v511 = vpack.c.bf16 %v462, %v462
    %v512 = vpack.c.bf16 %v463, %v463
    %v513 = vpack.c.bf16 %v464, %v464
    %v514 = vpack.c.bf16 %v465, %v465
    %v515 = vpack.c.bf16 %v466, %v466
    %v516 = vpack.c.bf16 %v467, %v467
    %v517 = vpack.c.bf16 %v468, %v468
    %v518 = vpack.c.bf16 %v469, %v469
    %v519 = vpack.c.bf16 %v470, %v470
    %v520 = vpack.c.bf16 %v471, %v471
    %v521 = vpack.c.bf16 %v472, %v472
    %v522 = vpack.c.bf16 %v473, %v473
    %v523 = vpack.c.bf16 %v474, %v474
    %v524 = vpack.c.bf16 %v475, %v475
    %v525 = vpack.c.bf16 %v476, %v476
    %v526 = vpack.c.bf16 %v477, %v477
    %v527 = vpack.c.bf16 %v478, %v478
    %v528 = vpack.c.bf16 %v479, %v479
    %v529 = vpack.c.bf16 %v480, %v480
    %v530 = vpack.c.bf16 %v481, %v481
    %v531 = vpack.c.bf16 %v482, %v482
    %v532 = vpack.c.bf16 %v483, %v483
    %v533 = vpack.c.bf16 %v484, %v484
    %v534 = vpack.c.bf16 %v485, %v485
    %v535 = vpack.c.bf16 %v486, %v486
    %vm536 = vcmask 125952
    %537 = vst.msk [vmem:[%s3] sm:$0xf] %vm536, %v487
    %538 = vst.msk [vmem:[%s3 + $0x4] sm:$0xf] %vm536, %v488
    %539 = vst.msk [vmem:[%s3 + $0x8] sm:$0xf] %vm536, %v489
    %540 = vst.msk [vmem:[%s3 + $0xc] sm:$0xf] %vm536, %v490
    %541 = vst.msk [vmem:[%s3 + $0x10] sm:$0xf] %vm536, %v491
    %542 = vst.msk [vmem:[%s3 + $0x14] sm:$0xf] %vm536, %v492
    %543 = vst.msk [vmem:[%s3 + $0x18] sm:$0xf] %vm536, %v493
    %544 = vst.msk [vmem:[%s3 + $0x1c] sm:$0xf] %vm536, %v494
    %545 = vst.msk [vmem:[%s3 + $0x20] sm:$0xf] %vm536, %v495
    %546 = vst.msk [vmem:[%s3 + $0x24] sm:$0xf] %vm536, %v496
    %547 = vst.msk [vmem:[%s3 + $0x28] sm:$0xf] %vm536, %v497
    %548 = vst.msk [vmem:[%s3 + $0x2c] sm:$0xf] %vm536, %v498
    %549 = vst.msk [vmem:[%s3 + $0x30] sm:$0xf] %vm536, %v499
    %550 = vst.msk [vmem:[%s3 + $0x34] sm:$0xf] %vm536, %v500
    %551 = vst.msk [vmem:[%s3 + $0x38] sm:$0xf] %vm536, %v501
    %552 = vst.msk [vmem:[%s3 + $0x3c] sm:$0xf] %vm536, %v502
    %553 = vst.msk [vmem:[%s3 + $0x40] sm:$0xf] %vm536, %v503
    %554 = vst.msk [vmem:[%s3 + $0x44] sm:$0xf] %vm536, %v504
    %555 = vst.msk [vmem:[%s3 + $0x48] sm:$0xf] %vm536, %v505
    %556 = vst.msk [vmem:[%s3 + $0x4c] sm:$0xf] %vm536, %v506
    %557 = vst.msk [vmem:[%s3 + $0x50] sm:$0xf] %vm536, %v507
    %558 = vst.msk [vmem:[%s3 + $0x54] sm:$0xf] %vm536, %v508
    %559 = vst.msk [vmem:[%s3 + $0x58] sm:$0xf] %vm536, %v509
    %560 = vst.msk [vmem:[%s3 + $0x5c] sm:$0xf] %vm536, %v510
    %561 = vst.msk [vmem:[%s3 + $0x60] sm:$0xf] %vm536, %v511
    %562 = vst.msk [vmem:[%s3 + $0x64] sm:$0xf] %vm536, %v512
    %563 = vst.msk [vmem:[%s3 + $0x68] sm:$0xf] %vm536, %v513
    %564 = vst.msk [vmem:[%s3 + $0x6c] sm:$0xf] %vm536, %v514
    %565 = vst.msk [vmem:[%s3 + $0x70] sm:$0xf] %vm536, %v515
    %566 = vst.msk [vmem:[%s3 + $0x74] sm:$0xf] %vm536, %v516
    %567 = vst.msk [vmem:[%s3 + $0x78] sm:$0xf] %vm536, %v517
    %568 = vst.msk [vmem:[%s3 + $0x7c] sm:$0xf] %vm536, %v518
    %569 = vst.msk [vmem:[%s3 + $0x80] sm:$0xf] %vm536, %v519
    %570 = vst.msk [vmem:[%s3 + $0x84] sm:$0xf] %vm536, %v520
    %571 = vst.msk [vmem:[%s3 + $0x88] sm:$0xf] %vm536, %v521
    %572 = vst.msk [vmem:[%s3 + $0x8c] sm:$0xf] %vm536, %v522
    %573 = vst.msk [vmem:[%s3 + $0x90] sm:$0xf] %vm536, %v523
    %574 = vst.msk [vmem:[%s3 + $0x94] sm:$0xf] %vm536, %v524
    %575 = vst.msk [vmem:[%s3 + $0x98] sm:$0xf] %vm536, %v525
    %576 = vst.msk [vmem:[%s3 + $0x9c] sm:$0xf] %vm536, %v526
    %577 = vst.msk [vmem:[%s3 + $0xa0] sm:$0xf] %vm536, %v527
    %578 = vst.msk [vmem:[%s3 + $0xa4] sm:$0xf] %vm536, %v528
    %579 = vst.msk [vmem:[%s3 + $0xa8] sm:$0xf] %vm536, %v529
    %580 = vst.msk [vmem:[%s3 + $0xac] sm:$0xf] %vm536, %v530
    %581 = vst.msk [vmem:[%s3 + $0xb0] sm:$0xf] %vm536, %v531
    %582 = vst.msk [vmem:[%s3 + $0xb4] sm:$0xf] %vm536, %v532
    %583 = vst.msk [vmem:[%s3 + $0xb8] sm:$0xf] %vm536, %v533
    %584 = vst.msk [vmem:[%s3 + $0xbc] sm:$0xf] %vm536, %v534
    %585 = vst.msk [vmem:[%s3 + $0xc0] sm:$0xf] %vm536, %v535
    // Predicated region
    $region22: #{autoencoder_forward.5} parent=1 // pred_check
      _
    $region23: #{autoencoder_forward.5} parent=1 // pred_check_branch
      %587 = sbr.rel (0) target = $region25
    $region24: #{autoencoder_forward.5} parent=1 // pred_region
      _
    $region25: #{autoencoder_forward.5} parent=1 // pred_fallthru
      _
    // Predicated region
    $region26: #{autoencoder_forward.5} parent=1 // pred_check
      _
    $region27: #{autoencoder_forward.5} parent=1 // pred_check_branch
      %589 = sbr.rel (0) target = $region29
    $region28: #{autoencoder_forward.5} parent=1 // pred_region
      _
    $region29: #{autoencoder_forward.5} parent=1 // pred_fallthru
      _
    %590 = vsyncpa [#allocation3], 1
    %591 = vsyncpa [#allocation5], 1

// kernel: autoencoder_forward.6
$region0: #{autoencoder_forward.6}
  #allocation0 [shape = 'u32[]', space=smem, size = 0x4, offset = 0x4, fixed_abs, tag = 'smem constant byte address 0x4 - core index']
  #allocation1 [shape = 'u32[72,128]{1,0:T(1,128)}', space=vmem, size = 0x9000, scoped, tag = 'internal scratch']
  %s0 = inlined_call_operand.vmem [shape: bf16[98,256], index: 0, kind: input, shape index: {}]
  %s1 = inlined_call_operand.vmem [shape: bf16[256,32], index: 1, kind: input, shape index: {}]
  %s2 = inlined_call_operand.vmem [shape: f32[1,32], index: 2, kind: input, shape index: {}]
  %s3 = inlined_call_operand.vmem [shape: bf16[98,32], index: 3, kind: output, shape index: {}]
  %s4 = sld [smem:[#allocation0]]
  $region22: #{autoencoder_forward.6} parent=0
    _
  %s6 = ssub.s32 1, %s4
  %s7 = scalar_select 0, %s6, %s4
  // Predicated region
  $region2: #{autoencoder_forward.6} parent=0 // pred_check
    _
  $region3: #{autoencoder_forward.6} parent=0 // pred_check_branch
    %9 = sbr.rel (0) target = $region5
  $region4: #{autoencoder_forward.6} parent=0 // pred_region
    _
  $region5: #{autoencoder_forward.6} parent=0 // pred_fallthru
    _
  // Predicated region
  $region6: #{autoencoder_forward.6} parent=0 // pred_check
    _
  $region7: #{autoencoder_forward.6} parent=0 // pred_check_branch
    %11 = sbr.rel (0) target = $region9
  $region8: #{autoencoder_forward.6} parent=0 // pred_region
    _
  $region9: #{autoencoder_forward.6} parent=0 // pred_fallthru
    _
  // Predicated region
  $region10: #{autoencoder_forward.6} parent=0 // pred_check
    _
  $region11: #{autoencoder_forward.6} parent=0 // pred_check_branch
    %13 = sbr.rel (0) target = $region13
  $region12: #{autoencoder_forward.6} parent=0 // pred_region
    _
  $region13: #{autoencoder_forward.6} parent=0 // pred_fallthru
    _
  %v14 = vld [vmem:[%s0] sm:$0xff]
  %v15 = vld [vmem:[%s0 + $0x8] sm:$0xff]
  %v16 = vld [vmem:[%s0 + $0x10] sm:$0xff]
  %v17 = vld [vmem:[%s0 + $0x18] sm:$0xff]
  %v18 = vld [vmem:[%s0 + $0x20] sm:$0xff]
  %v19 = vld [vmem:[%s0 + $0x28] sm:$0xff]
  %v20 = vld [vmem:[%s0 + $0x30] sm:$0xff]
  %v21 = vld [vmem:[%s0 + $0x38] sm:$0xff]
  %v22 = vld [vmem:[%s0 + $0x40] sm:$0xff]
  %v23 = vld [vmem:[%s0 + $0x48] sm:$0xff]
  %v24 = vld [vmem:[%s0 + $0x50] sm:$0xff]
  %v25 = vld [vmem:[%s0 + $0x58] sm:$0xff]
  %v26 = vld [vmem:[%s0 + $0x60] sm:$0x11]
  %v27 = vld [vmem:[%s1] sm:$0xf]
  %v28 = vld [vmem:[%s1 + $0x4] sm:$0xf]
  %v29 = vld [vmem:[%s1 + $0x8] sm:$0xf]
  %v30 = vld [vmem:[%s1 + $0xc] sm:$0xf]
  %v31 = vld [vmem:[%s1 + $0x10] sm:$0xf]
  %v32 = vld [vmem:[%s1 + $0x14] sm:$0xf]
  %v33 = vld [vmem:[%s1 + $0x18] sm:$0xf]
  %v34 = vld [vmem:[%s1 + $0x1c] sm:$0xf]
  %v35 = vld [vmem:[%s1 + $0x20] sm:$0xf]
  %v36 = vld [vmem:[%s1 + $0x24] sm:$0xf]
  %v37 = vld [vmem:[%s1 + $0x28] sm:$0xf]
  %v38 = vld [vmem:[%s1 + $0x2c] sm:$0xf]
  %v39 = vld [vmem:[%s1 + $0x30] sm:$0xf]
  %v40 = vld [vmem:[%s1 + $0x34] sm:$0xf]
  %v41 = vld [vmem:[%s1 + $0x38] sm:$0xf]
  %v42 = vld [vmem:[%s1 + $0x3c] sm:$0xf]
  %v43 = vld [vmem:[%s1 + $0x40] sm:$0xf]
  %v44 = vld [vmem:[%s1 + $0x44] sm:$0xf]
  %v45 = vld [vmem:[%s1 + $0x48] sm:$0xf]
  %v46 = vld [vmem:[%s1 + $0x4c] sm:$0xf]
  %v47 = vld [vmem:[%s1 + $0x50] sm:$0xf]
  %v48 = vld [vmem:[%s1 + $0x54] sm:$0xf]
  %v49 = vld [vmem:[%s1 + $0x58] sm:$0xf]
  %v50 = vld [vmem:[%s1 + $0x5c] sm:$0xf]
  %v51 = vld [vmem:[%s1 + $0x60] sm:$0xf]
  %v52 = vld [vmem:[%s1 + $0x64] sm:$0xf]
  %v53 = vld [vmem:[%s1 + $0x68] sm:$0xf]
  %v54 = vld [vmem:[%s1 + $0x6c] sm:$0xf]
  %v55 = vld [vmem:[%s1 + $0x70] sm:$0xf]
  %v56 = vld [vmem:[%s1 + $0x74] sm:$0xf]
  %v57 = vld [vmem:[%s1 + $0x78] sm:$0xf]
  %v58 = vld [vmem:[%s1 + $0x7c] sm:$0xf]
  %v59 = vld [vmem:[%s2] sm:$0x1]
  %v61 = vperm.slane %v59, 0
  %v76 = vunpack.c.l.b16 %v14
  %v77 = vunpack.c.h.b16 %v14
  %v78 = vunpack.c.l.b16 %v15
  %v79 = vunpack.c.h.b16 %v15
  %v80 = vunpack.c.l.b16 %v16
  %v81 = vunpack.c.h.b16 %v16
  %v82 = vunpack.c.l.b16 %v17
  %v83 = vunpack.c.h.b16 %v17
  %v84 = vunpack.c.l.b16 %v18
  %v85 = vunpack.c.h.b16 %v18
  %v86 = vunpack.c.l.b16 %v19
  %v87 = vunpack.c.h.b16 %v19
  %v88 = vunpack.c.l.b16 %v20
  %v89 = vunpack.c.h.b16 %v20
  %v90 = vunpack.c.l.b16 %v21
  %v91 = vunpack.c.h.b16 %v21
  %v92 = vunpack.c.l.b16 %v22
  %v93 = vunpack.c.h.b16 %v22
  %v94 = vunpack.c.l.b16 %v23
  %v95 = vunpack.c.h.b16 %v23
  %v96 = vunpack.c.l.b16 %v24
  %v97 = vunpack.c.h.b16 %v24
  %v98 = vunpack.c.l.b16 %v25
  %v99 = vunpack.c.h.b16 %v25
  %v100 = vunpack.c.l.b16 %v26
  %v101 = vunpack.c.h.b16 %v26
  %v102 = vpack.c.b16 %v78, %v76
  %v103 = vpack.c.b16 %v79, %v77
  %v104 = vpack.c.b16 %v82, %v80
  %v105 = vpack.c.b16 %v83, %v81
  %v106 = vpack.c.b16 %v86, %v84
  %v107 = vpack.c.b16 %v87, %v85
  %v108 = vpack.c.b16 %v90, %v88
  %v109 = vpack.c.b16 %v91, %v89
  %v110 = vpack.c.b16 %v94, %v92
  %v111 = vpack.c.b16 %v95, %v93
  %v112 = vpack.c.b16 %v98, %v96
  %v113 = vpack.c.b16 %v99, %v97
  %v114 = vpack.c.b16 %v100, %v100
  %v115 = vpack.c.b16 %v101, %v101
  %v162 = vunpack.c.l.b16 %v27
  %v163 = vunpack.c.l.b16 %v28
  %v164 = vunpack.c.l.b16 %v29
  %v165 = vunpack.c.l.b16 %v30
  %v166 = vunpack.c.l.b16 %v31
  %v167 = vunpack.c.l.b16 %v32
  %v168 = vunpack.c.l.b16 %v33
  %v169 = vunpack.c.l.b16 %v34
  %v170 = vunpack.c.l.b16 %v35
  %v171 = vunpack.c.l.b16 %v36
  %v172 = vunpack.c.l.b16 %v37
  %v173 = vunpack.c.l.b16 %v38
  %v174 = vunpack.c.l.b16 %v39
  %v175 = vunpack.c.l.b16 %v40
  %v176 = vunpack.c.l.b16 %v41
  %v177 = vunpack.c.l.b16 %v42
  %v178 = vunpack.c.l.b16 %v43
  %v179 = vunpack.c.l.b16 %v44
  %v180 = vunpack.c.l.b16 %v45
  %v181 = vunpack.c.l.b16 %v46
  %v182 = vunpack.c.l.b16 %v47
  %v183 = vunpack.c.l.b16 %v48
  %v184 = vunpack.c.l.b16 %v49
  %v185 = vunpack.c.l.b16 %v50
  %v186 = vunpack.c.l.b16 %v51
  %v187 = vunpack.c.l.b16 %v52
  %v188 = vunpack.c.l.b16 %v53
  %v189 = vunpack.c.l.b16 %v54
  %v190 = vunpack.c.l.b16 %v55
  %v191 = vunpack.c.l.b16 %v56
  %v192 = vunpack.c.l.b16 %v57
  %v193 = vunpack.c.l.b16 %v58
  %v194 = vpack.c.b16 %v163, %v162
  %v195 = vpack.c.b16 %v165, %v164
  %v196 = vpack.c.b16 %v167, %v166
  %v197 = vpack.c.b16 %v169, %v168
  %v198 = vpack.c.b16 %v171, %v170
  %v199 = vpack.c.b16 %v173, %v172
  %v200 = vpack.c.b16 %v175, %v174
  %v201 = vpack.c.b16 %v177, %v176
  %v202 = vpack.c.b16 %v179, %v178
  %v203 = vpack.c.b16 %v181, %v180
  %v204 = vpack.c.b16 %v183, %v182
  %v205 = vpack.c.b16 %v185, %v184
  %v206 = vpack.c.b16 %v187, %v186
  %v207 = vpack.c.b16 %v189, %v188
  %v208 = vpack.c.b16 %v191, %v190
  %v209 = vpack.c.b16 %v193, %v192
  %226 = vmatpush.bf16.msra.mxu0 %v201
  %227 = vmatpush.bf16.msra.mxu0 %v200
  %228 = vmatpush.bf16.msra.mxu0 %v199
  %229 = vmatpush.bf16.msra.mxu0 %v198
  %230 = vmatpush.bf16.msra.mxu0 %v197
  %231 = vmatpush.bf16.msra.mxu0 %v196
  %232 = vmatpush.bf16.msra.mxu0 %v195
  %233 = vmatpush.bf16.msra.mxu0 %v194
  %234 = vmatmul.bf16.gmra.mxu0 %v102
  %v235 = vpop.f32.mrf.mxu0
  %v236 = vadd.f32 %v61, %v235
  %v237 = vpop.f32.mrf.mxu0
  %v238 = vadd.f32 %v61, %v237
  %239 = vmatmul.bf16.gmra.mxu0 %v104
  %v240 = vpop.f32.mrf.mxu0
  %v241 = vadd.f32 %v61, %v240
  %v242 = vpop.f32.mrf.mxu0
  %v243 = vadd.f32 %v61, %v242
  %244 = vmatmul.bf16.gmra.mxu0 %v106
  %v245 = vpop.f32.mrf.mxu0
  %v246 = vadd.f32 %v61, %v245
  %v247 = vpop.f32.mrf.mxu0
  %v248 = vadd.f32 %v61, %v247
  %249 = vmatmul.bf16.gmra.mxu0 %v108
  %v250 = vpop.f32.mrf.mxu0
  %v251 = vadd.f32 %v61, %v250
  %v252 = vpop.f32.mrf.mxu0
  %v253 = vadd.f32 %v61, %v252
  %254 = vmatmul.bf16.gmra.mxu0 %v110
  %v255 = vpop.f32.mrf.mxu0
  %v256 = vadd.f32 %v61, %v255
  %v257 = vpop.f32.mrf.mxu0
  %v258 = vadd.f32 %v61, %v257
  %259 = vmatmul.bf16.gmra.mxu0 %v112
  %v260 = vpop.f32.mrf.mxu0
  %v261 = vadd.f32 %v61, %v260
  %v262 = vpop.f32.mrf.mxu0
  %v263 = vadd.f32 %v61, %v262
  %264 = vmatmul.bf16.gmra.mxu0 %v114
  %v265 = vpop.f32.mrf.mxu0
  %v266 = vadd.f32 %v61, %v265
  %v267 = vpop.f32.mrf.mxu0
  %268 = vdwg.mxu0
  %269 = vmatpush.bf16.msra.mxu0 %v209
  %270 = vmatpush.bf16.msra.mxu0 %v208
  %271 = vmatpush.bf16.msra.mxu0 %v207
  %272 = vmatpush.bf16.msra.mxu0 %v206
  %273 = vmatpush.bf16.msra.mxu0 %v205
  %274 = vmatpush.bf16.msra.mxu0 %v204
  %275 = vmatpush.bf16.msra.mxu0 %v203
  %276 = vmatpush.bf16.msra.mxu0 %v202
  %277 = vmatmul.bf16.gmra.mxu0 %v103
  %v278 = vpop.f32.mrf.mxu0
  %v279 = vadd.f32 %v236, %v278
  %v280 = vpop.f32.mrf.mxu0
  %v281 = vadd.f32 %v238, %v280
  %282 = vmatmul.bf16.gmra.mxu0 %v105
  %v283 = vpop.f32.mrf.mxu0
  %v284 = vadd.f32 %v241, %v283
  %v285 = vpop.f32.mrf.mxu0
  %v286 = vadd.f32 %v243, %v285
  %287 = vmatmul.bf16.gmra.mxu0 %v107
  %v288 = vpop.f32.mrf.mxu0
  %v289 = vadd.f32 %v246, %v288
  %v290 = vpop.f32.mrf.mxu0
  %v291 = vadd.f32 %v248, %v290
  %292 = vmatmul.bf16.gmra.mxu0 %v109
  %v293 = vpop.f32.mrf.mxu0
  %v294 = vadd.f32 %v251, %v293
  %v295 = vpop.f32.mrf.mxu0
  %v296 = vadd.f32 %v253, %v295
  %297 = vmatmul.bf16.gmra.mxu0 %v111
  %v298 = vpop.f32.mrf.mxu0
  %v299 = vadd.f32 %v256, %v298
  %v300 = vpop.f32.mrf.mxu0
  %v301 = vadd.f32 %v258, %v300
  %302 = vmatmul.bf16.gmra.mxu0 %v113
  %v303 = vpop.f32.mrf.mxu0
  %v304 = vadd.f32 %v261, %v303
  %v305 = vpop.f32.mrf.mxu0
  %v306 = vadd.f32 %v263, %v305
  %307 = vmatmul.bf16.gmra.mxu0 %v115
  %v308 = vpop.f32.mrf.mxu0
  %v309 = vadd.f32 %v266, %v308
  %v310 = vpop.f32.mrf.mxu0
  %311 = vdwg.mxu0
  %v312 = vmax.f32 %v279, 0.0
  %v313 = vmax.f32 %v281, 0.0
  %v314 = vmax.f32 %v284, 0.0
  %v315 = vmax.f32 %v286, 0.0
  %v316 = vmax.f32 %v289, 0.0
  %v317 = vmax.f32 %v291, 0.0
  %v318 = vmax.f32 %v294, 0.0
  %v319 = vmax.f32 %v296, 0.0
  %v320 = vmax.f32 %v299, 0.0
  %v321 = vmax.f32 %v301, 0.0
  %v322 = vmax.f32 %v304, 0.0
  %v323 = vmax.f32 %v306, 0.0
  %v324 = vmax.f32 %v309, 0.0
  %v325 = vpack.c.bf16 %v312, %v312
  %v326 = vpack.c.bf16 %v313, %v313
  %v327 = vpack.c.bf16 %v314, %v314
  %v328 = vpack.c.bf16 %v315, %v315
  %v329 = vpack.c.bf16 %v316, %v316
  %v330 = vpack.c.bf16 %v317, %v317
  %v331 = vpack.c.bf16 %v318, %v318
  %v332 = vpack.c.bf16 %v319, %v319
  %v333 = vpack.c.bf16 %v320, %v320
  %v334 = vpack.c.bf16 %v321, %v321
  %v335 = vpack.c.bf16 %v322, %v322
  %v336 = vpack.c.bf16 %v323, %v323
  %v337 = vpack.c.bf16 %v324, %v324
  %vm338 = vcmask 257024
  %339 = vst.msk [vmem:[%s3] sm:$0xf] %vm338, %v325
  %340 = vst.msk [vmem:[%s3 + $0x4] sm:$0xf] %vm338, %v326
  %341 = vst.msk [vmem:[%s3 + $0x8] sm:$0xf] %vm338, %v327
  %342 = vst.msk [vmem:[%s3 + $0xc] sm:$0xf] %vm338, %v328
  %343 = vst.msk [vmem:[%s3 + $0x10] sm:$0xf] %vm338, %v329
  %344 = vst.msk [vmem:[%s3 + $0x14] sm:$0xf] %vm338, %v330
  %345 = vst.msk [vmem:[%s3 + $0x18] sm:$0xf] %vm338, %v331
  %346 = vst.msk [vmem:[%s3 + $0x1c] sm:$0xf] %vm338, %v332
  %347 = vst.msk [vmem:[%s3 + $0x20] sm:$0xf] %vm338, %v333
  %348 = vst.msk [vmem:[%s3 + $0x24] sm:$0xf] %vm338, %v334
  %349 = vst.msk [vmem:[%s3 + $0x28] sm:$0xf] %vm338, %v335
  %350 = vst.msk [vmem:[%s3 + $0x2c] sm:$0xf] %vm338, %v336
  %vm351 = vcmask 253952
  %352 = vst.msk [vmem:[%s3 + $0x30] sm:$0x1] %vm351, %v337
  // Predicated region
  $region14: #{autoencoder_forward.6} parent=0 // pred_check
    _
  $region15: #{autoencoder_forward.6} parent=0 // pred_check_branch
    %354 = sbr.rel (0) target = $region17
  $region16: #{autoencoder_forward.6} parent=0 // pred_region
    _
  $region17: #{autoencoder_forward.6} parent=0 // pred_fallthru
    _
  // Predicated region
  $region18: #{autoencoder_forward.6} parent=0 // pred_check
    _
  $region19: #{autoencoder_forward.6} parent=0 // pred_check_branch
    %356 = sbr.rel (0) target = $region21
  $region20: #{autoencoder_forward.6} parent=0 // pred_region
    _
  $region21: #{autoencoder_forward.6} parent=0 // pred_fallthru
    _

// kernel: autoencoder_forward.7
$region0: #{autoencoder_forward.7}
  #allocation0 [shape = 'u32[]', space=smem, size = 0x4, offset = 0x4, fixed_abs, tag = 'smem constant byte address 0x4 - core index']
  #allocation1 [shape = 'u32[72,128]{1,0:T(1,128)}', space=vmem, size = 0x9000, scoped, tag = 'internal scratch']
  %s0 = inlined_call_operand.vmem [shape: bf16[2,1568], index: 0, kind: input, shape index: {}]
  %s1 = inlined_call_operand.vmem [shape: bf16[1568,32], index: 1, kind: input, shape index: {}]
  %s2 = inlined_call_operand.vmem [shape: f32[1,32], index: 2, kind: input, shape index: {}]
  %s3 = inlined_call_operand.vmem [shape: bf16[32,8], index: 3, kind: input, shape index: {}]
  %s4 = inlined_call_operand.vmem [shape: f32[1,8], index: 4, kind: input, shape index: {}]
  %s5 = inlined_call_operand.vmem [shape: bf16[8,32], index: 5, kind: input, shape index: {}]
  %s6 = inlined_call_operand.vmem [shape: f32[1,32], index: 6, kind: input, shape index: {}]
  %s7 = inlined_call_operand.vmem [shape: bf16[32,1568], index: 7, kind: input, shape index: {}]
  %s8 = inlined_call_operand.vmem [shape: f32[1,1568], index: 8, kind: input, shape index: {}]
  %s9 = inlined_call_operand.vmem [shape: bf16[2,1568], index: 9, kind: output, shape index: {}]
  %s10 = sld [smem:[#allocation0]]
  $region46: #{autoencoder_forward.7} parent=0
    _
  %s12 = ssub.s32 1, %s10
  %s13 = scalar_select 0, %s12, %s10
  // Predicated region
  $region2: #{autoencoder_forward.7} parent=0 // pred_check
    _
  $region3: #{autoencoder_forward.7} parent=0 // pred_check_branch
    %15 = sbr.rel (0) target = $region5
  $region4: #{autoencoder_forward.7} parent=0 // pred_region
    _
  $region5: #{autoencoder_forward.7} parent=0 // pred_fallthru
    _
  // Predicated region
  $region6: #{autoencoder_forward.7} parent=0 // pred_check
    _
  $region7: #{autoencoder_forward.7} parent=0 // pred_check_branch
    %17 = sbr.rel (0) target = $region9
  $region8: #{autoencoder_forward.7} parent=0 // pred_region
    _
  $region9: #{autoencoder_forward.7} parent=0 // pred_fallthru
    _
  // Predicated region
  $region10: #{autoencoder_forward.7} parent=0 // pred_check
    _
  $region11: #{autoencoder_forward.7} parent=0 // pred_check_branch
    %19 = sbr.rel (0) target = $region13
  $region12: #{autoencoder_forward.7} parent=0 // pred_region
    _
  $region13: #{autoencoder_forward.7} parent=0 // pred_fallthru
    _
  // Predicated region
  $region14: #{autoencoder_forward.7} parent=0 // pred_check
    _
  $region15: #{autoencoder_forward.7} parent=0 // pred_check_branch
    %21 = sbr.rel (0) target = $region17
  $region16: #{autoencoder_forward.7} parent=0 // pred_region
    _
  $region17: #{autoencoder_forward.7} parent=0 // pred_fallthru
    _
  // Predicated region
  $region18: #{autoencoder_forward.7} parent=0 // pred_check
    _
  $region19: #{autoencoder_forward.7} parent=0 // pred_check_branch
    %23 = sbr.rel (0) target = $region21
  $region20: #{autoencoder_forward.7} parent=0 // pred_region
    _
  $region21: #{autoencoder_forward.7} parent=0 // pred_fallthru
    _
  // Predicated region
  $region22: #{autoencoder_forward.7} parent=0 // pred_check
    _
  $region23: #{autoencoder_forward.7} parent=0 // pred_check_branch
    %25 = sbr.rel (0) target = $region25
  $region24: #{autoencoder_forward.7} parent=0 // pred_region
    _
  $region25: #{autoencoder_forward.7} parent=0 // pred_fallthru
    _
  // Predicated region
  $region26: #{autoencoder_forward.7} parent=0 // pred_check
    _
  $region27: #{autoencoder_forward.7} parent=0 // pred_check_branch
    %27 = sbr.rel (0) target = $region29
  $region28: #{autoencoder_forward.7} parent=0 // pred_region
    _
  $region29: #{autoencoder_forward.7} parent=0 // pred_fallthru
    _
  // Predicated region
  $region30: #{autoencoder_forward.7} parent=0 // pred_check
    _
  $region31: #{autoencoder_forward.7} parent=0 // pred_check_branch
    %29 = sbr.rel (0) target = $region33
  $region32: #{autoencoder_forward.7} parent=0 // pred_region
    _
  $region33: #{autoencoder_forward.7} parent=0 // pred_fallthru
    _
  // Predicated region
  $region34: #{autoencoder_forward.7} parent=0 // pred_check
    _
  $region35: #{autoencoder_forward.7} parent=0 // pred_check_branch
    %31 = sbr.rel (0) target = $region37
  $region36: #{autoencoder_forward.7} parent=0 // pred_region
    _
  $region37: #{autoencoder_forward.7} parent=0 // pred_fallthru
    _
  %v33 = vld [vmem:[%s0] sm:$0xff]
  %v34 = vld [vmem:[%s0 + $0x8] sm:$0x1f]
  %v35 = vld [vmem:[%s1] sm:$0xf]
  %v36 = vld [vmem:[%s1 + $0x4] sm:$0xf]
  %v37 = vld [vmem:[%s1 + $0x8] sm:$0xf]
  %v38 = vld [vmem:[%s1 + $0xc] sm:$0xf]
  %v39 = vld [vmem:[%s1 + $0x10] sm:$0xf]
  %v40 = vld [vmem:[%s1 + $0x14] sm:$0xf]
  %v41 = vld [vmem:[%s1 + $0x18] sm:$0xf]
  %v42 = vld [vmem:[%s1 + $0x1c] sm:$0xf]
  %v43 = vld [vmem:[%s1 + $0x20] sm:$0xf]
  %v44 = vld [vmem:[%s1 + $0x24] sm:$0xf]
  %v45 = vld [vmem:[%s1 + $0x28] sm:$0xf]
  %v46 = vld [vmem:[%s1 + $0x2c] sm:$0xf]
  %v47 = vld [vmem:[%s1 + $0x30] sm:$0xf]
  %v48 = vld [vmem:[%s1 + $0x34] sm:$0xf]
  %v49 = vld [vmem:[%s1 + $0x38] sm:$0xf]
  %v50 = vld [vmem:[%s1 + $0x3c] sm:$0xf]
  %v51 = vld [vmem:[%s1 + $0x40] sm:$0xf]
  %v52 = vld [vmem:[%s1 + $0x44] sm:$0xf]
  %v53 = vld [vmem:[%s1 + $0x48] sm:$0xf]
  %v54 = vld [vmem:[%s1 + $0x4c] sm:$0xf]
  %v55 = vld [vmem:[%s1 + $0x50] sm:$0xf]
  %v56 = vld [vmem:[%s1 + $0x54] sm:$0xf]
  %v57 = vld [vmem:[%s1 + $0x58] sm:$0xf]
  %v58 = vld [vmem:[%s1 + $0x5c] sm:$0xf]
  %v59 = vld [vmem:[%s1 + $0x60] sm:$0xf]
  %v60 = vld [vmem:[%s1 + $0x64] sm:$0xf]
  %v61 = vld [vmem:[%s1 + $0x68] sm:$0xf]
  %v62 = vld [vmem:[%s1 + $0x6c] sm:$0xf]
  %v63 = vld [vmem:[%s1 + $0x70] sm:$0xf]
  %v64 = vld [vmem:[%s1 + $0x74] sm:$0xf]
  %v65 = vld [vmem:[%s1 + $0x78] sm:$0xf]
  %v66 = vld [vmem:[%s1 + $0x7c] sm:$0xf]
  %v67 = vld [vmem:[%s1 + $0x80] sm:$0xf]
  %v68 = vld [vmem:[%s1 + $0x84] sm:$0xf]
  %v69 = vld [vmem:[%s1 + $0x88] sm:$0xf]
  %v70 = vld [vmem:[%s1 + $0x8c] sm:$0xf]
  %v71 = vld [vmem:[%s1 + $0x90] sm:$0xf]
  %v72 = vld [vmem:[%s1 + $0x94] sm:$0xf]
  %v73 = vld [vmem:[%s1 + $0x98] sm:$0xf]
  %v74 = vld [vmem:[%s1 + $0x9c] sm:$0xf]
  %v75 = vld [vmem:[%s1 + $0xa0] sm:$0xf]
  %v76 = vld [vmem:[%s1 + $0xa4] sm:$0xf]
  %v77 = vld [vmem:[%s1 + $0xa8] sm:$0xf]
  %v78 = vld [vmem:[%s1 + $0xac] sm:$0xf]
  %v79 = vld [vmem:[%s1 + $0xb0] sm:$0xf]
  %v80 = vld [vmem:[%s1 + $0xb4] sm:$0xf]
  %v81 = vld [vmem:[%s1 + $0xb8] sm:$0xf]
  %v82 = vld [vmem:[%s1 + $0xbc] sm:$0xf]
  %v83 = vld [vmem:[%s1 + $0xc0] sm:$0xf]
  %v84 = vld [vmem:[%s1 + $0xc4] sm:$0xf]
  %v85 = vld [vmem:[%s1 + $0xc8] sm:$0xf]
  %v86 = vld [vmem:[%s1 + $0xcc] sm:$0xf]
  %v87 = vld [vmem:[%s1 + $0xd0] sm:$0xf]
  %v88 = vld [vmem:[%s1 + $0xd4] sm:$0xf]
  %v89 = vld [vmem:[%s1 + $0xd8] sm:$0xf]
  %v90 = vld [vmem:[%s1 + $0xdc] sm:$0xf]
  %v91 = vld [vmem:[%s1 + $0xe0] sm:$0xf]
  %v92 = vld [vmem:[%s1 + $0xe4] sm:$0xf]
  %v93 = vld [vmem:[%s1 + $0xe8] sm:$0xf]
  %v94 = vld [vmem:[%s1 + $0xec] sm:$0xf]
  %v95 = vld [vmem:[%s1 + $0xf0] sm:$0xf]
  %v96 = vld [vmem:[%s1 + $0xf4] sm:$0xf]
  %v97 = vld [vmem:[%s1 + $0xf8] sm:$0xf]
  %v98 = vld [vmem:[%s1 + $0xfc] sm:$0xf]
  %v99 = vld [vmem:[%s1 + $0x100] sm:$0xf]
  %v100 = vld [vmem:[%s1 + $0x104] sm:$0xf]
  %v101 = vld [vmem:[%s1 + $0x108] sm:$0xf]
  %v102 = vld [vmem:[%s1 + $0x10c] sm:$0xf]
  %v103 = vld [vmem:[%s1 + $0x110] sm:$0xf]
  %v104 = vld [vmem:[%s1 + $0x114] sm:$0xf]
  %v105 = vld [vmem:[%s1 + $0x118] sm:$0xf]
  %v106 = vld [vmem:[%s1 + $0x11c] sm:$0xf]
  %v107 = vld [vmem:[%s1 + $0x120] sm:$0xf]
  %v108 = vld [vmem:[%s1 + $0x124] sm:$0xf]
  %v109 = vld [vmem:[%s1 + $0x128] sm:$0xf]
  %v110 = vld [vmem:[%s1 + $0x12c] sm:$0xf]
  %v111 = vld [vmem:[%s1 + $0x130] sm:$0xf]
  %v112 = vld [vmem:[%s1 + $0x134] sm:$0xf]
  %v113 = vld [vmem:[%s1 + $0x138] sm:$0xf]
  %v114 = vld [vmem:[%s1 + $0x13c] sm:$0xf]
  %v115 = vld [vmem:[%s1 + $0x140] sm:$0xf]
  %v116 = vld [vmem:[%s1 + $0x144] sm:$0xf]
  %v117 = vld [vmem:[%s1 + $0x148] sm:$0xf]
  %v118 = vld [vmem:[%s1 + $0x14c] sm:$0xf]
  %v119 = vld [vmem:[%s1 + $0x150] sm:$0xf]
  %v120 = vld [vmem:[%s1 + $0x154] sm:$0xf]
  %v121 = vld [vmem:[%s1 + $0x158] sm:$0xf]
  %v122 = vld [vmem:[%s1 + $0x15c] sm:$0xf]
  %v123 = vld [vmem:[%s1 + $0x160] sm:$0xf]
  %v124 = vld [vmem:[%s1 + $0x164] sm:$0xf]
  %v125 = vld [vmem:[%s1 + $0x168] sm:$0xf]
  %v126 = vld [vmem:[%s1 + $0x16c] sm:$0xf]
  %v127 = vld [vmem:[%s1 + $0x170] sm:$0xf]
  %v128 = vld [vmem:[%s1 + $0x174] sm:$0xf]
  %v129 = vld [vmem:[%s1 + $0x178] sm:$0xf]
  %v130 = vld [vmem:[%s1 + $0x17c] sm:$0xf]
  %v131 = vld [vmem:[%s1 + $0x180] sm:$0xf]
  %v132 = vld [vmem:[%s1 + $0x184] sm:$0xf]
  %v133 = vld [vmem:[%s1 + $0x188] sm:$0xf]
  %v134 = vld [vmem:[%s1 + $0x18c] sm:$0xf]
  %v135 = vld [vmem:[%s1 + $0x190] sm:$0xf]
  %v136 = vld [vmem:[%s1 + $0x194] sm:$0xf]
  %v137 = vld [vmem:[%s1 + $0x198] sm:$0xf]
  %v138 = vld [vmem:[%s1 + $0x19c] sm:$0xf]
  %v139 = vld [vmem:[%s1 + $0x1a0] sm:$0xf]
  %v140 = vld [vmem:[%s1 + $0x1a4] sm:$0xf]
  %v141 = vld [vmem:[%s1 + $0x1a8] sm:$0xf]
  %v142 = vld [vmem:[%s1 + $0x1ac] sm:$0xf]
  %v143 = vld [vmem:[%s1 + $0x1b0] sm:$0xf]
  %v144 = vld [vmem:[%s1 + $0x1b4] sm:$0xf]
  %v145 = vld [vmem:[%s1 + $0x1b8] sm:$0xf]
  %v146 = vld [vmem:[%s1 + $0x1bc] sm:$0xf]
  %v147 = vld [vmem:[%s1 + $0x1c0] sm:$0xf]
  %v148 = vld [vmem:[%s1 + $0x1c4] sm:$0xf]
  %v149 = vld [vmem:[%s1 + $0x1c8] sm:$0xf]
  %v150 = vld [vmem:[%s1 + $0x1cc] sm:$0xf]
  %v151 = vld [vmem:[%s1 + $0x1d0] sm:$0xf]
  %v152 = vld [vmem:[%s1 + $0x1d4] sm:$0xf]
  %v153 = vld [vmem:[%s1 + $0x1d8] sm:$0xf]
  %v154 = vld [vmem:[%s1 + $0x1dc] sm:$0xf]
  %v155 = vld [vmem:[%s1 + $0x1e0] sm:$0xf]
  %v156 = vld [vmem:[%s1 + $0x1e4] sm:$0xf]
  %v157 = vld [vmem:[%s1 + $0x1e8] sm:$0xf]
  %v158 = vld [vmem:[%s1 + $0x1ec] sm:$0xf]
  %v159 = vld [vmem:[%s1 + $0x1f0] sm:$0xf]
  %v160 = vld [vmem:[%s1 + $0x1f4] sm:$0xf]
  %v161 = vld [vmem:[%s1 + $0x1f8] sm:$0xf]
  %v162 = vld [vmem:[%s1 + $0x1fc] sm:$0xf]
  %v163 = vld [vmem:[%s1 + $0x200] sm:$0xf]
  %v164 = vld [vmem:[%s1 + $0x204] sm:$0xf]
  %v165 = vld [vmem:[%s1 + $0x208] sm:$0xf]
  %v166 = vld [vmem:[%s1 + $0x20c] sm:$0xf]
  %v167 = vld [vmem:[%s1 + $0x210] sm:$0xf]
  %v168 = vld [vmem:[%s1 + $0x214] sm:$0xf]
  %v169 = vld [vmem:[%s1 + $0x218] sm:$0xf]
  %v170 = vld [vmem:[%s1 + $0x21c] sm:$0xf]
  %v171 = vld [vmem:[%s1 + $0x220] sm:$0xf]
  %v172 = vld [vmem:[%s1 + $0x224] sm:$0xf]
  %v173 = vld [vmem:[%s1 + $0x228] sm:$0xf]
  %v174 = vld [vmem:[%s1 + $0x22c] sm:$0xf]
  %v175 = vld [vmem:[%s1 + $0x230] sm:$0xf]
  %v176 = vld [vmem:[%s1 + $0x234] sm:$0xf]
  %v177 = vld [vmem:[%s1 + $0x238] sm:$0xf]
  %v178 = vld [vmem:[%s1 + $0x23c] sm:$0xf]
  %v179 = vld [vmem:[%s1 + $0x240] sm:$0xf]
  %v180 = vld [vmem:[%s1 + $0x244] sm:$0xf]
  %v181 = vld [vmem:[%s1 + $0x248] sm:$0xf]
  %v182 = vld [vmem:[%s1 + $0x24c] sm:$0xf]
  %v183 = vld [vmem:[%s1 + $0x250] sm:$0xf]
  %v184 = vld [vmem:[%s1 + $0x254] sm:$0xf]
  %v185 = vld [vmem:[%s1 + $0x258] sm:$0xf]
  %v186 = vld [vmem:[%s1 + $0x25c] sm:$0xf]
  %v187 = vld [vmem:[%s1 + $0x260] sm:$0xf]
  %v188 = vld [vmem:[%s1 + $0x264] sm:$0xf]
  %v189 = vld [vmem:[%s1 + $0x268] sm:$0xf]
  %v190 = vld [vmem:[%s1 + $0x26c] sm:$0xf]
  %v191 = vld [vmem:[%s1 + $0x270] sm:$0xf]
  %v192 = vld [vmem:[%s1 + $0x274] sm:$0xf]
  %v193 = vld [vmem:[%s1 + $0x278] sm:$0xf]
  %v194 = vld [vmem:[%s1 + $0x27c] sm:$0xf]
  %v195 = vld [vmem:[%s1 + $0x280] sm:$0xf]
  %v196 = vld [vmem:[%s1 + $0x284] sm:$0xf]
  %v197 = vld [vmem:[%s1 + $0x288] sm:$0xf]
  %v198 = vld [vmem:[%s1 + $0x28c] sm:$0xf]
  %v199 = vld [vmem:[%s1 + $0x290] sm:$0xf]
  %v200 = vld [vmem:[%s1 + $0x294] sm:$0xf]
  %v201 = vld [vmem:[%s1 + $0x298] sm:$0xf]
  %v202 = vld [vmem:[%s1 + $0x29c] sm:$0xf]
  %v203 = vld [vmem:[%s1 + $0x2a0] sm:$0xf]
  %v204 = vld [vmem:[%s1 + $0x2a4] sm:$0xf]
  %v205 = vld [vmem:[%s1 + $0x2a8] sm:$0xf]
  %v206 = vld [vmem:[%s1 + $0x2ac] sm:$0xf]
  %v207 = vld [vmem:[%s1 + $0x2b0] sm:$0xf]
  %v208 = vld [vmem:[%s1 + $0x2b4] sm:$0xf]
  %v209 = vld [vmem:[%s1 + $0x2b8] sm:$0xf]
  %v210 = vld [vmem:[%s1 + $0x2bc] sm:$0xf]
  %v211 = vld [vmem:[%s1 + $0x2c0] sm:$0xf]
  %v212 = vld [vmem:[%s1 + $0x2c4] sm:$0xf]
  %v213 = vld [vmem:[%s1 + $0x2c8] sm:$0xf]
  %v214 = vld [vmem:[%s1 + $0x2cc] sm:$0xf]
  %v215 = vld [vmem:[%s1 + $0x2d0] sm:$0xf]
  %v216 = vld [vmem:[%s1 + $0x2d4] sm:$0xf]
  %v217 = vld [vmem:[%s1 + $0x2d8] sm:$0xf]
  %v218 = vld [vmem:[%s1 + $0x2dc] sm:$0xf]
  %v219 = vld [vmem:[%s1 + $0x2e0] sm:$0xf]
  %v220 = vld [vmem:[%s1 + $0x2e4] sm:$0xf]
  %v221 = vld [vmem:[%s1 + $0x2e8] sm:$0xf]
  %v222 = vld [vmem:[%s1 + $0x2ec] sm:$0xf]
  %v223 = vld [vmem:[%s1 + $0x2f0] sm:$0xf]
  %v224 = vld [vmem:[%s1 + $0x2f4] sm:$0xf]
  %v225 = vld [vmem:[%s1 + $0x2f8] sm:$0xf]
  %v226 = vld [vmem:[%s1 + $0x2fc] sm:$0xf]
  %v227 = vld [vmem:[%s1 + $0x300] sm:$0xf]
  %v228 = vld [vmem:[%s1 + $0x304] sm:$0xf]
  %v229 = vld [vmem:[%s1 + $0x308] sm:$0xf]
  %v230 = vld [vmem:[%s1 + $0x30c] sm:$0xf]
  %v231 = vld [vmem:[%s2] sm:$0x1]
  %v233 = vperm.slane %v231, 0
  %236 = vst [vmem:[#allocation1] ss:$9 sm:$0xff] %v33
  %v237 = vld [vmem:[#allocation1] sm:$0xff]
  %v238 = vld [vmem:[#allocation1 + $0x9] sm:$0xff]
  %v239 = vld [vmem:[#allocation1 + $0x12] sm:$0xff]
  %v240 = vld [vmem:[#allocation1 + $0x1b] sm:$0xff]
  %v241 = vld [vmem:[#allocation1 + $0x24] sm:$0xff]
  %v242 = vld [vmem:[#allocation1 + $0x2d] sm:$0xff]
  %v243 = vld [vmem:[#allocation1 + $0x36] sm:$0xff]
  %v244 = vld [vmem:[#allocation1 + $0x3f] sm:$0xff]
  %246 = vst [vmem:[#allocation1] ss:$9 sm:$0xff] %v34
  %v247 = vld [vmem:[#allocation1] sm:$0xff]
  %v248 = vld [vmem:[#allocation1 + $0x9] sm:$0xff]
  %v249 = vld [vmem:[#allocation1 + $0x12] sm:$0xff]
  %v250 = vld [vmem:[#allocation1 + $0x1b] sm:$0xff]
  %v251 = vld [vmem:[#allocation1 + $0x24] sm:$0xff]
  %v460 = vunpack.c.l.b16 %v35
  %v461 = vunpack.c.l.b16 %v36
  %v462 = vunpack.c.l.b16 %v37
  %v463 = vunpack.c.l.b16 %v38
  %v464 = vunpack.c.l.b16 %v39
  %v465 = vunpack.c.l.b16 %v40
  %v466 = vunpack.c.l.b16 %v41
  %v467 = vunpack.c.l.b16 %v42
  %v468 = vunpack.c.l.b16 %v43
  %v469 = vunpack.c.l.b16 %v44
  %v470 = vunpack.c.l.b16 %v45
  %v471 = vunpack.c.l.b16 %v46
  %v472 = vunpack.c.l.b16 %v47
  %v473 = vunpack.c.l.b16 %v48
  %v474 = vunpack.c.l.b16 %v49
  %v475 = vunpack.c.l.b16 %v50
  %v476 = vunpack.c.l.b16 %v51
  %v477 = vunpack.c.l.b16 %v52
  %v478 = vunpack.c.l.b16 %v53
  %v479 = vunpack.c.l.b16 %v54
  %v480 = vunpack.c.l.b16 %v55
  %v481 = vunpack.c.l.b16 %v56
  %v482 = vunpack.c.l.b16 %v57
  %v483 = vunpack.c.l.b16 %v58
  %v484 = vunpack.c.l.b16 %v59
  %v485 = vunpack.c.l.b16 %v60
  %v486 = vunpack.c.l.b16 %v61
  %v487 = vunpack.c.l.b16 %v62
  %v488 = vunpack.c.l.b16 %v63
  %v489 = vunpack.c.l.b16 %v64
  %v490 = vunpack.c.l.b16 %v65
  %v491 = vunpack.c.l.b16 %v66
  %v492 = vunpack.c.l.b16 %v67
  %v493 = vunpack.c.l.b16 %v68
  %v494 = vunpack.c.l.b16 %v69
  %v495 = vunpack.c.l.b16 %v70
  %v496 = vunpack.c.l.b16 %v71
  %v497 = vunpack.c.l.b16 %v72
  %v498 = vunpack.c.l.b16 %v73
  %v499 = vunpack.c.l.b16 %v74
  %v500 = vunpack.c.l.b16 %v75
  %v501 = vunpack.c.l.b16 %v76
  %v502 = vunpack.c.l.b16 %v77
  %v503 = vunpack.c.l.b16 %v78
  %v504 = vunpack.c.l.b16 %v79
  %v505 = vunpack.c.l.b16 %v80
  %v506 = vunpack.c.l.b16 %v81
  %v507 = vunpack.c.l.b16 %v82
  %v508 = vunpack.c.l.b16 %v83
  %v509 = vunpack.c.l.b16 %v84
  %v510 = vunpack.c.l.b16 %v85
  %v511 = vunpack.c.l.b16 %v86
  %v512 = vunpack.c.l.b16 %v87
  %v513 = vunpack.c.l.b16 %v88
  %v514 = vunpack.c.l.b16 %v89
  %v515 = vunpack.c.l.b16 %v90
  %v516 = vunpack.c.l.b16 %v91
  %v517 = vunpack.c.l.b16 %v92
  %v518 = vunpack.c.l.b16 %v93
  %v519 = vunpack.c.l.b16 %v94
  %v520 = vunpack.c.l.b16 %v95
  %v521 = vunpack.c.l.b16 %v96
  %v522 = vunpack.c.l.b16 %v97
  %v523 = vunpack.c.l.b16 %v98
  %v524 = vunpack.c.l.b16 %v99
  %v525 = vunpack.c.l.b16 %v100
  %v526 = vunpack.c.l.b16 %v101
  %v527 = vunpack.c.l.b16 %v102
  %v528 = vunpack.c.l.b16 %v103
  %v529 = vunpack.c.l.b16 %v104
  %v530 = vunpack.c.l.b16 %v105
  %v531 = vunpack.c.l.b16 %v106
  %v532 = vunpack.c.l.b16 %v107
  %v533 = vunpack.c.l.b16 %v108
  %v534 = vunpack.c.l.b16 %v109
  %v535 = vunpack.c.l.b16 %v110
  %v536 = vunpack.c.l.b16 %v111
  %v537 = vunpack.c.l.b16 %v112
  %v538 = vunpack.c.l.b16 %v113
  %v539 = vunpack.c.l.b16 %v114
  %v540 = vunpack.c.l.b16 %v115
  %v541 = vunpack.c.l.b16 %v116
  %v542 = vunpack.c.l.b16 %v117
  %v543 = vunpack.c.l.b16 %v118
  %v544 = vunpack.c.l.b16 %v119
  %v545 = vunpack.c.l.b16 %v120
  %v546 = vunpack.c.l.b16 %v121
  %v547 = vunpack.c.l.b16 %v122
  %v548 = vunpack.c.l.b16 %v123
  %v549 = vunpack.c.l.b16 %v124
  %v550 = vunpack.c.l.b16 %v125
  %v551 = vunpack.c.l.b16 %v126
  %v552 = vunpack.c.l.b16 %v127
  %v553 = vunpack.c.l.b16 %v128
  %v554 = vunpack.c.l.b16 %v129
  %v555 = vunpack.c.l.b16 %v130
  %v556 = vunpack.c.l.b16 %v131
  %v557 = vunpack.c.l.b16 %v132
  %v558 = vunpack.c.l.b16 %v133
  %v559 = vunpack.c.l.b16 %v134
  %v560 = vunpack.c.l.b16 %v135
  %v561 = vunpack.c.l.b16 %v136
  %v562 = vunpack.c.l.b16 %v137
  %v563 = vunpack.c.l.b16 %v138
  %v564 = vunpack.c.l.b16 %v139
  %v565 = vunpack.c.l.b16 %v140
  %v566 = vunpack.c.l.b16 %v141
  %v567 = vunpack.c.l.b16 %v142
  %v568 = vunpack.c.l.b16 %v143
  %v569 = vunpack.c.l.b16 %v144
  %v570 = vunpack.c.l.b16 %v145
  %v571 = vunpack.c.l.b16 %v146
  %v572 = vunpack.c.l.b16 %v147
  %v573 = vunpack.c.l.b16 %v148
  %v574 = vunpack.c.l.b16 %v149
  %v575 = vunpack.c.l.b16 %v150
  %v576 = vunpack.c.l.b16 %v151
  %v577 = vunpack.c.l.b16 %v152
  %v578 = vunpack.c.l.b16 %v153
  %v579 = vunpack.c.l.b16 %v154
  %v580 = vunpack.c.l.b16 %v155
  %v581 = vunpack.c.l.b16 %v156
  %v582 = vunpack.c.l.b16 %v157
  %v583 = vunpack.c.l.b16 %v158
  %v584 = vunpack.c.l.b16 %v159
  %v585 = vunpack.c.l.b16 %v160
  %v586 = vunpack.c.l.b16 %v161
  %v587 = vunpack.c.l.b16 %v162
  %v588 = vunpack.c.l.b16 %v163
  %v589 = vunpack.c.l.b16 %v164
  %v590 = vunpack.c.l.b16 %v165
  %v591 = vunpack.c.l.b16 %v166
  %v592 = vunpack.c.l.b16 %v167
  %v593 = vunpack.c.l.b16 %v168
  %v594 = vunpack.c.l.b16 %v169
  %v595 = vunpack.c.l.b16 %v170
  %v596 = vunpack.c.l.b16 %v171
  %v597 = vunpack.c.l.b16 %v172
  %v598 = vunpack.c.l.b16 %v173
  %v599 = vunpack.c.l.b16 %v174
  %v600 = vunpack.c.l.b16 %v175
  %v601 = vunpack.c.l.b16 %v176
  %v602 = vunpack.c.l.b16 %v177
  %v603 = vunpack.c.l.b16 %v178
  %v604 = vunpack.c.l.b16 %v179
  %v605 = vunpack.c.l.b16 %v180
  %v606 = vunpack.c.l.b16 %v181
  %v607 = vunpack.c.l.b16 %v182
  %v608 = vunpack.c.l.b16 %v183
  %v609 = vunpack.c.l.b16 %v184
  %v610 = vunpack.c.l.b16 %v185
  %v611 = vunpack.c.l.b16 %v186
  %v612 = vunpack.c.l.b16 %v187
  %v613 = vunpack.c.l.b16 %v188
  %v614 = vunpack.c.l.b16 %v189
  %v615 = vunpack.c.l.b16 %v190
  %v616 = vunpack.c.l.b16 %v191
  %v617 = vunpack.c.l.b16 %v192
  %v618 = vunpack.c.l.b16 %v193
  %v619 = vunpack.c.l.b16 %v194
  %v620 = vunpack.c.l.b16 %v195
  %v621 = vunpack.c.l.b16 %v196
  %v622 = vunpack.c.l.b16 %v197
  %v623 = vunpack.c.l.b16 %v198
  %v624 = vunpack.c.l.b16 %v199
  %v625 = vunpack.c.l.b16 %v200
  %v626 = vunpack.c.l.b16 %v201
  %v627 = vunpack.c.l.b16 %v202
  %v628 = vunpack.c.l.b16 %v203
  %v629 = vunpack.c.l.b16 %v204
  %v630 = vunpack.c.l.b16 %v205
  %v631 = vunpack.c.l.b16 %v206
  %v632 = vunpack.c.l.b16 %v207
  %v633 = vunpack.c.l.b16 %v208
  %v634 = vunpack.c.l.b16 %v209
  %v635 = vunpack.c.l.b16 %v210
  %v636 = vunpack.c.l.b16 %v211
  %v637 = vunpack.c.l.b16 %v212
  %v638 = vunpack.c.l.b16 %v213
  %v639 = vunpack.c.l.b16 %v214
  %v640 = vunpack.c.l.b16 %v215
  %v641 = vunpack.c.l.b16 %v216
  %v642 = vunpack.c.l.b16 %v217
  %v643 = vunpack.c.l.b16 %v218
  %v644 = vunpack.c.l.b16 %v219
  %v645 = vunpack.c.l.b16 %v220
  %v646 = vunpack.c.l.b16 %v221
  %v647 = vunpack.c.l.b16 %v222
  %v648 = vunpack.c.l.b16 %v223
  %v649 = vunpack.c.l.b16 %v224
  %v650 = vunpack.c.l.b16 %v225
  %v651 = vunpack.c.l.b16 %v226
  %v652 = vunpack.c.l.b16 %v227
  %v653 = vunpack.c.l.b16 %v228
  %v654 = vunpack.c.l.b16 %v229
  %v655 = vunpack.c.l.b16 %v230
  %v656 = vpack.c.b16 %v461, %v460
  %v657 = vpack.c.b16 %v463, %v462
  %v658 = vpack.c.b16 %v465, %v464
  %v659 = vpack.c.b16 %v467, %v466
  %v660 = vpack.c.b16 %v469, %v468
  %v661 = vpack.c.b16 %v471, %v470
  %v662 = vpack.c.b16 %v473, %v472
  %v663 = vpack.c.b16 %v475, %v474
  %v664 = vpack.c.b16 %v477, %v476
  %v665 = vpack.c.b16 %v479, %v478
  %v666 = vpack.c.b16 %v481, %v480
  %v667 = vpack.c.b16 %v483, %v482
  %v668 = vpack.c.b16 %v485, %v484
  %v669 = vpack.c.b16 %v487, %v486
  %v670 = vpack.c.b16 %v489, %v488
  %v671 = vpack.c.b16 %v491, %v490
  %v672 = vpack.c.b16 %v493, %v492
  %v673 = vpack.c.b16 %v495, %v494
  %v674 = vpack.c.b16 %v497, %v496
  %v675 = vpack.c.b16 %v499, %v498
  %v676 = vpack.c.b16 %v501, %v500
  %v677 = vpack.c.b16 %v503, %v502
  %v678 = vpack.c.b16 %v505, %v504
  %v679 = vpack.c.b16 %v507, %v506
  %v680 = vpack.c.b16 %v509, %v508
  %v681 = vpack.c.b16 %v511, %v510
  %v682 = vpack.c.b16 %v513, %v512
  %v683 = vpack.c.b16 %v515, %v514
  %v684 = vpack.c.b16 %v517, %v516
  %v685 = vpack.c.b16 %v519, %v518
  %v686 = vpack.c.b16 %v521, %v520
  %v687 = vpack.c.b16 %v523, %v522
  %v688 = vpack.c.b16 %v525, %v524
  %v689 = vpack.c.b16 %v527, %v526
  %v690 = vpack.c.b16 %v529, %v528
  %v691 = vpack.c.b16 %v531, %v530
  %v692 = vpack.c.b16 %v533, %v532
  %v693 = vpack.c.b16 %v535, %v534
  %v694 = vpack.c.b16 %v537, %v536
  %v695 = vpack.c.b16 %v539, %v538
  %v696 = vpack.c.b16 %v541, %v540
  %v697 = vpack.c.b16 %v543, %v542
  %v698 = vpack.c.b16 %v545, %v544
  %v699 = vpack.c.b16 %v547, %v546
  %v700 = vpack.c.b16 %v549, %v548
  %v701 = vpack.c.b16 %v551, %v550
  %v702 = vpack.c.b16 %v553, %v552
  %v703 = vpack.c.b16 %v555, %v554
  %v704 = vpack.c.b16 %v557, %v556
  %v705 = vpack.c.b16 %v559, %v558
  %v706 = vpack.c.b16 %v561, %v560
  %v707 = vpack.c.b16 %v563, %v562
  %v708 = vpack.c.b16 %v565, %v564
  %v709 = vpack.c.b16 %v567, %v566
  %v710 = vpack.c.b16 %v569, %v568
  %v711 = vpack.c.b16 %v571, %v570
  %v712 = vpack.c.b16 %v573, %v572
  %v713 = vpack.c.b16 %v575, %v574
  %v714 = vpack.c.b16 %v577, %v576
  %v715 = vpack.c.b16 %v579, %v578
  %v716 = vpack.c.b16 %v581, %v580
  %v717 = vpack.c.b16 %v583, %v582
  %v718 = vpack.c.b16 %v585, %v584
  %v719 = vpack.c.b16 %v587, %v586
  %v720 = vpack.c.b16 %v589, %v588
  %v721 = vpack.c.b16 %v591, %v590
  %v722 = vpack.c.b16 %v593, %v592
  %v723 = vpack.c.b16 %v595, %v594
  %v724 = vpack.c.b16 %v597, %v596
  %v725 = vpack.c.b16 %v599, %v598
  %v726 = vpack.c.b16 %v601, %v600
  %v727 = vpack.c.b16 %v603, %v602
  %v728 = vpack.c.b16 %v605, %v604
  %v729 = vpack.c.b16 %v607, %v606
  %v730 = vpack.c.b16 %v609, %v608
  %v731 = vpack.c.b16 %v611, %v610
  %v732 = vpack.c.b16 %v613, %v612
  %v733 = vpack.c.b16 %v615, %v614
  %v734 = vpack.c.b16 %v617, %v616
  %v735 = vpack.c.b16 %v619, %v618
  %v736 = vpack.c.b16 %v621, %v620
  %v737 = vpack.c.b16 %v623, %v622
  %v738 = vpack.c.b16 %v625, %v624
  %v739 = vpack.c.b16 %v627, %v626
  %v740 = vpack.c.b16 %v629, %v628
  %v741 = vpack.c.b16 %v631, %v630
  %v742 = vpack.c.b16 %v633, %v632
  %v743 = vpack.c.b16 %v635, %v634
  %v744 = vpack.c.b16 %v637, %v636
  %v745 = vpack.c.b16 %v639, %v638
  %v746 = vpack.c.b16 %v641, %v640
  %v747 = vpack.c.b16 %v643, %v642
  %v748 = vpack.c.b16 %v645, %v644
  %v749 = vpack.c.b16 %v647, %v646
  %v750 = vpack.c.b16 %v649, %v648
  %v751 = vpack.c.b16 %v651, %v650
  %v752 = vpack.c.b16 %v653, %v652
  %v753 = vpack.c.b16 %v655, %v654
  %vm852 = vcmask 261120
  %v853 = vsel %vm852, %v251, 0
  %855 = vmatpush.bf16.msra.mxu0 %v663
  %856 = vmatpush.bf16.msra.mxu0 %v662
  %857 = vmatpush.bf16.msra.mxu0 %v661
  %858 = vmatpush.bf16.msra.mxu0 %v660
  %859 = vmatpush.bf16.msra.mxu0 %v659
  %860 = vmatpush.bf16.msra.mxu0 %v658
  %861 = vmatpush.bf16.msra.mxu0 %v657
  %862 = vmatpush.bf16.msra.mxu0 %v656
  %863 = vmatmul.bf16.gmra.mxu0 %v237
  %v864 = vpop.f32.mrf.mxu0
  %v865 = vadd.f32 %v233, %v864
  %v866 = vpop.f32.mrf.mxu0
  %867 = vdwg.mxu0
  %868 = vmatpush.bf16.msra.mxu0 %v671
  %869 = vmatpush.bf16.msra.mxu0 %v670
  %870 = vmatpush.bf16.msra.mxu0 %v669
  %871 = vmatpush.bf16.msra.mxu0 %v668
  %872 = vmatpush.bf16.msra.mxu0 %v667
  %873 = vmatpush.bf16.msra.mxu0 %v666
  %874 = vmatpush.bf16.msra.mxu0 %v665
  %875 = vmatpush.bf16.msra.mxu0 %v664
  %876 = vmatmul.bf16.gmra.mxu0 %v238
  %v877 = vpop.f32.mrf.mxu0
  %v878 = vadd.f32 %v865, %v877
  %v879 = vpop.f32.mrf.mxu0
  %880 = vdwg.mxu0
  %881 = vmatpush.bf16.msra.mxu0 %v679
  %882 = vmatpush.bf16.msra.mxu0 %v678
  %883 = vmatpush.bf16.msra.mxu0 %v677
  %884 = vmatpush.bf16.msra.mxu0 %v676
  %885 = vmatpush.bf16.msra.mxu0 %v675
  %886 = vmatpush.bf16.msra.mxu0 %v674
  %887 = vmatpush.bf16.msra.mxu0 %v673
  %888 = vmatpush.bf16.msra.mxu0 %v672
  %889 = vmatmul.bf16.gmra.mxu0 %v239
  %v890 = vpop.f32.mrf.mxu0
  %v891 = vadd.f32 %v878, %v890
  %v892 = vpop.f32.mrf.mxu0
  %893 = vdwg.mxu0
  %894 = vmatpush.bf16.msra.mxu0 %v687
  %895 = vmatpush.bf16.msra.mxu0 %v686
  %896 = vmatpush.bf16.msra.mxu0 %v685
  %897 = vmatpush.bf16.msra.mxu0 %v684
  %898 = vmatpush.bf16.msra.mxu0 %v683
  %899 = vmatpush.bf16.msra.mxu0 %v682
  %900 = vmatpush.bf16.msra.mxu0 %v681
  %901 = vmatpush.bf16.msra.mxu0 %v680
  %902 = vmatmul.bf16.gmra.mxu0 %v240
  %v903 = vpop.f32.mrf.mxu0
  %v904 = vadd.f32 %v891, %v903
  %v905 = vpop.f32.mrf.mxu0
  %906 = vdwg.mxu0
  %907 = vmatpush.bf16.msra.mxu0 %v695
  %908 = vmatpush.bf16.msra.mxu0 %v694
  %909 = vmatpush.bf16.msra.mxu0 %v693
  %910 = vmatpush.bf16.msra.mxu0 %v692
  %911 = vmatpush.bf16.msra.mxu0 %v691
  %912 = vmatpush.bf16.msra.mxu0 %v690
  %913 = vmatpush.bf16.msra.mxu0 %v689
  %914 = vmatpush.bf16.msra.mxu0 %v688
  %915 = vmatmul.bf16.gmra.mxu0 %v241
  %v916 = vpop.f32.mrf.mxu0
  %v917 = vadd.f32 %v904, %v916
  %v918 = vpop.f32.mrf.mxu0
  %919 = vdwg.mxu0
  %920 = vmatpush.bf16.msra.mxu0 %v703
  %921 = vmatpush.bf16.msra.mxu0 %v702
  %922 = vmatpush.bf16.msra.mxu0 %v701
  %923 = vmatpush.bf16.msra.mxu0 %v700
  %924 = vmatpush.bf16.msra.mxu0 %v699
  %925 = vmatpush.bf16.msra.mxu0 %v698
  %926 = vmatpush.bf16.msra.mxu0 %v697
  %927 = vmatpush.bf16.msra.mxu0 %v696
  %928 = vmatmul.bf16.gmra.mxu0 %v242
  %v929 = vpop.f32.mrf.mxu0
  %v930 = vadd.f32 %v917, %v929
  %v931 = vpop.f32.mrf.mxu0
  %932 = vdwg.mxu0
  %933 = vmatpush.bf16.msra.mxu0 %v711
  %934 = vmatpush.bf16.msra.mxu0 %v710
  %935 = vmatpush.bf16.msra.mxu0 %v709
  %936 = vmatpush.bf16.msra.mxu0 %v708
  %937 = vmatpush.bf16.msra.mxu0 %v707
  %938 = vmatpush.bf16.msra.mxu0 %v706
  %939 = vmatpush.bf16.msra.mxu0 %v705
  %940 = vmatpush.bf16.msra.mxu0 %v704
  %941 = vmatmul.bf16.gmra.mxu0 %v243
  %v942 = vpop.f32.mrf.mxu0
  %v943 = vadd.f32 %v930, %v942
  %v944 = vpop.f32.mrf.mxu0
  %945 = vdwg.mxu0
  %946 = vmatpush.bf16.msra.mxu0 %v719
  %947 = vmatpush.bf16.msra.mxu0 %v718
  %948 = vmatpush.bf16.msra.mxu0 %v717
  %949 = vmatpush.bf16.msra.mxu0 %v716
  %950 = vmatpush.bf16.msra.mxu0 %v715
  %951 = vmatpush.bf16.msra.mxu0 %v714
  %952 = vmatpush.bf16.msra.mxu0 %v713
  %953 = vmatpush.bf16.msra.mxu0 %v712
  %954 = vmatmul.bf16.gmra.mxu0 %v244
  %v955 = vpop.f32.mrf.mxu0
  %v956 = vadd.f32 %v943, %v955
  %v957 = vpop.f32.mrf.mxu0
  %958 = vdwg.mxu0
  %959 = vmatpush.bf16.msra.mxu0 %v727
  %960 = vmatpush.bf16.msra.mxu0 %v726
  %961 = vmatpush.bf16.msra.mxu0 %v725
  %962 = vmatpush.bf16.msra.mxu0 %v724
  %963 = vmatpush.bf16.msra.mxu0 %v723
  %964 = vmatpush.bf16.msra.mxu0 %v722
  %965 = vmatpush.bf16.msra.mxu0 %v721
  %966 = vmatpush.bf16.msra.mxu0 %v720
  %967 = vmatmul.bf16.gmra.mxu0 %v247
  %v968 = vpop.f32.mrf.mxu0
  %v969 = vadd.f32 %v956, %v968
  %v970 = vpop.f32.mrf.mxu0
  %971 = vdwg.mxu0
  %972 = vmatpush.bf16.msra.mxu0 %v735
  %973 = vmatpush.bf16.msra.mxu0 %v734
  %974 = vmatpush.bf16.msra.mxu0 %v733
  %975 = vmatpush.bf16.msra.mxu0 %v732
  %976 = vmatpush.bf16.msra.mxu0 %v731
  %977 = vmatpush.bf16.msra.mxu0 %v730
  %978 = vmatpush.bf16.msra.mxu0 %v729
  %979 = vmatpush.bf16.msra.mxu0 %v728
  %980 = vmatmul.bf16.gmra.mxu0 %v248
  %v981 = vpop.f32.mrf.mxu0
  %v982 = vadd.f32 %v969, %v981
  %v983 = vpop.f32.mrf.mxu0
  %984 = vdwg.mxu0
  %985 = vmatpush.bf16.msra.mxu0 %v743
  %986 = vmatpush.bf16.msra.mxu0 %v742
  %987 = vmatpush.bf16.msra.mxu0 %v741
  %988 = vmatpush.bf16.msra.mxu0 %v740
  %989 = vmatpush.bf16.msra.mxu0 %v739
  %990 = vmatpush.bf16.msra.mxu0 %v738
  %991 = vmatpush.bf16.msra.mxu0 %v737
  %992 = vmatpush.bf16.msra.mxu0 %v736
  %993 = vmatmul.bf16.gmra.mxu0 %v249
  %v994 = vpop.f32.mrf.mxu0
  %v995 = vadd.f32 %v982, %v994
  %v996 = vpop.f32.mrf.mxu0
  %997 = vdwg.mxu0
  %998 = vmatpush.bf16.msra.mxu0 %v751
  %999 = vmatpush.bf16.msra.mxu0 %v750
  %1000 = vmatpush.bf16.msra.mxu0 %v749
  %1001 = vmatpush.bf16.msra.mxu0 %v748
  %1002 = vmatpush.bf16.msra.mxu0 %v747
  %1003 = vmatpush.bf16.msra.mxu0 %v746
  %1004 = vmatpush.bf16.msra.mxu0 %v745
  %1005 = vmatpush.bf16.msra.mxu0 %v744
  %1006 = vmatmul.bf16.gmra.mxu0 %v250
  %v1007 = vpop.f32.mrf.mxu0
  %v1008 = vadd.f32 %v995, %v1007
  %v1009 = vpop.f32.mrf.mxu0
  %1010 = vdwg.mxu0
  %1011 = vmatpush.bf16.msra.mxu0 0
  %1012 = vmatpush.bf16.msra.mxu0 0
  %1013 = vmatpush.bf16.msra.mxu0 0
  %1014 = vmatpush.bf16.msra.mxu0 0
  %1015 = vmatpush.bf16.msra.mxu0 0
  %1016 = vmatpush.bf16.msra.mxu0 0
  %1017 = vmatpush.bf16.msra.mxu0 %v753
  %1018 = vmatpush.bf16.msra.mxu0 %v752
  %1019 = vmatmul.bf16.gmra.mxu0 %v853
  %v1020 = vpop.f32.mrf.mxu0
  %v1021 = vadd.f32 %v1008, %v1020
  %v1022 = vpop.f32.mrf.mxu0
  %1023 = vdwg.mxu0
  %v1024 = vmax.f32 %v1021, 0.0
  %v1025 = vpack.c.bf16 %v1024, %v1024
  %v1026 = vld [vmem:[%s3] sm:$0xf]
  %v1027 = vld [vmem:[%s3 + $0x4] sm:$0xf]
  %v1028 = vld [vmem:[%s3 + $0x8] sm:$0xf]
  %v1029 = vld [vmem:[%s3 + $0xc] sm:$0xf]
  %v1030 = vld [vmem:[%s4] sm:$0x1]
  %v1032 = vperm.slane %v1030, 0
  %v1038 = vunpack.c.l.b16 %v1026
  %v1039 = vunpack.c.l.b16 %v1027
  %v1040 = vunpack.c.l.b16 %v1028
  %v1041 = vunpack.c.l.b16 %v1029
  %v1042 = vpack.c.b16 %v1039, %v1038
  %v1043 = vpack.c.b16 %v1041, %v1040
  %v1047 = vsel %vm852, %v1025, 0
  %1049 = vmatpush.bf16.msra.mxu0 0
  %1050 = vmatpush.bf16.msra.mxu0 0
  %1051 = vmatpush.bf16.msra.mxu0 0
  %1052 = vmatpush.bf16.msra.mxu0 0
  %1053 = vmatpush.bf16.msra.mxu0 0
  %1054 = vmatpush.bf16.msra.mxu0 0
  %1055 = vmatpush.bf16.msra.mxu0 %v1043
  %1056 = vmatpush.bf16.msra.mxu0 %v1042
  %1057 = vmatmul.bf16.gmra.mxu0 %v1047
  %v1058 = vpop.f32.mrf.mxu0
  %v1059 = vadd.f32 %v1032, %v1058
  %v1060 = vpop.f32.mrf.mxu0
  %1061 = vdwg.mxu0
  %v1062 = vpack.c.bf16 %v1059, %v1059
  %v1063 = vld [vmem:[%s5] sm:$0xf]
  %v1064 = vld [vmem:[%s6] sm:$0x1]
  %v1066 = vperm.slane %v1064, 0
  %vm1068 = vcmask 64512
  %v1070 = vsel %vm1068, %v1062, 0
  %vm1072 = vcmask 1043456
  %v1074 = vsel %vm1072, %v1063, 0
  %1076 = vmatpush.bf16.msra.mxu0 0
  %1077 = vmatpush.bf16.msra.mxu0 0
  %1078 = vmatpush.bf16.msra.mxu0 0
  %1079 = vmatpush.bf16.msra.mxu0 0
  %1080 = vmatpush.bf16.msra.mxu0 0
  %1081 = vmatpush.bf16.msra.mxu0 0
  %1082 = vmatpush.bf16.msra.mxu0 0
  %1083 = vmatpush.bf16.msra.mxu0 %v1074
  %1084 = vmatmul.bf16.gmra.mxu0 %v1070
  %v1085 = vpop.f32.mrf.mxu0
  %v1086 = vadd.f32 %v1066, %v1085
  %v1087 = vpop.f32.mrf.mxu0
  %1088 = vdwg.mxu0
  %v1089 = vmax.f32 %v1086, 0.0
  %v1090 = vpack.c.bf16 %v1089, %v1089
  %v1091 = vld [vmem:[%s7] sm:$0xff]
  %v1092 = vld [vmem:[%s7 + $0x8] sm:$0xff]
  %v1093 = vld [vmem:[%s7 + $0x10] sm:$0xff]
  %v1094 = vld [vmem:[%s7 + $0x18] sm:$0xff]
  %v1095 = vld [vmem:[%s7 + $0x20] sm:$0xff]
  %v1096 = vld [vmem:[%s7 + $0x28] sm:$0xff]
  %v1097 = vld [vmem:[%s7 + $0x30] sm:$0xf]
  %v1098 = vld [vmem:[%s7 + $0x34] sm:$0xff]
  %v1099 = vld [vmem:[%s7 + $0x3c] sm:$0xff]
  %v1100 = vld [vmem:[%s7 + $0x44] sm:$0xff]
  %v1101 = vld [vmem:[%s7 + $0x4c] sm:$0xff]
  %v1102 = vld [vmem:[%s7 + $0x54] sm:$0xff]
  %v1103 = vld [vmem:[%s7 + $0x5c] sm:$0xff]
  %v1104 = vld [vmem:[%s7 + $0x64] sm:$0xf]
  %v1105 = vld [vmem:[%s7 + $0x68] sm:$0xff]
  %v1106 = vld [vmem:[%s7 + $0x70] sm:$0xff]
  %v1107 = vld [vmem:[%s7 + $0x78] sm:$0xff]
  %v1108 = vld [vmem:[%s7 + $0x80] sm:$0xff]
  %v1109 = vld [vmem:[%s7 + $0x88] sm:$0xff]
  %v1110 = vld [vmem:[%s7 + $0x90] sm:$0xff]
  %v1111 = vld [vmem:[%s7 + $0x98] sm:$0xf]
  %v1112 = vld [vmem:[%s7 + $0x9c] sm:$0xff]
  %v1113 = vld [vmem:[%s7 + $0xa4] sm:$0xff]
  %v1114 = vld [vmem:[%s7 + $0xac] sm:$0xff]
  %v1115 = vld [vmem:[%s7 + $0xb4] sm:$0xff]
  %v1116 = vld [vmem:[%s7 + $0xbc] sm:$0xff]
  %v1117 = vld [vmem:[%s7 + $0xc4] sm:$0xff]
  %v1118 = vld [vmem:[%s7 + $0xcc] sm:$0xf]
  %v1119 = vld [vmem:[%s8] sm:$0xff]
  %v1120 = vld [vmem:[%s8 + $0x8] sm:$0x1f]
  %v1123 = vperm.slane %v1119, 0
  %v1124 = vperm.slane %v1119, 1
  %v1125 = vperm.slane %v1119, 2
  %v1126 = vperm.slane %v1119, 3
  %v1127 = vperm.slane %v1119, 4
  %v1128 = vperm.slane %v1119, 5
  %v1129 = vperm.slane %v1119, 6
  %v1130 = vperm.slane %v1119, 7
  %v1131 = vperm.slane %v1120, 0
  %v1132 = vperm.slane %v1120, 1
  %v1133 = vperm.slane %v1120, 2
  %v1134 = vperm.slane %v1120, 3
  %v1135 = vperm.slane %v1120, 4
  %v1177 = vunpack.c.l.b16 %v1091
  %v1178 = vunpack.c.h.b16 %v1091
  %v1179 = vunpack.c.l.b16 %v1092
  %v1180 = vunpack.c.h.b16 %v1092
  %v1181 = vunpack.c.l.b16 %v1093
  %v1182 = vunpack.c.h.b16 %v1093
  %v1183 = vunpack.c.l.b16 %v1094
  %v1184 = vunpack.c.h.b16 %v1094
  %v1185 = vunpack.c.l.b16 %v1095
  %v1186 = vunpack.c.h.b16 %v1095
  %v1187 = vunpack.c.l.b16 %v1096
  %v1188 = vunpack.c.h.b16 %v1096
  %v1189 = vunpack.c.l.b16 %v1097
  %v1190 = vunpack.c.l.b16 %v1098
  %v1191 = vunpack.c.h.b16 %v1098
  %v1192 = vunpack.c.l.b16 %v1099
  %v1193 = vunpack.c.h.b16 %v1099
  %v1194 = vunpack.c.l.b16 %v1100
  %v1195 = vunpack.c.h.b16 %v1100
  %v1196 = vunpack.c.l.b16 %v1101
  %v1197 = vunpack.c.h.b16 %v1101
  %v1198 = vunpack.c.l.b16 %v1102
  %v1199 = vunpack.c.h.b16 %v1102
  %v1200 = vunpack.c.l.b16 %v1103
  %v1201 = vunpack.c.h.b16 %v1103
  %v1202 = vunpack.c.l.b16 %v1104
  %v1203 = vunpack.c.l.b16 %v1105
  %v1204 = vunpack.c.h.b16 %v1105
  %v1205 = vunpack.c.l.b16 %v1106
  %v1206 = vunpack.c.h.b16 %v1106
  %v1207 = vunpack.c.l.b16 %v1107
  %v1208 = vunpack.c.h.b16 %v1107
  %v1209 = vunpack.c.l.b16 %v1108
  %v1210 = vunpack.c.h.b16 %v1108
  %v1211 = vunpack.c.l.b16 %v1109
  %v1212 = vunpack.c.h.b16 %v1109
  %v1213 = vunpack.c.l.b16 %v1110
  %v1214 = vunpack.c.h.b16 %v1110
  %v1215 = vunpack.c.l.b16 %v1111
  %v1216 = vunpack.c.l.b16 %v1112
  %v1217 = vunpack.c.h.b16 %v1112
  %v1218 = vunpack.c.l.b16 %v1113
  %v1219 = vunpack.c.h.b16 %v1113
  %v1220 = vunpack.c.l.b16 %v1114
  %v1221 = vunpack.c.h.b16 %v1114
  %v1222 = vunpack.c.l.b16 %v1115
  %v1223 = vunpack.c.h.b16 %v1115
  %v1224 = vunpack.c.l.b16 %v1116
  %v1225 = vunpack.c.h.b16 %v1116
  %v1226 = vunpack.c.l.b16 %v1117
  %v1227 = vunpack.c.h.b16 %v1117
  %v1228 = vunpack.c.l.b16 %v1118
  %v1229 = vpack.c.b16 %v1190, %v1177
  %v1230 = vpack.c.b16 %v1191, %v1178
  %v1231 = vpack.c.b16 %v1192, %v1179
  %v1232 = vpack.c.b16 %v1193, %v1180
  %v1233 = vpack.c.b16 %v1194, %v1181
  %v1234 = vpack.c.b16 %v1195, %v1182
  %v1235 = vpack.c.b16 %v1196, %v1183
  %v1236 = vpack.c.b16 %v1197, %v1184
  %v1237 = vpack.c.b16 %v1198, %v1185
  %v1238 = vpack.c.b16 %v1199, %v1186
  %v1239 = vpack.c.b16 %v1200, %v1187
  %v1240 = vpack.c.b16 %v1201, %v1188
  %v1241 = vpack.c.b16 %v1202, %v1189
  %v1242 = vpack.c.b16 %v1216, %v1203
  %v1243 = vpack.c.b16 %v1217, %v1204
  %v1244 = vpack.c.b16 %v1218, %v1205
  %v1245 = vpack.c.b16 %v1219, %v1206
  %v1246 = vpack.c.b16 %v1220, %v1207
  %v1247 = vpack.c.b16 %v1221, %v1208
  %v1248 = vpack.c.b16 %v1222, %v1209
  %v1249 = vpack.c.b16 %v1223, %v1210
  %v1250 = vpack.c.b16 %v1224, %v1211
  %v1251 = vpack.c.b16 %v1225, %v1212
  %v1252 = vpack.c.b16 %v1226, %v1213
  %v1253 = vpack.c.b16 %v1227, %v1214
  %v1254 = vpack.c.b16 %v1228, %v1215
  %v1282 = vsel %vm852, %v1090, 0
  %1284 = vmatpush.bf16.msra.mxu0 0
  %1285 = vmatpush.bf16.msra.mxu0 0
  %1286 = vmatpush.bf16.msra.mxu0 0
  %1287 = vmatpush.bf16.msra.mxu0 0
  %1288 = vmatpush.bf16.msra.mxu0 0
  %1289 = vmatpush.bf16.msra.mxu0 0
  %1290 = vmatpush.bf16.msra.mxu0 %v1242
  %1291 = vmatpush.bf16.msra.mxu0 %v1229
  %1292 = vmatmul.bf16.gmra.mxu0 %v1282
  %v1293 = vpop.f32.mrf.mxu0
  %v1294 = vadd.f32 %v1123, %v1293
  %v1295 = vpop.f32.mrf.mxu0
  %1296 = vdwg.mxu0
  %1297 = vmatpush.bf16.msra.mxu0 0
  %1298 = vmatpush.bf16.msra.mxu0 0
  %1299 = vmatpush.bf16.msra.mxu0 0
  %1300 = vmatpush.bf16.msra.mxu0 0
  %1301 = vmatpush.bf16.msra.mxu0 0
  %1302 = vmatpush.bf16.msra.mxu0 0
  %1303 = vmatpush.bf16.msra.mxu0 %v1243
  %1304 = vmatpush.bf16.msra.mxu0 %v1230
  %1305 = vmatmul.bf16.gmra.mxu0 %v1282
  %v1306 = vpop.f32.mrf.mxu0
  %v1307 = vadd.f32 %v1124, %v1306
  %v1308 = vpop.f32.mrf.mxu0
  %1309 = vdwg.mxu0
  %1310 = vmatpush.bf16.msra.mxu0 0
  %1311 = vmatpush.bf16.msra.mxu0 0
  %1312 = vmatpush.bf16.msra.mxu0 0
  %1313 = vmatpush.bf16.msra.mxu0 0
  %1314 = vmatpush.bf16.msra.mxu0 0
  %1315 = vmatpush.bf16.msra.mxu0 0
  %1316 = vmatpush.bf16.msra.mxu0 %v1244
  %1317 = vmatpush.bf16.msra.mxu0 %v1231
  %1318 = vmatmul.bf16.gmra.mxu0 %v1282
  %v1319 = vpop.f32.mrf.mxu0
  %v1320 = vadd.f32 %v1125, %v1319
  %v1321 = vpop.f32.mrf.mxu0
  %1322 = vdwg.mxu0
  %1323 = vmatpush.bf16.msra.mxu0 0
  %1324 = vmatpush.bf16.msra.mxu0 0
  %1325 = vmatpush.bf16.msra.mxu0 0
  %1326 = vmatpush.bf16.msra.mxu0 0
  %1327 = vmatpush.bf16.msra.mxu0 0
  %1328 = vmatpush.bf16.msra.mxu0 0
  %1329 = vmatpush.bf16.msra.mxu0 %v1245
  %1330 = vmatpush.bf16.msra.mxu0 %v1232
  %1331 = vmatmul.bf16.gmra.mxu0 %v1282
  %v1332 = vpop.f32.mrf.mxu0
  %v1333 = vadd.f32 %v1126, %v1332
  %v1334 = vpop.f32.mrf.mxu0
  %1335 = vdwg.mxu0
  %1336 = vmatpush.bf16.msra.mxu0 0
  %1337 = vmatpush.bf16.msra.mxu0 0
  %1338 = vmatpush.bf16.msra.mxu0 0
  %1339 = vmatpush.bf16.msra.mxu0 0
  %1340 = vmatpush.bf16.msra.mxu0 0
  %1341 = vmatpush.bf16.msra.mxu0 0
  %1342 = vmatpush.bf16.msra.mxu0 %v1246
  %1343 = vmatpush.bf16.msra.mxu0 %v1233
  %1344 = vmatmul.bf16.gmra.mxu0 %v1282
  %v1345 = vpop.f32.mrf.mxu0
  %v1346 = vadd.f32 %v1127, %v1345
  %v1347 = vpop.f32.mrf.mxu0
  %1348 = vdwg.mxu0
  %1349 = vmatpush.bf16.msra.mxu0 0
  %1350 = vmatpush.bf16.msra.mxu0 0
  %1351 = vmatpush.bf16.msra.mxu0 0
  %1352 = vmatpush.bf16.msra.mxu0 0
  %1353 = vmatpush.bf16.msra.mxu0 0
  %1354 = vmatpush.bf16.msra.mxu0 0
  %1355 = vmatpush.bf16.msra.mxu0 %v1247
  %1356 = vmatpush.bf16.msra.mxu0 %v1234
  %1357 = vmatmul.bf16.gmra.mxu0 %v1282
  %v1358 = vpop.f32.mrf.mxu0
  %v1359 = vadd.f32 %v1128, %v1358
  %v1360 = vpop.f32.mrf.mxu0
  %1361 = vdwg.mxu0
  %1362 = vmatpush.bf16.msra.mxu0 0
  %1363 = vmatpush.bf16.msra.mxu0 0
  %1364 = vmatpush.bf16.msra.mxu0 0
  %1365 = vmatpush.bf16.msra.mxu0 0
  %1366 = vmatpush.bf16.msra.mxu0 0
  %1367 = vmatpush.bf16.msra.mxu0 0
  %1368 = vmatpush.bf16.msra.mxu0 %v1248
  %1369 = vmatpush.bf16.msra.mxu0 %v1235
  %1370 = vmatmul.bf16.gmra.mxu0 %v1282
  %v1371 = vpop.f32.mrf.mxu0
  %v1372 = vadd.f32 %v1129, %v1371
  %v1373 = vpop.f32.mrf.mxu0
  %1374 = vdwg.mxu0
  %1375 = vmatpush.bf16.msra.mxu0 0
  %1376 = vmatpush.bf16.msra.mxu0 0
  %1377 = vmatpush.bf16.msra.mxu0 0
  %1378 = vmatpush.bf16.msra.mxu0 0
  %1379 = vmatpush.bf16.msra.mxu0 0
  %1380 = vmatpush.bf16.msra.mxu0 0
  %1381 = vmatpush.bf16.msra.mxu0 %v1249
  %1382 = vmatpush.bf16.msra.mxu0 %v1236
  %1383 = vmatmul.bf16.gmra.mxu0 %v1282
  %v1384 = vpop.f32.mrf.mxu0
  %v1385 = vadd.f32 %v1130, %v1384
  %v1386 = vpop.f32.mrf.mxu0
  %1387 = vdwg.mxu0
  %1388 = vmatpush.bf16.msra.mxu0 0
  %1389 = vmatpush.bf16.msra.mxu0 0
  %1390 = vmatpush.bf16.msra.mxu0 0
  %1391 = vmatpush.bf16.msra.mxu0 0
  %1392 = vmatpush.bf16.msra.mxu0 0
  %1393 = vmatpush.bf16.msra.mxu0 0
  %1394 = vmatpush.bf16.msra.mxu0 %v1250
  %1395 = vmatpush.bf16.msra.mxu0 %v1237
  %1396 = vmatmul.bf16.gmra.mxu0 %v1282
  %v1397 = vpop.f32.mrf.mxu0
  %v1398 = vadd.f32 %v1131, %v1397
  %v1399 = vpop.f32.mrf.mxu0
  %1400 = vdwg.mxu0
  %1401 = vmatpush.bf16.msra.mxu0 0
  %1402 = vmatpush.bf16.msra.mxu0 0
  %1403 = vmatpush.bf16.msra.mxu0 0
  %1404 = vmatpush.bf16.msra.mxu0 0
  %1405 = vmatpush.bf16.msra.mxu0 0
  %1406 = vmatpush.bf16.msra.mxu0 0
  %1407 = vmatpush.bf16.msra.mxu0 %v1251
  %1408 = vmatpush.bf16.msra.mxu0 %v1238
  %1409 = vmatmul.bf16.gmra.mxu0 %v1282
  %v1410 = vpop.f32.mrf.mxu0
  %v1411 = vadd.f32 %v1132, %v1410
  %v1412 = vpop.f32.mrf.mxu0
  %1413 = vdwg.mxu0
  %1414 = vmatpush.bf16.msra.mxu0 0
  %1415 = vmatpush.bf16.msra.mxu0 0
  %1416 = vmatpush.bf16.msra.mxu0 0
  %1417 = vmatpush.bf16.msra.mxu0 0
  %1418 = vmatpush.bf16.msra.mxu0 0
  %1419 = vmatpush.bf16.msra.mxu0 0
  %1420 = vmatpush.bf16.msra.mxu0 %v1252
  %1421 = vmatpush.bf16.msra.mxu0 %v1239
  %1422 = vmatmul.bf16.gmra.mxu0 %v1282
  %v1423 = vpop.f32.mrf.mxu0
  %v1424 = vadd.f32 %v1133, %v1423
  %v1425 = vpop.f32.mrf.mxu0
  %1426 = vdwg.mxu0
  %1427 = vmatpush.bf16.msra.mxu0 0
  %1428 = vmatpush.bf16.msra.mxu0 0
  %1429 = vmatpush.bf16.msra.mxu0 0
  %1430 = vmatpush.bf16.msra.mxu0 0
  %1431 = vmatpush.bf16.msra.mxu0 0
  %1432 = vmatpush.bf16.msra.mxu0 0
  %1433 = vmatpush.bf16.msra.mxu0 %v1253
  %1434 = vmatpush.bf16.msra.mxu0 %v1240
  %1435 = vmatmul.bf16.gmra.mxu0 %v1282
  %v1436 = vpop.f32.mrf.mxu0
  %v1437 = vadd.f32 %v1134, %v1436
  %v1438 = vpop.f32.mrf.mxu0
  %1439 = vdwg.mxu0
  %1440 = vmatpush.bf16.msra.mxu0 0
  %1441 = vmatpush.bf16.msra.mxu0 0
  %1442 = vmatpush.bf16.msra.mxu0 0
  %1443 = vmatpush.bf16.msra.mxu0 0
  %1444 = vmatpush.bf16.msra.mxu0 0
  %1445 = vmatpush.bf16.msra.mxu0 0
  %1446 = vmatpush.bf16.msra.mxu0 %v1254
  %1447 = vmatpush.bf16.msra.mxu0 %v1241
  %1448 = vmatmul.bf16.gmra.mxu0 %v1282
  %v1449 = vpop.f32.mrf.mxu0
  %v1450 = vadd.f32 %v1135, %v1449
  %v1451 = vpop.f32.mrf.mxu0
  %1452 = vdwg.mxu0
  %v1453 = vmax.f32 %v1294, 0.0
  %v1454 = vmax.f32 %v1307, 0.0
  %v1455 = vmax.f32 %v1320, 0.0
  %v1456 = vmax.f32 %v1333, 0.0
  %v1457 = vmax.f32 %v1346, 0.0
  %v1458 = vmax.f32 %v1359, 0.0
  %v1459 = vmax.f32 %v1372, 0.0
  %v1460 = vmax.f32 %v1385, 0.0
  %v1461 = vmax.f32 %v1398, 0.0
  %v1462 = vmax.f32 %v1411, 0.0
  %v1463 = vmax.f32 %v1424, 0.0
  %v1464 = vmax.f32 %v1437, 0.0
  %v1465 = vmax.f32 %v1450, 0.0
  %v1466 = vpack.c.bf16 %v1454, %v1453
  %v1467 = vpack.c.bf16 %v1456, %v1455
  %v1468 = vpack.c.bf16 %v1458, %v1457
  %v1469 = vpack.c.bf16 %v1460, %v1459
  %v1470 = vpack.c.bf16 %v1462, %v1461
  %v1471 = vpack.c.bf16 %v1464, %v1463
  %v1472 = vpack.c.bf16 %v1465, %v1465
  %v1480 = vrot.slane %v1466, 3
  %v1481 = vrot.slane %v1467, 6
  %v1482 = vrot.slane %v1467, 1
  %v1483 = vrot.slane %v1468, 4
  %v1484 = vrot.slane %v1468, 7
  %v1485 = vrot.slane %v1469, 2
  %v1486 = vrot.slane %v1469, 5
  %v1487 = vrot.slane %v1470, 3
  %v1488 = vrot.slane %v1471, 6
  %v1489 = vrot.slane %v1471, 1
  %v1490 = vrot.slane %v1472, 4
  %v1491 = vrot.slane %v1472, 7
  %vm1492 = vcmask 1040384
  %v1495 = vsel %vm1492, %v1466, %v1480
  %vm1496 = vcmask 1042434
  %v1499 = vsel %vm1496, %v1481, %v1482
  %vm1500 = vcmask 1041408
  %v1501 = vsel %vm1500, %v1495, %v1499
  %vm1502 = vcmask 1044484
  %v1505 = vsel %vm1502, %v1483, %v1484
  %vm1506 = vcmask 1046534
  %v1509 = vsel %vm1506, %v1485, %v1486
  %vm1510 = vcmask 1045508
  %v1511 = vsel %vm1510, %v1505, %v1509
  %v1512 = vsel %vm1072, %v1501, %v1511
  %v1515 = vsel %vm1492, %v1470, %v1487
  %v1517 = vsel %vm1500, %v1515, %v1488
  %vm1518 = vcmask 1043459
  %v1521 = vsel %vm1518, %v1489, %v1490
  %vm1522 = vcmask 1044483
  %v1524 = vsel %vm1522, %v1521, %v1491
  %vm1525 = vcmask 1042432
  %v1526 = vsel %vm1525, %v1517, %v1524
  %1529 = vst [vmem:[%s9] sm:$0xff] %v1512
  %vm1530 = vcmask 1041409
  %vm1531 = vmor %vm1530, %vm1492
  %vm1532 = vmor %vm1496, %vm1531
  %vm1533 = vmor %vm1518, %vm1532
  %vm1534 = vcmask 258052
  %vm1535 = vmor %vm1534, %vm1533
  %1536 = vst.msk [vmem:[%s9 + $0x8] sm:$0x1f] %vm1535, %v1526
  // Predicated region
  $region38: #{autoencoder_forward.7} parent=0 // pred_check
    _
  $region39: #{autoencoder_forward.7} parent=0 // pred_check_branch
    %1538 = sbr.rel (0) target = $region41
  $region40: #{autoencoder_forward.7} parent=0 // pred_region
    _
  $region41: #{autoencoder_forward.7} parent=0 // pred_fallthru
    _
  // Predicated region
  $region42: #{autoencoder_forward.7} parent=0 // pred_check
    _
  $region43: #{autoencoder_forward.7} parent=0 // pred_check_branch
    %1540 = sbr.rel (0) target = $region45
  $region44: #{autoencoder_forward.7} parent=0 // pred_region
    _
  $region45: #{autoencoder_forward.7} parent=0 // pred_fallthru
    _

// kernel: autoencoder_forward.8
$region0: #{autoencoder_forward.8}
  #allocation0 [shape = 'u32[]', space=smem, size = 0x4, offset = 0x4, fixed_abs, tag = 'smem constant byte address 0x4 - core index']
  #allocation1 [shape = 'u32[72,128]{1,0:T(1,128)}', space=vmem, size = 0x9000, scoped, tag = 'internal scratch']
  %s0 = inlined_call_operand.vmem [shape: bf16[98,288], index: 0, kind: input, shape index: {}]
  %s1 = inlined_call_operand.vmem [shape: bf16[288,64], index: 1, kind: input, shape index: {}]
  %s2 = inlined_call_operand.vmem [shape: f32[1,64], index: 2, kind: input, shape index: {}]
  %s3 = inlined_call_operand.vmem [shape: bf16[98,64], index: 3, kind: output, shape index: {}]
  %s4 = sld [smem:[#allocation0]]
  $region22: #{autoencoder_forward.8} parent=0
    _
  %s6 = ssub.s32 1, %s4
  %s7 = scalar_select 0, %s6, %s4
  // Predicated region
  $region2: #{autoencoder_forward.8} parent=0 // pred_check
    _
  $region3: #{autoencoder_forward.8} parent=0 // pred_check_branch
    %9 = sbr.rel (0) target = $region5
  $region4: #{autoencoder_forward.8} parent=0 // pred_region
    _
  $region5: #{autoencoder_forward.8} parent=0 // pred_fallthru
    _
  // Predicated region
  $region6: #{autoencoder_forward.8} parent=0 // pred_check
    _
  $region7: #{autoencoder_forward.8} parent=0 // pred_check_branch
    %11 = sbr.rel (0) target = $region9
  $region8: #{autoencoder_forward.8} parent=0 // pred_region
    _
  $region9: #{autoencoder_forward.8} parent=0 // pred_fallthru
    _
  // Predicated region
  $region10: #{autoencoder_forward.8} parent=0 // pred_check
    _
  $region11: #{autoencoder_forward.8} parent=0 // pred_check_branch
    %13 = sbr.rel (0) target = $region13
  $region12: #{autoencoder_forward.8} parent=0 // pred_region
    _
  $region13: #{autoencoder_forward.8} parent=0 // pred_fallthru
    _
  %v15 = vld [vmem:[%s0] sm:$0xff]
  %v16 = vld [vmem:[%s0 + $0x8] sm:$0xf]
  %v17 = vld [vmem:[%s0 + $0xc] sm:$0xff]
  %v18 = vld [vmem:[%s0 + $0x14] sm:$0xf]
  %v19 = vld [vmem:[%s0 + $0x18] sm:$0xff]
  %v20 = vld [vmem:[%s0 + $0x20] sm:$0xf]
  %v21 = vld [vmem:[%s0 + $0x24] sm:$0xff]
  %v22 = vld [vmem:[%s0 + $0x2c] sm:$0xf]
  %v23 = vld [vmem:[%s0 + $0x30] sm:$0xff]
  %v24 = vld [vmem:[%s0 + $0x38] sm:$0xf]
  %v25 = vld [vmem:[%s0 + $0x3c] sm:$0xff]
  %v26 = vld [vmem:[%s0 + $0x44] sm:$0xf]
  %v27 = vld [vmem:[%s0 + $0x48] sm:$0xff]
  %v28 = vld [vmem:[%s0 + $0x50] sm:$0xf]
  %v29 = vld [vmem:[%s0 + $0x54] sm:$0xff]
  %v30 = vld [vmem:[%s0 + $0x5c] sm:$0xf]
  %v31 = vld [vmem:[%s0 + $0x60] sm:$0xff]
  %v32 = vld [vmem:[%s0 + $0x68] sm:$0xf]
  %v33 = vld [vmem:[%s0 + $0x6c] sm:$0xff]
  %v34 = vld [vmem:[%s0 + $0x74] sm:$0xf]
  %v35 = vld [vmem:[%s0 + $0x78] sm:$0xff]
  %v36 = vld [vmem:[%s0 + $0x80] sm:$0xf]
  %v37 = vld [vmem:[%s0 + $0x84] sm:$0xff]
  %v38 = vld [vmem:[%s0 + $0x8c] sm:$0xf]
  %v39 = vld [vmem:[%s0 + $0x90] sm:$0x11]
  %v40 = vld [vmem:[%s0 + $0x98] sm:$0x1]
  %v41 = vld [vmem:[%s1] sm:$0xf]
  %v42 = vld [vmem:[%s1 + $0x4] sm:$0xf]
  %v43 = vld [vmem:[%s1 + $0x8] sm:$0xf]
  %v44 = vld [vmem:[%s1 + $0xc] sm:$0xf]
  %v45 = vld [vmem:[%s1 + $0x10] sm:$0xf]
  %v46 = vld [vmem:[%s1 + $0x14] sm:$0xf]
  %v47 = vld [vmem:[%s1 + $0x18] sm:$0xf]
  %v48 = vld [vmem:[%s1 + $0x1c] sm:$0xf]
  %v49 = vld [vmem:[%s1 + $0x20] sm:$0xf]
  %v50 = vld [vmem:[%s1 + $0x24] sm:$0xf]
  %v51 = vld [vmem:[%s1 + $0x28] sm:$0xf]
  %v52 = vld [vmem:[%s1 + $0x2c] sm:$0xf]
  %v53 = vld [vmem:[%s1 + $0x30] sm:$0xf]
  %v54 = vld [vmem:[%s1 + $0x34] sm:$0xf]
  %v55 = vld [vmem:[%s1 + $0x38] sm:$0xf]
  %v56 = vld [vmem:[%s1 + $0x3c] sm:$0xf]
  %v57 = vld [vmem:[%s1 + $0x40] sm:$0xf]
  %v58 = vld [vmem:[%s1 + $0x44] sm:$0xf]
  %v59 = vld [vmem:[%s1 + $0x48] sm:$0xf]
  %v60 = vld [vmem:[%s1 + $0x4c] sm:$0xf]
  %v61 = vld [vmem:[%s1 + $0x50] sm:$0xf]
  %v62 = vld [vmem:[%s1 + $0x54] sm:$0xf]
  %v63 = vld [vmem:[%s1 + $0x58] sm:$0xf]
  %v64 = vld [vmem:[%s1 + $0x5c] sm:$0xf]
  %v65 = vld [vmem:[%s1 + $0x60] sm:$0xf]
  %v66 = vld [vmem:[%s1 + $0x64] sm:$0xf]
  %v67 = vld [vmem:[%s1 + $0x68] sm:$0xf]
  %v68 = vld [vmem:[%s1 + $0x6c] sm:$0xf]
  %v69 = vld [vmem:[%s1 + $0x70] sm:$0xf]
  %v70 = vld [vmem:[%s1 + $0x74] sm:$0xf]
  %v71 = vld [vmem:[%s1 + $0x78] sm:$0xf]
  %v72 = vld [vmem:[%s1 + $0x7c] sm:$0xf]
  %v73 = vld [vmem:[%s1 + $0x80] sm:$0xf]
  %v74 = vld [vmem:[%s1 + $0x84] sm:$0xf]
  %v75 = vld [vmem:[%s1 + $0x88] sm:$0xf]
  %v76 = vld [vmem:[%s1 + $0x8c] sm:$0xf]
  %v77 = vld [vmem:[%s2] sm:$0x1]
  %v79 = vperm.slane %v77, 0
  %v107 = vunpack.c.l.b16 %v15
  %v108 = vunpack.c.h.b16 %v15
  %v109 = vunpack.c.l.b16 %v16
  %v110 = vunpack.c.l.b16 %v17
  %v111 = vunpack.c.h.b16 %v17
  %v112 = vunpack.c.l.b16 %v18
  %v113 = vunpack.c.l.b16 %v19
  %v114 = vunpack.c.h.b16 %v19
  %v115 = vunpack.c.l.b16 %v20
  %v116 = vunpack.c.l.b16 %v21
  %v117 = vunpack.c.h.b16 %v21
  %v118 = vunpack.c.l.b16 %v22
  %v119 = vunpack.c.l.b16 %v23
  %v120 = vunpack.c.h.b16 %v23
  %v121 = vunpack.c.l.b16 %v24
  %v122 = vunpack.c.l.b16 %v25
  %v123 = vunpack.c.h.b16 %v25
  %v124 = vunpack.c.l.b16 %v26
  %v125 = vunpack.c.l.b16 %v27
  %v126 = vunpack.c.h.b16 %v27
  %v127 = vunpack.c.l.b16 %v28
  %v128 = vunpack.c.l.b16 %v29
  %v129 = vunpack.c.h.b16 %v29
  %v130 = vunpack.c.l.b16 %v30
  %v131 = vunpack.c.l.b16 %v31
  %v132 = vunpack.c.h.b16 %v31
  %v133 = vunpack.c.l.b16 %v32
  %v134 = vunpack.c.l.b16 %v33
  %v135 = vunpack.c.h.b16 %v33
  %v136 = vunpack.c.l.b16 %v34
  %v137 = vunpack.c.l.b16 %v35
  %v138 = vunpack.c.h.b16 %v35
  %v139 = vunpack.c.l.b16 %v36
  %v140 = vunpack.c.l.b16 %v37
  %v141 = vunpack.c.h.b16 %v37
  %v142 = vunpack.c.l.b16 %v38
  %v143 = vunpack.c.l.b16 %v39
  %v144 = vunpack.c.h.b16 %v39
  %v145 = vunpack.c.l.b16 %v40
  %v146 = vpack.c.b16 %v110, %v107
  %v147 = vpack.c.b16 %v111, %v108
  %v148 = vpack.c.b16 %v112, %v109
  %v149 = vpack.c.b16 %v116, %v113
  %v150 = vpack.c.b16 %v117, %v114
  %v151 = vpack.c.b16 %v118, %v115
  %v152 = vpack.c.b16 %v122, %v119
  %v153 = vpack.c.b16 %v123, %v120
  %v154 = vpack.c.b16 %v124, %v121
  %v155 = vpack.c.b16 %v128, %v125
  %v156 = vpack.c.b16 %v129, %v126
  %v157 = vpack.c.b16 %v130, %v127
  %v158 = vpack.c.b16 %v134, %v131
  %v159 = vpack.c.b16 %v135, %v132
  %v160 = vpack.c.b16 %v136, %v133
  %v161 = vpack.c.b16 %v140, %v137
  %v162 = vpack.c.b16 %v141, %v138
  %v163 = vpack.c.b16 %v142, %v139
  %v164 = vpack.c.b16 %v143, %v143
  %v165 = vpack.c.b16 %v144, %v144
  %v166 = vpack.c.b16 %v145, %v145
  %v217 = vunpack.c.l.b16 %v41
  %v218 = vunpack.c.l.b16 %v42
  %v219 = vunpack.c.l.b16 %v43
  %v220 = vunpack.c.l.b16 %v44
  %v221 = vunpack.c.l.b16 %v45
  %v222 = vunpack.c.l.b16 %v46
  %v223 = vunpack.c.l.b16 %v47
  %v224 = vunpack.c.l.b16 %v48
  %v225 = vunpack.c.l.b16 %v49
  %v226 = vunpack.c.l.b16 %v50
  %v227 = vunpack.c.l.b16 %v51
  %v228 = vunpack.c.l.b16 %v52
  %v229 = vunpack.c.l.b16 %v53
  %v230 = vunpack.c.l.b16 %v54
  %v231 = vunpack.c.l.b16 %v55
  %v232 = vunpack.c.l.b16 %v56
  %v233 = vunpack.c.l.b16 %v57
  %v234 = vunpack.c.l.b16 %v58
  %v235 = vunpack.c.l.b16 %v59
  %v236 = vunpack.c.l.b16 %v60
  %v237 = vunpack.c.l.b16 %v61
  %v238 = vunpack.c.l.b16 %v62
  %v239 = vunpack.c.l.b16 %v63
  %v240 = vunpack.c.l.b16 %v64
  %v241 = vunpack.c.l.b16 %v65
  %v242 = vunpack.c.l.b16 %v66
  %v243 = vunpack.c.l.b16 %v67
  %v244 = vunpack.c.l.b16 %v68
  %v245 = vunpack.c.l.b16 %v69
  %v246 = vunpack.c.l.b16 %v70
  %v247 = vunpack.c.l.b16 %v71
  %v248 = vunpack.c.l.b16 %v72
  %v249 = vunpack.c.l.b16 %v73
  %v250 = vunpack.c.l.b16 %v74
  %v251 = vunpack.c.l.b16 %v75
  %v252 = vunpack.c.l.b16 %v76
  %v253 = vpack.c.b16 %v218, %v217
  %v254 = vpack.c.b16 %v220, %v219
  %v255 = vpack.c.b16 %v222, %v221
  %v256 = vpack.c.b16 %v224, %v223
  %v257 = vpack.c.b16 %v226, %v225
  %v258 = vpack.c.b16 %v228, %v227
  %v259 = vpack.c.b16 %v230, %v229
  %v260 = vpack.c.b16 %v232, %v231
  %v261 = vpack.c.b16 %v234, %v233
  %v262 = vpack.c.b16 %v236, %v235
  %v263 = vpack.c.b16 %v238, %v237
  %v264 = vpack.c.b16 %v240, %v239
  %v265 = vpack.c.b16 %v242, %v241
  %v266 = vpack.c.b16 %v244, %v243
  %v267 = vpack.c.b16 %v246, %v245
  %v268 = vpack.c.b16 %v248, %v247
  %v269 = vpack.c.b16 %v250, %v249
  %v270 = vpack.c.b16 %v252, %v251
  %vm289 = vcmask 261120
  %v291 = vsel %vm289, %v148, 0
  %v294 = vsel %vm289, %v151, 0
  %v297 = vsel %vm289, %v154, 0
  %v300 = vsel %vm289, %v157, 0
  %v303 = vsel %vm289, %v160, 0
  %v306 = vsel %vm289, %v163, 0
  %v309 = vsel %vm289, %v166, 0
  %311 = vmatpush.bf16.msra.mxu0 %v260
  %312 = vmatpush.bf16.msra.mxu0 %v259
  %313 = vmatpush.bf16.msra.mxu0 %v258
  %314 = vmatpush.bf16.msra.mxu0 %v257
  %315 = vmatpush.bf16.msra.mxu0 %v256
  %316 = vmatpush.bf16.msra.mxu0 %v255
  %317 = vmatpush.bf16.msra.mxu0 %v254
  %318 = vmatpush.bf16.msra.mxu0 %v253
  %319 = vmatmul.bf16.gmra.mxu0 %v146
  %v320 = vpop.f32.mrf.mxu0
  %v321 = vadd.f32 %v79, %v320
  %v322 = vpop.f32.mrf.mxu0
  %v323 = vadd.f32 %v79, %v322
  %324 = vmatmul.bf16.gmra.mxu0 %v149
  %v325 = vpop.f32.mrf.mxu0
  %v326 = vadd.f32 %v79, %v325
  %v327 = vpop.f32.mrf.mxu0
  %v328 = vadd.f32 %v79, %v327
  %329 = vmatmul.bf16.gmra.mxu0 %v152
  %v330 = vpop.f32.mrf.mxu0
  %v331 = vadd.f32 %v79, %v330
  %v332 = vpop.f32.mrf.mxu0
  %v333 = vadd.f32 %v79, %v332
  %334 = vmatmul.bf16.gmra.mxu0 %v155
  %v335 = vpop.f32.mrf.mxu0
  %v336 = vadd.f32 %v79, %v335
  %v337 = vpop.f32.mrf.mxu0
  %v338 = vadd.f32 %v79, %v337
  %339 = vmatmul.bf16.gmra.mxu0 %v158
  %v340 = vpop.f32.mrf.mxu0
  %v341 = vadd.f32 %v79, %v340
  %v342 = vpop.f32.mrf.mxu0
  %v343 = vadd.f32 %v79, %v342
  %344 = vmatmul.bf16.gmra.mxu0 %v161
  %v345 = vpop.f32.mrf.mxu0
  %v346 = vadd.f32 %v79, %v345
  %v347 = vpop.f32.mrf.mxu0
  %v348 = vadd.f32 %v79, %v347
  %349 = vmatmul.bf16.gmra.mxu0 %v164
  %v350 = vpop.f32.mrf.mxu0
  %v351 = vadd.f32 %v79, %v350
  %v352 = vpop.f32.mrf.mxu0
  %353 = vdwg.mxu0
  %354 = vmatpush.bf16.msra.mxu0 %v268
  %355 = vmatpush.bf16.msra.mxu0 %v267
  %356 = vmatpush.bf16.msra.mxu0 %v266
  %357 = vmatpush.bf16.msra.mxu0 %v265
  %358 = vmatpush.bf16.msra.mxu0 %v264
  %359 = vmatpush.bf16.msra.mxu0 %v263
  %360 = vmatpush.bf16.msra.mxu0 %v262
  %361 = vmatpush.bf16.msra.mxu0 %v261
  %362 = vmatmul.bf16.gmra.mxu0 %v147
  %v363 = vpop.f32.mrf.mxu0
  %v364 = vadd.f32 %v321, %v363
  %v365 = vpop.f32.mrf.mxu0
  %v366 = vadd.f32 %v323, %v365
  %367 = vmatmul.bf16.gmra.mxu0 %v150
  %v368 = vpop.f32.mrf.mxu0
  %v369 = vadd.f32 %v326, %v368
  %v370 = vpop.f32.mrf.mxu0
  %v371 = vadd.f32 %v328, %v370
  %372 = vmatmul.bf16.gmra.mxu0 %v153
  %v373 = vpop.f32.mrf.mxu0
  %v374 = vadd.f32 %v331, %v373
  %v375 = vpop.f32.mrf.mxu0
  %v376 = vadd.f32 %v333, %v375
  %377 = vmatmul.bf16.gmra.mxu0 %v156
  %v378 = vpop.f32.mrf.mxu0
  %v379 = vadd.f32 %v336, %v378
  %v380 = vpop.f32.mrf.mxu0
  %v381 = vadd.f32 %v338, %v380
  %382 = vmatmul.bf16.gmra.mxu0 %v159
  %v383 = vpop.f32.mrf.mxu0
  %v384 = vadd.f32 %v341, %v383
  %v385 = vpop.f32.mrf.mxu0
  %v386 = vadd.f32 %v343, %v385
  %387 = vmatmul.bf16.gmra.mxu0 %v162
  %v388 = vpop.f32.mrf.mxu0
  %v389 = vadd.f32 %v346, %v388
  %v390 = vpop.f32.mrf.mxu0
  %v391 = vadd.f32 %v348, %v390
  %392 = vmatmul.bf16.gmra.mxu0 %v165
  %v393 = vpop.f32.mrf.mxu0
  %v394 = vadd.f32 %v351, %v393
  %v395 = vpop.f32.mrf.mxu0
  %396 = vdwg.mxu0
  %397 = vmatpush.bf16.msra.mxu0 0
  %398 = vmatpush.bf16.msra.mxu0 0
  %399 = vmatpush.bf16.msra.mxu0 0
  %400 = vmatpush.bf16.msra.mxu0 0
  %401 = vmatpush.bf16.msra.mxu0 0
  %402 = vmatpush.bf16.msra.mxu0 0
  %403 = vmatpush.bf16.msra.mxu0 %v270
  %404 = vmatpush.bf16.msra.mxu0 %v269
  %405 = vmatmul.bf16.gmra.mxu0 %v291
  %v406 = vpop.f32.mrf.mxu0
  %v407 = vadd.f32 %v364, %v406
  %v408 = vpop.f32.mrf.mxu0
  %v409 = vadd.f32 %v366, %v408
  %410 = vmatmul.bf16.gmra.mxu0 %v294
  %v411 = vpop.f32.mrf.mxu0
  %v412 = vadd.f32 %v369, %v411
  %v413 = vpop.f32.mrf.mxu0
  %v414 = vadd.f32 %v371, %v413
  %415 = vmatmul.bf16.gmra.mxu0 %v297
  %v416 = vpop.f32.mrf.mxu0
  %v417 = vadd.f32 %v374, %v416
  %v418 = vpop.f32.mrf.mxu0
  %v419 = vadd.f32 %v376, %v418
  %420 = vmatmul.bf16.gmra.mxu0 %v300
  %v421 = vpop.f32.mrf.mxu0
  %v422 = vadd.f32 %v379, %v421
  %v423 = vpop.f32.mrf.mxu0
  %v424 = vadd.f32 %v381, %v423
  %425 = vmatmul.bf16.gmra.mxu0 %v303
  %v426 = vpop.f32.mrf.mxu0
  %v427 = vadd.f32 %v384, %v426
  %v428 = vpop.f32.mrf.mxu0
  %v429 = vadd.f32 %v386, %v428
  %430 = vmatmul.bf16.gmra.mxu0 %v306
  %v431 = vpop.f32.mrf.mxu0
  %v432 = vadd.f32 %v389, %v431
  %v433 = vpop.f32.mrf.mxu0
  %v434 = vadd.f32 %v391, %v433
  %435 = vmatmul.bf16.gmra.mxu0 %v309
  %v436 = vpop.f32.mrf.mxu0
  %v437 = vadd.f32 %v394, %v436
  %v438 = vpop.f32.mrf.mxu0
  %439 = vdwg.mxu0
  %v440 = vmax.f32 %v407, 0.0
  %v441 = vmax.f32 %v409, 0.0
  %v442 = vmax.f32 %v412, 0.0
  %v443 = vmax.f32 %v414, 0.0
  %v444 = vmax.f32 %v417, 0.0
  %v445 = vmax.f32 %v419, 0.0
  %v446 = vmax.f32 %v422, 0.0
  %v447 = vmax.f32 %v424, 0.0
  %v448 = vmax.f32 %v427, 0.0
  %v449 = vmax.f32 %v429, 0.0
  %v450 = vmax.f32 %v432, 0.0
  %v451 = vmax.f32 %v434, 0.0
  %v452 = vmax.f32 %v437, 0.0
  %v453 = vpack.c.bf16 %v440, %v440
  %v454 = vpack.c.bf16 %v441, %v441
  %v455 = vpack.c.bf16 %v442, %v442
  %v456 = vpack.c.bf16 %v443, %v443
  %v457 = vpack.c.bf16 %v444, %v444
  %v458 = vpack.c.bf16 %v445, %v445
  %v459 = vpack.c.bf16 %v446, %v446
  %v460 = vpack.c.bf16 %v447, %v447
  %v461 = vpack.c.bf16 %v448, %v448
  %v462 = vpack.c.bf16 %v449, %v449
  %v463 = vpack.c.bf16 %v450, %v450
  %v464 = vpack.c.bf16 %v451, %v451
  %v465 = vpack.c.bf16 %v452, %v452
  %vm466 = vcmask 519168
  %467 = vst.msk [vmem:[%s3] sm:$0xf] %vm466, %v453
  %468 = vst.msk [vmem:[%s3 + $0x4] sm:$0xf] %vm466, %v454
  %469 = vst.msk [vmem:[%s3 + $0x8] sm:$0xf] %vm466, %v455
  %470 = vst.msk [vmem:[%s3 + $0xc] sm:$0xf] %vm466, %v456
  %471 = vst.msk [vmem:[%s3 + $0x10] sm:$0xf] %vm466, %v457
  %472 = vst.msk [vmem:[%s3 + $0x14] sm:$0xf] %vm466, %v458
  %473 = vst.msk [vmem:[%s3 + $0x18] sm:$0xf] %vm466, %v459
  %474 = vst.msk [vmem:[%s3 + $0x1c] sm:$0xf] %vm466, %v460
  %475 = vst.msk [vmem:[%s3 + $0x20] sm:$0xf] %vm466, %v461
  %476 = vst.msk [vmem:[%s3 + $0x24] sm:$0xf] %vm466, %v462
  %477 = vst.msk [vmem:[%s3 + $0x28] sm:$0xf] %vm466, %v463
  %478 = vst.msk [vmem:[%s3 + $0x2c] sm:$0xf] %vm466, %v464
  %vm479 = vcmask 516096
  %480 = vst.msk [vmem:[%s3 + $0x30] sm:$0x1] %vm479, %v465
  // Predicated region
  $region14: #{autoencoder_forward.8} parent=0 // pred_check
    _
  $region15: #{autoencoder_forward.8} parent=0 // pred_check_branch
    %482 = sbr.rel (0) target = $region17
  $region16: #{autoencoder_forward.8} parent=0 // pred_region
    _
  $region17: #{autoencoder_forward.8} parent=0 // pred_fallthru
    _
  // Predicated region
  $region18: #{autoencoder_forward.8} parent=0 // pred_check
    _
  $region19: #{autoencoder_forward.8} parent=0 // pred_check_branch
    %484 = sbr.rel (0) target = $region21
  $region20: #{autoencoder_forward.8} parent=0 // pred_region
    _
  $region21: #{autoencoder_forward.8} parent=0 // pred_fallthru
    _

// kernel: autoencoder_forward.9
$region0: #{autoencoder_forward.9}
  #allocation0 [shape = 'u32[]', space=smem, size = 0x4, offset = 0x4, fixed_abs, tag = 'smem constant byte address 0x4 - core index']
  #allocation1 [shape = 'u32[72,128]{1,0:T(1,128)}', space=vmem, size = 0x9000, scoped, tag = 'internal scratch']
  %s0 = inlined_call_operand.vmem [shape: bf16[392,144], index: 0, kind: input, shape index: {}]
  %s1 = inlined_call_operand.vmem [shape: bf16[144,4], index: 1, kind: input, shape index: {}]
  %s2 = inlined_call_operand.vmem [shape: f32[1,4], index: 2, kind: input, shape index: {}]
  %s3 = inlined_call_operand.vmem [shape: f32[392,4], index: 3, kind: output, shape index: {}]
  %s4 = sld [smem:[#allocation0]]
  $region22: #{autoencoder_forward.9} parent=0
    _
  %s6 = ssub.s32 1, %s4
  %s7 = scalar_select 0, %s6, %s4
  // Predicated region
  $region2: #{autoencoder_forward.9} parent=0 // pred_check
    _
  $region3: #{autoencoder_forward.9} parent=0 // pred_check_branch
    %9 = sbr.rel (0) target = $region5
  $region4: #{autoencoder_forward.9} parent=0 // pred_region
    _
  $region5: #{autoencoder_forward.9} parent=0 // pred_fallthru
    _
  // Predicated region
  $region6: #{autoencoder_forward.9} parent=0 // pred_check
    _
  $region7: #{autoencoder_forward.9} parent=0 // pred_check_branch
    %11 = sbr.rel (0) target = $region9
  $region8: #{autoencoder_forward.9} parent=0 // pred_region
    _
  $region9: #{autoencoder_forward.9} parent=0 // pred_fallthru
    _
  // Predicated region
  $region10: #{autoencoder_forward.9} parent=0 // pred_check
    _
  $region11: #{autoencoder_forward.9} parent=0 // pred_check_branch
    %13 = sbr.rel (0) target = $region13
  $region12: #{autoencoder_forward.9} parent=0 // pred_region
    _
  $region13: #{autoencoder_forward.9} parent=0 // pred_fallthru
    _
  %v15 = vld [vmem:[%s0] sm:$0xff]
  %v16 = vld [vmem:[%s0 + $0x8] sm:$0xff]
  %v17 = vld [vmem:[%s0 + $0x10] sm:$0xff]
  %v18 = vld [vmem:[%s0 + $0x18] sm:$0xff]
  %v19 = vld [vmem:[%s0 + $0x20] sm:$0xff]
  %v20 = vld [vmem:[%s0 + $0x28] sm:$0xff]
  %v21 = vld [vmem:[%s0 + $0x30] sm:$0xff]
  %v22 = vld [vmem:[%s0 + $0x38] sm:$0xff]
  %v23 = vld [vmem:[%s0 + $0x40] sm:$0xff]
  %v24 = vld [vmem:[%s0 + $0x48] sm:$0xff]
  %v25 = vld [vmem:[%s0 + $0x50] sm:$0xff]
  %v26 = vld [vmem:[%s0 + $0x58] sm:$0xff]
  %v27 = vld [vmem:[%s0 + $0x60] sm:$0xff]
  %v28 = vld [vmem:[%s0 + $0x68] sm:$0xff]
  %v29 = vld [vmem:[%s0 + $0x70] sm:$0xff]
  %v30 = vld [vmem:[%s0 + $0x78] sm:$0xff]
  %v31 = vld [vmem:[%s0 + $0x80] sm:$0xff]
  %v32 = vld [vmem:[%s0 + $0x88] sm:$0xff]
  %v33 = vld [vmem:[%s0 + $0x90] sm:$0xff]
  %v34 = vld [vmem:[%s0 + $0x98] sm:$0xff]
  %v35 = vld [vmem:[%s0 + $0xa0] sm:$0xff]
  %v36 = vld [vmem:[%s0 + $0xa8] sm:$0xff]
  %v37 = vld [vmem:[%s0 + $0xb0] sm:$0xff]
  %v38 = vld [vmem:[%s0 + $0xb8] sm:$0xff]
  %v39 = vld [vmem:[%s0 + $0xc0] sm:$0xff]
  %v40 = vld [vmem:[%s0 + $0xc8] sm:$0xff]
  %v41 = vld [vmem:[%s0 + $0xd0] sm:$0xff]
  %v42 = vld [vmem:[%s0 + $0xd8] sm:$0xff]
  %v43 = vld [vmem:[%s0 + $0xe0] sm:$0xff]
  %v44 = vld [vmem:[%s0 + $0xe8] sm:$0xff]
  %v45 = vld [vmem:[%s0 + $0xf0] sm:$0xff]
  %v46 = vld [vmem:[%s0 + $0xf8] sm:$0xff]
  %v47 = vld [vmem:[%s0 + $0x100] sm:$0xff]
  %v48 = vld [vmem:[%s0 + $0x108] sm:$0xff]
  %v49 = vld [vmem:[%s0 + $0x110] sm:$0xff]
  %v50 = vld [vmem:[%s0 + $0x118] sm:$0xff]
  %v51 = vld [vmem:[%s0 + $0x120] sm:$0xff]
  %v52 = vld [vmem:[%s0 + $0x128] sm:$0xff]
  %v53 = vld [vmem:[%s0 + $0x130] sm:$0xff]
  %v54 = vld [vmem:[%s0 + $0x138] sm:$0xff]
  %v55 = vld [vmem:[%s0 + $0x140] sm:$0xff]
  %v56 = vld [vmem:[%s0 + $0x148] sm:$0xff]
  %v57 = vld [vmem:[%s0 + $0x150] sm:$0xff]
  %v58 = vld [vmem:[%s0 + $0x158] sm:$0xff]
  %v59 = vld [vmem:[%s0 + $0x160] sm:$0xff]
  %v60 = vld [vmem:[%s0 + $0x168] sm:$0xff]
  %v61 = vld [vmem:[%s0 + $0x170] sm:$0xff]
  %v62 = vld [vmem:[%s0 + $0x178] sm:$0xff]
  %v63 = vld [vmem:[%s0 + $0x180] sm:$0xff]
  %v64 = vld [vmem:[%s1] sm:$0xf]
  %v65 = vld [vmem:[%s1 + $0x4] sm:$0xf]
  %v66 = vld [vmem:[%s1 + $0x8] sm:$0xf]
  %v67 = vld [vmem:[%s1 + $0xc] sm:$0xf]
  %v68 = vld [vmem:[%s1 + $0x10] sm:$0xf]
  %v69 = vld [vmem:[%s1 + $0x14] sm:$0xf]
  %v70 = vld [vmem:[%s1 + $0x18] sm:$0xf]
  %v71 = vld [vmem:[%s1 + $0x1c] sm:$0xf]
  %v72 = vld [vmem:[%s1 + $0x20] sm:$0xf]
  %v73 = vld [vmem:[%s1 + $0x24] sm:$0xf]
  %v74 = vld [vmem:[%s1 + $0x28] sm:$0xf]
  %v75 = vld [vmem:[%s1 + $0x2c] sm:$0xf]
  %v76 = vld [vmem:[%s1 + $0x30] sm:$0xf]
  %v77 = vld [vmem:[%s1 + $0x34] sm:$0xf]
  %v78 = vld [vmem:[%s1 + $0x38] sm:$0xf]
  %v79 = vld [vmem:[%s1 + $0x3c] sm:$0xf]
  %v80 = vld [vmem:[%s1 + $0x40] sm:$0xf]
  %v81 = vld [vmem:[%s1 + $0x44] sm:$0xf]
  %v82 = vld [vmem:[%s2] sm:$0x1]
  %v84 = vperm.slane %v82, 0
  %v135 = vunpack.c.l.b16 %v15
  %v136 = vunpack.c.h.b16 %v15
  %v137 = vunpack.c.l.b16 %v16
  %v138 = vunpack.c.h.b16 %v16
  %v139 = vunpack.c.l.b16 %v17
  %v140 = vunpack.c.h.b16 %v17
  %v141 = vunpack.c.l.b16 %v18
  %v142 = vunpack.c.h.b16 %v18
  %v143 = vunpack.c.l.b16 %v19
  %v144 = vunpack.c.h.b16 %v19
  %v145 = vunpack.c.l.b16 %v20
  %v146 = vunpack.c.h.b16 %v20
  %v147 = vunpack.c.l.b16 %v21
  %v148 = vunpack.c.h.b16 %v21
  %v149 = vunpack.c.l.b16 %v22
  %v150 = vunpack.c.h.b16 %v22
  %v151 = vunpack.c.l.b16 %v23
  %v152 = vunpack.c.h.b16 %v23
  %v153 = vunpack.c.l.b16 %v24
  %v154 = vunpack.c.h.b16 %v24
  %v155 = vunpack.c.l.b16 %v25
  %v156 = vunpack.c.h.b16 %v25
  %v157 = vunpack.c.l.b16 %v26
  %v158 = vunpack.c.h.b16 %v26
  %v159 = vunpack.c.l.b16 %v27
  %v160 = vunpack.c.h.b16 %v27
  %v161 = vunpack.c.l.b16 %v28
  %v162 = vunpack.c.h.b16 %v28
  %v163 = vunpack.c.l.b16 %v29
  %v164 = vunpack.c.h.b16 %v29
  %v165 = vunpack.c.l.b16 %v30
  %v166 = vunpack.c.h.b16 %v30
  %v167 = vunpack.c.l.b16 %v31
  %v168 = vunpack.c.h.b16 %v31
  %v169 = vunpack.c.l.b16 %v32
  %v170 = vunpack.c.h.b16 %v32
  %v171 = vunpack.c.l.b16 %v33
  %v172 = vunpack.c.h.b16 %v33
  %v173 = vunpack.c.l.b16 %v34
  %v174 = vunpack.c.h.b16 %v34
  %v175 = vunpack.c.l.b16 %v35
  %v176 = vunpack.c.h.b16 %v35
  %v177 = vunpack.c.l.b16 %v36
  %v178 = vunpack.c.h.b16 %v36
  %v179 = vunpack.c.l.b16 %v37
  %v180 = vunpack.c.h.b16 %v37
  %v181 = vunpack.c.l.b16 %v38
  %v182 = vunpack.c.h.b16 %v38
  %v183 = vunpack.c.l.b16 %v39
  %v184 = vunpack.c.h.b16 %v39
  %v185 = vunpack.c.l.b16 %v40
  %v186 = vunpack.c.h.b16 %v40
  %v187 = vunpack.c.l.b16 %v41
  %v188 = vunpack.c.h.b16 %v41
  %v189 = vunpack.c.l.b16 %v42
  %v190 = vunpack.c.h.b16 %v42
  %v191 = vunpack.c.l.b16 %v43
  %v192 = vunpack.c.h.b16 %v43
  %v193 = vunpack.c.l.b16 %v44
  %v194 = vunpack.c.h.b16 %v44
  %v195 = vunpack.c.l.b16 %v45
  %v196 = vunpack.c.h.b16 %v45
  %v197 = vunpack.c.l.b16 %v46
  %v198 = vunpack.c.h.b16 %v46
  %v199 = vunpack.c.l.b16 %v47
  %v200 = vunpack.c.h.b16 %v47
  %v201 = vunpack.c.l.b16 %v48
  %v202 = vunpack.c.h.b16 %v48
  %v203 = vunpack.c.l.b16 %v49
  %v204 = vunpack.c.h.b16 %v49
  %v205 = vunpack.c.l.b16 %v50
  %v206 = vunpack.c.h.b16 %v50
  %v207 = vunpack.c.l.b16 %v51
  %v208 = vunpack.c.h.b16 %v51
  %v209 = vunpack.c.l.b16 %v52
  %v210 = vunpack.c.h.b16 %v52
  %v211 = vunpack.c.l.b16 %v53
  %v212 = vunpack.c.h.b16 %v53
  %v213 = vunpack.c.l.b16 %v54
  %v214 = vunpack.c.h.b16 %v54
  %v215 = vunpack.c.l.b16 %v55
  %v216 = vunpack.c.h.b16 %v55
  %v217 = vunpack.c.l.b16 %v56
  %v218 = vunpack.c.h.b16 %v56
  %v219 = vunpack.c.l.b16 %v57
  %v220 = vunpack.c.h.b16 %v57
  %v221 = vunpack.c.l.b16 %v58
  %v222 = vunpack.c.h.b16 %v58
  %v223 = vunpack.c.l.b16 %v59
  %v224 = vunpack.c.h.b16 %v59
  %v225 = vunpack.c.l.b16 %v60
  %v226 = vunpack.c.h.b16 %v60
  %v227 = vunpack.c.l.b16 %v61
  %v228 = vunpack.c.h.b16 %v61
  %v229 = vunpack.c.l.b16 %v62
  %v230 = vunpack.c.h.b16 %v62
  %v231 = vunpack.c.l.b16 %v63
  %v232 = vunpack.c.h.b16 %v63
  %v233 = vpack.c.b16 %v137, %v135
  %v234 = vpack.c.b16 %v138, %v136
  %v235 = vpack.c.b16 %v141, %v139
  %v236 = vpack.c.b16 %v142, %v140
  %v237 = vpack.c.b16 %v145, %v143
  %v238 = vpack.c.b16 %v146, %v144
  %v239 = vpack.c.b16 %v149, %v147
  %v240 = vpack.c.b16 %v150, %v148
  %v241 = vpack.c.b16 %v153, %v151
  %v242 = vpack.c.b16 %v154, %v152
  %v243 = vpack.c.b16 %v157, %v155
  %v244 = vpack.c.b16 %v158, %v156
  %v245 = vpack.c.b16 %v161, %v159
  %v246 = vpack.c.b16 %v162, %v160
  %v247 = vpack.c.b16 %v165, %v163
  %v248 = vpack.c.b16 %v166, %v164
  %v249 = vpack.c.b16 %v169, %v167
  %v250 = vpack.c.b16 %v170, %v168
  %v251 = vpack.c.b16 %v173, %v171
  %v252 = vpack.c.b16 %v174, %v172
  %v253 = vpack.c.b16 %v177, %v175
  %v254 = vpack.c.b16 %v178, %v176
  %v255 = vpack.c.b16 %v181, %v179
  %v256 = vpack.c.b16 %v182, %v180
  %v257 = vpack.c.b16 %v185, %v183
  %v258 = vpack.c.b16 %v186, %v184
  %v259 = vpack.c.b16 %v189, %v187
  %v260 = vpack.c.b16 %v190, %v188
  %v261 = vpack.c.b16 %v193, %v191
  %v262 = vpack.c.b16 %v194, %v192
  %v263 = vpack.c.b16 %v197, %v195
  %v264 = vpack.c.b16 %v198, %v196
  %v265 = vpack.c.b16 %v201, %v199
  %v266 = vpack.c.b16 %v202, %v200
  %v267 = vpack.c.b16 %v205, %v203
  %v268 = vpack.c.b16 %v206, %v204
  %v269 = vpack.c.b16 %v209, %v207
  %v270 = vpack.c.b16 %v210, %v208
  %v271 = vpack.c.b16 %v213, %v211
  %v272 = vpack.c.b16 %v214, %v212
  %v273 = vpack.c.b16 %v217, %v215
  %v274 = vpack.c.b16 %v218, %v216
  %v275 = vpack.c.b16 %v221, %v219
  %v276 = vpack.c.b16 %v222, %v220
  %v277 = vpack.c.b16 %v225, %v223
  %v278 = vpack.c.b16 %v226, %v224
  %v279 = vpack.c.b16 %v229, %v227
  %v280 = vpack.c.b16 %v230, %v228
  %v281 = vpack.c.b16 %v231, %v231
  %v282 = vpack.c.b16 %v232, %v232
  %v326 = vunpack.c.l.b16 %v64
  %v327 = vunpack.c.l.b16 %v65
  %v328 = vunpack.c.l.b16 %v66
  %v329 = vunpack.c.l.b16 %v67
  %v330 = vunpack.c.l.b16 %v68
  %v331 = vunpack.c.l.b16 %v69
  %v332 = vunpack.c.l.b16 %v70
  %v333 = vunpack.c.l.b16 %v71
  %v334 = vunpack.c.l.b16 %v72
  %v335 = vunpack.c.l.b16 %v73
  %v336 = vunpack.c.l.b16 %v74
  %v337 = vunpack.c.l.b16 %v75
  %v338 = vunpack.c.l.b16 %v76
  %v339 = vunpack.c.l.b16 %v77
  %v340 = vunpack.c.l.b16 %v78
  %v341 = vunpack.c.l.b16 %v79
  %v342 = vunpack.c.l.b16 %v80
  %v343 = vunpack.c.l.b16 %v81
  %v344 = vpack.c.b16 %v327, %v326
  %v345 = vpack.c.b16 %v329, %v328
  %v346 = vpack.c.b16 %v331, %v330
  %v347 = vpack.c.b16 %v333, %v332
  %v348 = vpack.c.b16 %v335, %v334
  %v349 = vpack.c.b16 %v337, %v336
  %v350 = vpack.c.b16 %v339, %v338
  %v351 = vpack.c.b16 %v341, %v340
  %v352 = vpack.c.b16 %v343, %v342
  %vm362 = vcmask 130048
  %v364 = vsel %vm362, %v234, 0
  %v367 = vsel %vm362, %v236, 0
  %v370 = vsel %vm362, %v238, 0
  %v373 = vsel %vm362, %v240, 0
  %v376 = vsel %vm362, %v242, 0
  %v379 = vsel %vm362, %v244, 0
  %v382 = vsel %vm362, %v246, 0
  %v385 = vsel %vm362, %v248, 0
  %v388 = vsel %vm362, %v250, 0
  %v391 = vsel %vm362, %v252, 0
  %v394 = vsel %vm362, %v254, 0
  %v397 = vsel %vm362, %v256, 0
  %v400 = vsel %vm362, %v258, 0
  %v403 = vsel %vm362, %v260, 0
  %v406 = vsel %vm362, %v262, 0
  %v409 = vsel %vm362, %v264, 0
  %v412 = vsel %vm362, %v266, 0
  %v415 = vsel %vm362, %v268, 0
  %v418 = vsel %vm362, %v270, 0
  %v421 = vsel %vm362, %v272, 0
  %v424 = vsel %vm362, %v274, 0
  %v427 = vsel %vm362, %v276, 0
  %v430 = vsel %vm362, %v278, 0
  %v433 = vsel %vm362, %v280, 0
  %v436 = vsel %vm362, %v282, 0
  %438 = vmatpush.bf16.msra.mxu0 %v351
  %439 = vmatpush.bf16.msra.mxu0 %v350
  %440 = vmatpush.bf16.msra.mxu0 %v349
  %441 = vmatpush.bf16.msra.mxu0 %v348
  %442 = vmatpush.bf16.msra.mxu0 %v347
  %443 = vmatpush.bf16.msra.mxu0 %v346
  %444 = vmatpush.bf16.msra.mxu0 %v345
  %445 = vmatpush.bf16.msra.mxu0 %v344
  %446 = vmatmul.bf16.gmra.mxu0 %v233
  %v447 = vpop.f32.mrf.mxu0
  %v448 = vadd.f32 %v84, %v447
  %v449 = vpop.f32.mrf.mxu0
  %v450 = vadd.f32 %v84, %v449
  %451 = vmatmul.bf16.gmra.mxu0 %v235
  %v452 = vpop.f32.mrf.mxu0
  %v453 = vadd.f32 %v84, %v452
  %v454 = vpop.f32.mrf.mxu0
  %v455 = vadd.f32 %v84, %v454
  %456 = vmatmul.bf16.gmra.mxu0 %v237
  %v457 = vpop.f32.mrf.mxu0
  %v458 = vadd.f32 %v84, %v457
  %v459 = vpop.f32.mrf.mxu0
  %v460 = vadd.f32 %v84, %v459
  %461 = vmatmul.bf16.gmra.mxu0 %v239
  %v462 = vpop.f32.mrf.mxu0
  %v463 = vadd.f32 %v84, %v462
  %v464 = vpop.f32.mrf.mxu0
  %v465 = vadd.f32 %v84, %v464
  %466 = vmatmul.bf16.gmra.mxu0 %v241
  %v467 = vpop.f32.mrf.mxu0
  %v468 = vadd.f32 %v84, %v467
  %v469 = vpop.f32.mrf.mxu0
  %v470 = vadd.f32 %v84, %v469
  %471 = vmatmul.bf16.gmra.mxu0 %v243
  %v472 = vpop.f32.mrf.mxu0
  %v473 = vadd.f32 %v84, %v472
  %v474 = vpop.f32.mrf.mxu0
  %v475 = vadd.f32 %v84, %v474
  %476 = vmatmul.bf16.gmra.mxu0 %v245
  %v477 = vpop.f32.mrf.mxu0
  %v478 = vadd.f32 %v84, %v477
  %v479 = vpop.f32.mrf.mxu0
  %v480 = vadd.f32 %v84, %v479
  %481 = vmatmul.bf16.gmra.mxu0 %v247
  %v482 = vpop.f32.mrf.mxu0
  %v483 = vadd.f32 %v84, %v482
  %v484 = vpop.f32.mrf.mxu0
  %v485 = vadd.f32 %v84, %v484
  %486 = vmatmul.bf16.gmra.mxu0 %v249
  %v487 = vpop.f32.mrf.mxu0
  %v488 = vadd.f32 %v84, %v487
  %v489 = vpop.f32.mrf.mxu0
  %v490 = vadd.f32 %v84, %v489
  %491 = vmatmul.bf16.gmra.mxu0 %v251
  %v492 = vpop.f32.mrf.mxu0
  %v493 = vadd.f32 %v84, %v492
  %v494 = vpop.f32.mrf.mxu0
  %v495 = vadd.f32 %v84, %v494
  %496 = vmatmul.bf16.gmra.mxu0 %v253
  %v497 = vpop.f32.mrf.mxu0
  %v498 = vadd.f32 %v84, %v497
  %v499 = vpop.f32.mrf.mxu0
  %v500 = vadd.f32 %v84, %v499
  %501 = vmatmul.bf16.gmra.mxu0 %v255
  %v502 = vpop.f32.mrf.mxu0
  %v503 = vadd.f32 %v84, %v502
  %v504 = vpop.f32.mrf.mxu0
  %v505 = vadd.f32 %v84, %v504
  %506 = vmatmul.bf16.gmra.mxu0 %v257
  %v507 = vpop.f32.mrf.mxu0
  %v508 = vadd.f32 %v84, %v507
  %v509 = vpop.f32.mrf.mxu0
  %v510 = vadd.f32 %v84, %v509
  %511 = vmatmul.bf16.gmra.mxu0 %v259
  %v512 = vpop.f32.mrf.mxu0
  %v513 = vadd.f32 %v84, %v512
  %v514 = vpop.f32.mrf.mxu0
  %v515 = vadd.f32 %v84, %v514
  %516 = vmatmul.bf16.gmra.mxu0 %v261
  %v517 = vpop.f32.mrf.mxu0
  %v518 = vadd.f32 %v84, %v517
  %v519 = vpop.f32.mrf.mxu0
  %v520 = vadd.f32 %v84, %v519
  %521 = vmatmul.bf16.gmra.mxu0 %v263
  %v522 = vpop.f32.mrf.mxu0
  %v523 = vadd.f32 %v84, %v522
  %v524 = vpop.f32.mrf.mxu0
  %v525 = vadd.f32 %v84, %v524
  %526 = vmatmul.bf16.gmra.mxu0 %v265
  %v527 = vpop.f32.mrf.mxu0
  %v528 = vadd.f32 %v84, %v527
  %v529 = vpop.f32.mrf.mxu0
  %v530 = vadd.f32 %v84, %v529
  %531 = vmatmul.bf16.gmra.mxu0 %v267
  %v532 = vpop.f32.mrf.mxu0
  %v533 = vadd.f32 %v84, %v532
  %v534 = vpop.f32.mrf.mxu0
  %v535 = vadd.f32 %v84, %v534
  %536 = vmatmul.bf16.gmra.mxu0 %v269
  %v537 = vpop.f32.mrf.mxu0
  %v538 = vadd.f32 %v84, %v537
  %v539 = vpop.f32.mrf.mxu0
  %v540 = vadd.f32 %v84, %v539
  %541 = vmatmul.bf16.gmra.mxu0 %v271
  %v542 = vpop.f32.mrf.mxu0
  %v543 = vadd.f32 %v84, %v542
  %v544 = vpop.f32.mrf.mxu0
  %v545 = vadd.f32 %v84, %v544
  %546 = vmatmul.bf16.gmra.mxu0 %v273
  %v547 = vpop.f32.mrf.mxu0
  %v548 = vadd.f32 %v84, %v547
  %v549 = vpop.f32.mrf.mxu0
  %v550 = vadd.f32 %v84, %v549
  %551 = vmatmul.bf16.gmra.mxu0 %v275
  %v552 = vpop.f32.mrf.mxu0
  %v553 = vadd.f32 %v84, %v552
  %v554 = vpop.f32.mrf.mxu0
  %v555 = vadd.f32 %v84, %v554
  %556 = vmatmul.bf16.gmra.mxu0 %v277
  %v557 = vpop.f32.mrf.mxu0
  %v558 = vadd.f32 %v84, %v557
  %v559 = vpop.f32.mrf.mxu0
  %v560 = vadd.f32 %v84, %v559
  %561 = vmatmul.bf16.gmra.mxu0 %v279
  %v562 = vpop.f32.mrf.mxu0
  %v563 = vadd.f32 %v84, %v562
  %v564 = vpop.f32.mrf.mxu0
  %v565 = vadd.f32 %v84, %v564
  %566 = vmatmul.bf16.gmra.mxu0 %v281
  %v567 = vpop.f32.mrf.mxu0
  %v568 = vadd.f32 %v84, %v567
  %v569 = vpop.f32.mrf.mxu0
  %570 = vdwg.mxu0
  %571 = vmatpush.bf16.msra.mxu0 0
  %572 = vmatpush.bf16.msra.mxu0 0
  %573 = vmatpush.bf16.msra.mxu0 0
  %574 = vmatpush.bf16.msra.mxu0 0
  %575 = vmatpush.bf16.msra.mxu0 0
  %576 = vmatpush.bf16.msra.mxu0 0
  %577 = vmatpush.bf16.msra.mxu0 0
  %578 = vmatpush.bf16.msra.mxu0 %v352
  %579 = vmatmul.bf16.gmra.mxu0 %v364
  %v580 = vpop.f32.mrf.mxu0
  %v581 = vadd.f32 %v448, %v580
  %v582 = vpop.f32.mrf.mxu0
  %v583 = vadd.f32 %v450, %v582
  %584 = vmatmul.bf16.gmra.mxu0 %v367
  %v585 = vpop.f32.mrf.mxu0
  %v586 = vadd.f32 %v453, %v585
  %v587 = vpop.f32.mrf.mxu0
  %v588 = vadd.f32 %v455, %v587
  %589 = vmatmul.bf16.gmra.mxu0 %v370
  %v590 = vpop.f32.mrf.mxu0
  %v591 = vadd.f32 %v458, %v590
  %v592 = vpop.f32.mrf.mxu0
  %v593 = vadd.f32 %v460, %v592
  %594 = vmatmul.bf16.gmra.mxu0 %v373
  %v595 = vpop.f32.mrf.mxu0
  %v596 = vadd.f32 %v463, %v595
  %v597 = vpop.f32.mrf.mxu0
  %v598 = vadd.f32 %v465, %v597
  %599 = vmatmul.bf16.gmra.mxu0 %v376
  %v600 = vpop.f32.mrf.mxu0
  %v601 = vadd.f32 %v468, %v600
  %v602 = vpop.f32.mrf.mxu0
  %v603 = vadd.f32 %v470, %v602
  %604 = vmatmul.bf16.gmra.mxu0 %v379
  %v605 = vpop.f32.mrf.mxu0
  %v606 = vadd.f32 %v473, %v605
  %v607 = vpop.f32.mrf.mxu0
  %v608 = vadd.f32 %v475, %v607
  %609 = vmatmul.bf16.gmra.mxu0 %v382
  %v610 = vpop.f32.mrf.mxu0
  %v611 = vadd.f32 %v478, %v610
  %v612 = vpop.f32.mrf.mxu0
  %v613 = vadd.f32 %v480, %v612
  %614 = vmatmul.bf16.gmra.mxu0 %v385
  %v615 = vpop.f32.mrf.mxu0
  %v616 = vadd.f32 %v483, %v615
  %v617 = vpop.f32.mrf.mxu0
  %v618 = vadd.f32 %v485, %v617
  %619 = vmatmul.bf16.gmra.mxu0 %v388
  %v620 = vpop.f32.mrf.mxu0
  %v621 = vadd.f32 %v488, %v620
  %v622 = vpop.f32.mrf.mxu0
  %v623 = vadd.f32 %v490, %v622
  %624 = vmatmul.bf16.gmra.mxu0 %v391
  %v625 = vpop.f32.mrf.mxu0
  %v626 = vadd.f32 %v493, %v625
  %v627 = vpop.f32.mrf.mxu0
  %v628 = vadd.f32 %v495, %v627
  %629 = vmatmul.bf16.gmra.mxu0 %v394
  %v630 = vpop.f32.mrf.mxu0
  %v631 = vadd.f32 %v498, %v630
  %v632 = vpop.f32.mrf.mxu0
  %v633 = vadd.f32 %v500, %v632
  %634 = vmatmul.bf16.gmra.mxu0 %v397
  %v635 = vpop.f32.mrf.mxu0
  %v636 = vadd.f32 %v503, %v635
  %v637 = vpop.f32.mrf.mxu0
  %v638 = vadd.f32 %v505, %v637
  %639 = vmatmul.bf16.gmra.mxu0 %v400
  %v640 = vpop.f32.mrf.mxu0
  %v641 = vadd.f32 %v508, %v640
  %v642 = vpop.f32.mrf.mxu0
  %v643 = vadd.f32 %v510, %v642
  %644 = vmatmul.bf16.gmra.mxu0 %v403
  %v645 = vpop.f32.mrf.mxu0
  %v646 = vadd.f32 %v513, %v645
  %v647 = vpop.f32.mrf.mxu0
  %v648 = vadd.f32 %v515, %v647
  %649 = vmatmul.bf16.gmra.mxu0 %v406
  %v650 = vpop.f32.mrf.mxu0
  %v651 = vadd.f32 %v518, %v650
  %v652 = vpop.f32.mrf.mxu0
  %v653 = vadd.f32 %v520, %v652
  %654 = vmatmul.bf16.gmra.mxu0 %v409
  %v655 = vpop.f32.mrf.mxu0
  %v656 = vadd.f32 %v523, %v655
  %v657 = vpop.f32.mrf.mxu0
  %v658 = vadd.f32 %v525, %v657
  %659 = vmatmul.bf16.gmra.mxu0 %v412
  %v660 = vpop.f32.mrf.mxu0
  %v661 = vadd.f32 %v528, %v660
  %v662 = vpop.f32.mrf.mxu0
  %v663 = vadd.f32 %v530, %v662
  %664 = vmatmul.bf16.gmra.mxu0 %v415
  %v665 = vpop.f32.mrf.mxu0
  %v666 = vadd.f32 %v533, %v665
  %v667 = vpop.f32.mrf.mxu0
  %v668 = vadd.f32 %v535, %v667
  %669 = vmatmul.bf16.gmra.mxu0 %v418
  %v670 = vpop.f32.mrf.mxu0
  %v671 = vadd.f32 %v538, %v670
  %v672 = vpop.f32.mrf.mxu0
  %v673 = vadd.f32 %v540, %v672
  %674 = vmatmul.bf16.gmra.mxu0 %v421
  %v675 = vpop.f32.mrf.mxu0
  %v676 = vadd.f32 %v543, %v675
  %v677 = vpop.f32.mrf.mxu0
  %v678 = vadd.f32 %v545, %v677
  %679 = vmatmul.bf16.gmra.mxu0 %v424
  %v680 = vpop.f32.mrf.mxu0
  %v681 = vadd.f32 %v548, %v680
  %v682 = vpop.f32.mrf.mxu0
  %v683 = vadd.f32 %v550, %v682
  %684 = vmatmul.bf16.gmra.mxu0 %v427
  %v685 = vpop.f32.mrf.mxu0
  %v686 = vadd.f32 %v553, %v685
  %v687 = vpop.f32.mrf.mxu0
  %v688 = vadd.f32 %v555, %v687
  %689 = vmatmul.bf16.gmra.mxu0 %v430
  %v690 = vpop.f32.mrf.mxu0
  %v691 = vadd.f32 %v558, %v690
  %v692 = vpop.f32.mrf.mxu0
  %v693 = vadd.f32 %v560, %v692
  %694 = vmatmul.bf16.gmra.mxu0 %v433
  %v695 = vpop.f32.mrf.mxu0
  %v696 = vadd.f32 %v563, %v695
  %v697 = vpop.f32.mrf.mxu0
  %v698 = vadd.f32 %v565, %v697
  %699 = vmatmul.bf16.gmra.mxu0 %v436
  %v700 = vpop.f32.mrf.mxu0
  %v701 = vadd.f32 %v568, %v700
  %v702 = vpop.f32.mrf.mxu0
  %703 = vdwg.mxu0
  %vm704 = vcmask 31744
  %705 = vst.msk [vmem:[%s3] sm:$0xff] %vm704, %v581
  %706 = vst.msk [vmem:[%s3 + $0x8] sm:$0xff] %vm704, %v583
  %707 = vst.msk [vmem:[%s3 + $0x10] sm:$0xff] %vm704, %v586
  %708 = vst.msk [vmem:[%s3 + $0x18] sm:$0xff] %vm704, %v588
  %709 = vst.msk [vmem:[%s3 + $0x20] sm:$0xff] %vm704, %v591
  %710 = vst.msk [vmem:[%s3 + $0x28] sm:$0xff] %vm704, %v593
  %711 = vst.msk [vmem:[%s3 + $0x30] sm:$0xff] %vm704, %v596
  %712 = vst.msk [vmem:[%s3 + $0x38] sm:$0xff] %vm704, %v598
  %713 = vst.msk [vmem:[%s3 + $0x40] sm:$0xff] %vm704, %v601
  %714 = vst.msk [vmem:[%s3 + $0x48] sm:$0xff] %vm704, %v603
  %715 = vst.msk [vmem:[%s3 + $0x50] sm:$0xff] %vm704, %v606
  %716 = vst.msk [vmem:[%s3 + $0x58] sm:$0xff] %vm704, %v608
  %717 = vst.msk [vmem:[%s3 + $0x60] sm:$0xff] %vm704, %v611
  %718 = vst.msk [vmem:[%s3 + $0x68] sm:$0xff] %vm704, %v613
  %719 = vst.msk [vmem:[%s3 + $0x70] sm:$0xff] %vm704, %v616
  %720 = vst.msk [vmem:[%s3 + $0x78] sm:$0xff] %vm704, %v618
  %721 = vst.msk [vmem:[%s3 + $0x80] sm:$0xff] %vm704, %v621
  %722 = vst.msk [vmem:[%s3 + $0x88] sm:$0xff] %vm704, %v623
  %723 = vst.msk [vmem:[%s3 + $0x90] sm:$0xff] %vm704, %v626
  %724 = vst.msk [vmem:[%s3 + $0x98] sm:$0xff] %vm704, %v628
  %725 = vst.msk [vmem:[%s3 + $0xa0] sm:$0xff] %vm704, %v631
  %726 = vst.msk [vmem:[%s3 + $0xa8] sm:$0xff] %vm704, %v633
  %727 = vst.msk [vmem:[%s3 + $0xb0] sm:$0xff] %vm704, %v636
  %728 = vst.msk [vmem:[%s3 + $0xb8] sm:$0xff] %vm704, %v638
  %729 = vst.msk [vmem:[%s3 + $0xc0] sm:$0xff] %vm704, %v641
  %730 = vst.msk [vmem:[%s3 + $0xc8] sm:$0xff] %vm704, %v643
  %731 = vst.msk [vmem:[%s3 + $0xd0] sm:$0xff] %vm704, %v646
  %732 = vst.msk [vmem:[%s3 + $0xd8] sm:$0xff] %vm704, %v648
  %733 = vst.msk [vmem:[%s3 + $0xe0] sm:$0xff] %vm704, %v651
  %734 = vst.msk [vmem:[%s3 + $0xe8] sm:$0xff] %vm704, %v653
  %735 = vst.msk [vmem:[%s3 + $0xf0] sm:$0xff] %vm704, %v656
  %736 = vst.msk [vmem:[%s3 + $0xf8] sm:$0xff] %vm704, %v658
  %737 = vst.msk [vmem:[%s3 + $0x100] sm:$0xff] %vm704, %v661
  %738 = vst.msk [vmem:[%s3 + $0x108] sm:$0xff] %vm704, %v663
  %739 = vst.msk [vmem:[%s3 + $0x110] sm:$0xff] %vm704, %v666
  %740 = vst.msk [vmem:[%s3 + $0x118] sm:$0xff] %vm704, %v668
  %741 = vst.msk [vmem:[%s3 + $0x120] sm:$0xff] %vm704, %v671
  %742 = vst.msk [vmem:[%s3 + $0x128] sm:$0xff] %vm704, %v673
  %743 = vst.msk [vmem:[%s3 + $0x130] sm:$0xff] %vm704, %v676
  %744 = vst.msk [vmem:[%s3 + $0x138] sm:$0xff] %vm704, %v678
  %745 = vst.msk [vmem:[%s3 + $0x140] sm:$0xff] %vm704, %v681
  %746 = vst.msk [vmem:[%s3 + $0x148] sm:$0xff] %vm704, %v683
  %747 = vst.msk [vmem:[%s3 + $0x150] sm:$0xff] %vm704, %v686
  %748 = vst.msk [vmem:[%s3 + $0x158] sm:$0xff] %vm704, %v688
  %749 = vst.msk [vmem:[%s3 + $0x160] sm:$0xff] %vm704, %v691
  %750 = vst.msk [vmem:[%s3 + $0x168] sm:$0xff] %vm704, %v693
  %751 = vst.msk [vmem:[%s3 + $0x170] sm:$0xff] %vm704, %v696
  %752 = vst.msk [vmem:[%s3 + $0x178] sm:$0xff] %vm704, %v698
  %753 = vst.msk [vmem:[%s3 + $0x180] sm:$0xff] %vm704, %v701
  // Predicated region
  $region14: #{autoencoder_forward.9} parent=0 // pred_check
    _
  $region15: #{autoencoder_forward.9} parent=0 // pred_check_branch
    %755 = sbr.rel (0) target = $region17
  $region16: #{autoencoder_forward.9} parent=0 // pred_region
    _
  $region17: #{autoencoder_forward.9} parent=0 // pred_fallthru
    _
  // Predicated region
  $region18: #{autoencoder_forward.9} parent=0 // pred_check
    _
  $region19: #{autoencoder_forward.9} parent=0 // pred_check_branch
    %757 = sbr.rel (0) target = $region21
  $region20: #{autoencoder_forward.9} parent=0 // pred_region
    _
  $region21: #{autoencoder_forward.9} parent=0 // pred_fallthru
    _

</llo_original>
